<compile_context>
chip_gen: v5e
topology: v5e:2x2
jax: 0.10.0
libtpu: 0.0.40
codegen_flags: <defaults>
</compile_context>

<pallas_src>
import functools

import jax
import jax.numpy as jnp
from jax import lax
from jax.experimental import pallas as pl
from jax.experimental.pallas import tpu as pltpu

NEG_INF = -1.0e30
LANE = 128                              # pad matmul output dims to full lanes
BLOCK_M = 256                           # M-tile (sized for v7x 64 MiB VMEM)
VMEM_LIMIT_BYTES = 28 * 1024 * 1024     # headroom below 32 MiB scoped default


def _round_up(x, m):
    return ((x + m - 1) // m) * m


# ----------------------------------------------------------------------------
# Gridded linear (matmul + bias + activation), bf16 MXU operands, f32 acc
# ----------------------------------------------------------------------------

def _linear_kernel(x_ref, w_ref, b_ref, o_ref, *, activation):
    acc = jnp.dot(x_ref[...], w_ref[...], preferred_element_type=jnp.float32)
    acc = acc + b_ref[...]                      # (1, Npad) broadcasts over rows
    if activation == "relu":
        acc = jnp.maximum(acc, 0.0)
    elif activation == "tanh":
        acc = jnp.tanh(acc)
    o_ref[...] = acc


def linear(x, w, b, activation="none", block_m=BLOCK_M):
    """x: (M, K), w: (K, N), b: (1, N) -> (M, N) f32.

    M is tiled (parallel grid axis), K/N stay whole (small), N is zero-padded
    to a multiple of 128 for lane-dense stores and sliced back in the wrapper.
    """
    M, K = x.shape
    N = w.shape[1]
    Npad = _round_up(N, LANE)
    bm = min(block_m, _round_up(M, 8))
    Mpad = _round_up(M, bm)

    xb = jnp.pad(x, ((0, Mpad - M), (0, 0))).astype(jnp.bfloat16)
    wb = jnp.pad(w, ((0, 0), (0, Npad - N))).astype(jnp.bfloat16)
    bb = jnp.pad(b.astype(jnp.float32), ((0, 0), (0, Npad - N)))

    out = pl.pallas_call(
        functools.partial(_linear_kernel, activation=activation),
        grid=(Mpad // bm,),
        in_specs=[
            pl.BlockSpec((bm, K), lambda i: (i, 0)),
            pl.BlockSpec((K, Npad), lambda i: (0, 0)),
            pl.BlockSpec((1, Npad), lambda i: (0, 0)),
        ],
        out_specs=pl.BlockSpec((bm, Npad), lambda i: (i, 0)),
        out_shape=jax.ShapeDtypeStruct((Mpad, Npad), jnp.float32),
        compiler_params=pltpu.CompilerParams(
            dimension_semantics=("parallel",),
            vmem_limit_bytes=VMEM_LIMIT_BYTES),
    )(xb, wb, bb)
    return out[:M, :N]


# ----------------------------------------------------------------------------
# Fused head: matmul + bias + log_softmax (CTC logits -> log-probs)
# ----------------------------------------------------------------------------

def _linear_logsoftmax_kernel(x_ref, w_ref, b_ref, o_ref):
    logits = jnp.dot(x_ref[...], w_ref[...],
                     preferred_element_type=jnp.float32) + b_ref[...]
    m = jnp.max(logits, axis=-1, keepdims=True)
    z = logits - m
    lse = jnp.log(jnp.sum(jnp.exp(z), axis=-1, keepdims=True))
    o_ref[...] = z - lse


def linear_logsoftmax(x, w, b, block_m=BLOCK_M):
    """Fused (M,K)@(K,N)+b -> log_softmax over N.  Padded vocab lanes get bias
    -1e30 so they contribute ~0 to the softmax; sliced off in the wrapper."""
    M, K = x.shape
    N = w.shape[1]
    Npad = _round_up(N, LANE)
    bm = min(block_m, _round_up(M, 8))
    Mpad = _round_up(M, bm)

    xb = jnp.pad(x, ((0, Mpad - M), (0, 0))).astype(jnp.bfloat16)
    wb = jnp.pad(w, ((0, 0), (0, Npad - N))).astype(jnp.bfloat16)
    bb = jnp.pad(b.astype(jnp.float32), ((0, 0), (0, Npad - N)),
                 constant_values=NEG_INF)

    out = pl.pallas_call(
        _linear_logsoftmax_kernel,
        grid=(Mpad // bm,),
        in_specs=[
            pl.BlockSpec((bm, K), lambda i: (i, 0)),
            pl.BlockSpec((K, Npad), lambda i: (0, 0)),
            pl.BlockSpec((1, Npad), lambda i: (0, 0)),
        ],
        out_specs=pl.BlockSpec((bm, Npad), lambda i: (i, 0)),
        out_shape=jax.ShapeDtypeStruct((Mpad, Npad), jnp.float32),
        compiler_params=pltpu.CompilerParams(
            dimension_semantics=("parallel",),
            vmem_limit_bytes=VMEM_LIMIT_BYTES),
    )(xb, wb, bb)
    return out[:M, :N]


# ----------------------------------------------------------------------------
# 3x3 "same" conv + ReLU, in-kernel shifts (no im2col in HBM)
# ----------------------------------------------------------------------------

def _conv3x3_relu_kernel(xp_ref, wbd_ref, b_ref, o_ref, *, T, F, Cin, Cout):
    # xp_ref : (1, T+2, (F+2)*Cin) f32, zero-padded input for one batch elem
    # wbd_ref: (9, F*Cin, F*Cout) bf16, block-diagonal per-tap weights
    # b_ref  : (1, F*Cout) f32, bias tiled over frequency
    x = xp_ref[0]
    acc = jnp.zeros((T, F * Cout), jnp.float32)
    for tap in range(9):                              # static unroll: 9 MXU passes
        dt, df = divmod(tap, 3)
        sl = x[dt:dt + T, df * Cin:(df + F) * Cin].astype(jnp.bfloat16)
        acc = acc + jnp.dot(sl, wbd_ref[tap],
                            preferred_element_type=jnp.float32)
    o_ref[0] = jnp.maximum(acc + b_ref[...], 0.0)


def conv3x3_relu(x, w, b):
    """x: (B,T,F,Cin) f32; w: (3,3,Cin,Cout); b: (1,Cout).  'same' conv + ReLU.

    The frequency/channel axes are flattened so the 3x3 taps become 9 shifted
    2-D VMEM slices, each contracted with a block-diagonal (F*Cin, F*Cout)
    weight slab on the MXU.  Output last dim F*Cout is 128 at these shapes
    (lane-dense stores).  Suited to small F*C; for large F tile F as well.
    """
    B, T, F, Cin = x.shape
    Cout = w.shape[-1]
    xp = jnp.pad(x, ((0, 0), (1, 1), (1, 1), (0, 0)))
    xp = xp.reshape(B, T + 2, (F + 2) * Cin).astype(jnp.float32)

    w9 = w.reshape(9, Cin, Cout).astype(jnp.float32)
    eyeF = jnp.eye(F, dtype=jnp.float32)
    wbd = jnp.einsum("fg,kio->kfigo", eyeF, w9)
    wbd = wbd.reshape(9, F * Cin, F * Cout).astype(jnp.bfloat16)
    bt = jnp.tile(b.astype(jnp.float32), (1, F))          # (1, F*Cout)

    out = pl.pallas_call(
        functools.partial(_conv3x3_relu_kernel, T=T, F=F, Cin=Cin, Cout=Cout),
        grid=(B,),
        in_specs=[
            pl.BlockSpec((1, T + 2, (F + 2) * Cin), lambda bi: (bi, 0, 0)),
            pl.BlockSpec((9, F * Cin, F * Cout), lambda bi: (0, 0, 0)),
            pl.BlockSpec((1, F * Cout), lambda bi: (0, 0)),
        ],
        out_specs=pl.BlockSpec((1, T, F * Cout), lambda bi: (bi, 0, 0)),
        out_shape=jax.ShapeDtypeStruct((B, T, F * Cout), jnp.float32),
        compiler_params=pltpu.CompilerParams(
            dimension_semantics=("parallel",),
            vmem_limit_bytes=VMEM_LIMIT_BYTES),
    )(xp, wbd, bt)
    return out.reshape(B, T, F, Cout)


def maxpool_freq2(x):
    B, T, F, C = x.shape
    return x.reshape(B, T, F // 2, 2, C).max(axis=3)


# ----------------------------------------------------------------------------
# Fused GRU + DNN encoder tail (weights/hidden VMEM-resident, loop over T)
# ----------------------------------------------------------------------------

def _gru_dnn_kernel(x_ref, wih_ref, bih_ref, whh_ref, bhh_ref, wd_ref, bd_ref,
                    o_ref, *, T, B, H):
    w_ih = wih_ref[...]
    b_ih = bih_ref[...]
    w_hh = whh_ref[...]
    b_hh = bhh_ref[...]
    w_d = wd_ref[...]
    b_d = bd_ref[...]

    def step(t, h):
        xt = x_ref[t]                                        # (B, In) bf16
        gx = jnp.dot(xt, w_ih, preferred_element_type=jnp.float32) + b_ih
        gh = jnp.dot(h.astype(jnp.bfloat16), w_hh,
                     preferred_element_type=jnp.float32) + b_hh
        r = 1.0 / (1.0 + jnp.exp(-(gx[:, :H] + gh[:, :H])))
        z = 1.0 / (1.0 + jnp.exp(-(gx[:, H:2 * H] + gh[:, H:2 * H])))
        n = jnp.tanh(gx[:, 2 * H:] + r * gh[:, 2 * H:])
        h_new = (1.0 - z) * n + z * h
        enc_t = jnp.maximum(
            jnp.dot(h_new.astype(jnp.bfloat16), w_d,
                    preferred_element_type=jnp.float32) + b_d, 0.0)
        o_ref[t] = enc_t
        return h_new

    lax.fori_loop(0, T, step, jnp.zeros((B, H), jnp.float32))


def gru_dnn(x, w_ih, b_ih, w_hh, b_hh, w_d, b_d):
    """x: (B, T, In) -> encoder_out (B, T, D).  Single Pallas kernel: the GRU
    recurrence and the DNN(ReLU) projection run per step on the MXU with all
    weights and the hidden state resident on-chip (no per-step HBM traffic)."""
    B, T, _ = x.shape
    H = w_hh.shape[0]
    D = w_d.shape[1]
    xt = jnp.swapaxes(x, 0, 1).astype(jnp.bfloat16)          # (T, B, In)
    out = pl.pallas_call(
        functools.partial(_gru_dnn_kernel, T=T, B=B, H=H),
        out_shape=jax.ShapeDtypeStruct((T, B, D), jnp.float32),
        compiler_params=pltpu.CompilerParams(
            vmem_limit_bytes=VMEM_LIMIT_BYTES),
    )(xt, w_ih.astype(jnp.bfloat16), b_ih.astype(jnp.float32),
      w_hh.astype(jnp.bfloat16), b_hh.astype(jnp.float32),
      w_d.astype(jnp.bfloat16), b_d.astype(jnp.float32))
    return jnp.swapaxes(out, 0, 1)                           # (B, T, D)


# ----------------------------------------------------------------------------
# Fused attention decoder tail: q-proj -> attention -> tanh hidden -> logits
# -> log_softmax, one grid step per batch element.
# ----------------------------------------------------------------------------

def _decoder_kernel(emb_ref, enc_ref, encT_ref, wq_ref, bq_ref, whe_ref,
                    whc_ref, bh_ref, wo_ref, bo_ref, o_ref, *, scale):
    emb = emb_ref[0]                                         # (Lp1, E) bf16
    enc = enc_ref[0]                                         # (T,  D)  bf16
    encT = encT_ref[0]                                       # (D,  T)  bf16

    # query projection
    q = jnp.dot(emb, wq_ref[...], preferred_element_type=jnp.float32) + bq_ref[...]
    # scaled dot-product attention over encoder frames
    s = jnp.dot(q.astype(jnp.bfloat16), encT,
                preferred_element_type=jnp.float32) * scale
    s = s - jnp.max(s, axis=-1, keepdims=True)
    p = jnp.exp(s)
    p = p * pl.reciprocal(jnp.sum(p, axis=-1, keepdims=True), approx=True)
    ctx = jnp.dot(p.astype(jnp.bfloat16), enc,
                  preferred_element_type=jnp.float32)        # (Lp1, D)
    # tanh([emb; ctx] @ Wh + bh) == tanh(emb@Wh_e + ctx@Wh_c + bh)
    h = jnp.tanh(
        jnp.dot(emb, whe_ref[...], preferred_element_type=jnp.float32)
        + jnp.dot(ctx.astype(jnp.bfloat16), whc_ref[...],
                  preferred_element_type=jnp.float32)
        + bh_ref[...])
    logits = (jnp.dot(h.astype(jnp.bfloat16), wo_ref[...],
                      preferred_element_type=jnp.float32) + bo_ref[...])
    # log_softmax (padded vocab lanes carry bias -1e30 -> contribute ~0)
    m = jnp.max(logits, axis=-1, keepdims=True)
    z = logits - m
    lse = jnp.log(jnp.sum(jnp.exp(z), axis=-1, keepdims=True))
    o_ref[0] = z - lse


def decoder_fused(emb, enc, wq, bq, wh, bh, wo, bo):
    """emb: (B, L+1, E); enc: (B, T, D) -> decoder log-probs (B, L+1, V)."""
    B, Lp1, E = emb.shape
    T, D = enc.shape[1], enc.shape[2]
    V = wo.shape[1]
    Vpad = _round_up(V, LANE)
    scale = 1.0 / (D ** 0.5)

    emb_b = emb.astype(jnp.bfloat16)
    enc_b = enc.astype(jnp.bfloat16)
    encT_b = jnp.swapaxes(enc_b, 1, 2)                       # (B, D, T)
    whe = wh[:E].astype(jnp.bfloat16)                        # (E, D)
    whc = wh[E:].astype(jnp.bfloat16)                        # (D, D)
    wo_p = jnp.pad(wo, ((0, 0), (0, Vpad - V))).astype(jnp.bfloat16)
    bo_p = jnp.pad(bo.astype(jnp.float32), ((0, 0), (0, Vpad - V)),
                   constant_values=NEG_INF)

    out = pl.pallas_call(
        functools.partial(_decoder_kernel, scale=scale),
        grid=(B,),
        in_specs=[
            pl.BlockSpec((1, Lp1, E), lambda b: (b, 0, 0)),
            pl.BlockSpec((1, T, D), lambda b: (b, 0, 0)),
            pl.BlockSpec((1, D, T), lambda b: (b, 0, 0)),
            pl.BlockSpec((E, D), lambda b: (0, 0)),
            pl.BlockSpec((1, D), lambda b: (0, 0)),
            pl.BlockSpec((E, D), lambda b: (0, 0)),
            pl.BlockSpec((D, D), lambda b: (0, 0)),
            pl.BlockSpec((1, D), lambda b: (0, 0)),
            pl.BlockSpec((D, Vpad), lambda b: (0, 0)),
            pl.BlockSpec((1, Vpad), lambda b: (0, 0)),
        ],
        out_specs=pl.BlockSpec((1, Lp1, Vpad), lambda b: (b, 0, 0)),
        out_shape=jax.ShapeDtypeStruct((B, Lp1, Vpad), jnp.float32),
        compiler_params=pltpu.CompilerParams(
            dimension_semantics=("parallel",),
            vmem_limit_bytes=VMEM_LIMIT_BYTES),
    )(emb_b, enc_b, encT_b,
      wq.astype(jnp.bfloat16), bq.astype(jnp.float32),
      whe, whc, bh.astype(jnp.float32), wo_p, bo_p)
    return out[:, :, :V]


# ----------------------------------------------------------------------------
# Losses (CTC forward DP + label smoothing) — DP is sequential -> plain JAX
# ----------------------------------------------------------------------------

def ctc_loss(log_probs, input_lens, targets, target_lens, blank=0):
    """log_probs: (B, T, V) log-softmax; targets: (B, L) int32 (-1 padded)."""
    # TODO(synk): the per-timestep CTC alpha recursion is inherently sequential
    # and tiny; kept as a lax.scan in plain JAX rather than a Pallas kernel.
    B, T, V = log_probs.shape
    L = targets.shape[1]
    S = 2 * L + 1
    tgt = jnp.where(targets < 0, 0, targets).astype(jnp.int32)
    ext = jnp.zeros((B, S), jnp.int32).at[:, 1::2].set(tgt)
    ext_prev2 = jnp.concatenate(
        [jnp.full((B, 2), -1, jnp.int32), ext[:, :-2]], axis=1)
    allow_skip = (ext != blank) & (ext != ext_prev2)

    lp0 = log_probs[:, 0, :]
    alpha0 = jnp.full((B, S), NEG_INF, jnp.float32)
    alpha0 = alpha0.at[:, 0].set(lp0[:, blank])
    alpha0 = alpha0.at[:, 1].set(
        jnp.take_along_axis(lp0, ext[:, 1:2], axis=1)[:, 0])

    def lse3(a, b, c):
        m = jnp.maximum(jnp.maximum(a, b), c)
        m = jnp.maximum(m, NEG_INF)
        return m + jnp.log(jnp.exp(a - m) + jnp.exp(b - m) + jnp.exp(c - m))

    def step(alpha, inp):
        lp_t, t = inp
        a1 = jnp.concatenate(
            [jnp.full((B, 1), NEG_INF, jnp.float32), alpha[:, :-1]], axis=1)
        a2 = jnp.concatenate(
            [jnp.full((B, 2), NEG_INF, jnp.float32), alpha[:, :-2]], axis=1)
        a2 = jnp.where(allow_skip, a2, NEG_INF)
        emit = jnp.take_along_axis(lp_t, ext, axis=1)
        new = lse3(alpha, a1, a2) + emit
        valid = (t < input_lens)[:, None]
        return jnp.where(valid, new, alpha), None

    lps = jnp.swapaxes(log_probs[:, 1:, :], 0, 1)   # (T-1, B, V)
    ts = jnp.arange(1, T)
    alpha, _ = lax.scan(step, alpha0, (lps, ts))

    last = (2 * target_lens).astype(jnp.int32)
    a_last = jnp.take_along_axis(alpha, last[:, None], axis=1)[:, 0]
    a_prev = jnp.take_along_axis(alpha, (last - 1)[:, None], axis=1)[:, 0]
    m = jnp.maximum(a_last, a_prev)
    ll = m + jnp.log(jnp.exp(a_last - m) + jnp.exp(a_prev - m))
    return -jnp.sum(ll) / B                         # torch CTCLoss(sum) / batch


def label_smoothing_loss(logp, ys_out_pad, vocab, padding_idx,
                         smoothing, normalize_length=False):
    """logp: (B, L+1, V) decoder log-probs (log_softmax fused in the kernel)."""
    B, Lp1, V = logp.shape
    logp2 = logp.reshape(B * Lp1, V)
    target = ys_out_pad.reshape(-1)
    ignore = target == padding_idx
    tclamp = jnp.where(ignore, 0, target)
    confidence = 1.0 - smoothing
    low = smoothing / (vocab - 1)
    true_dist = jnp.full((B * Lp1, V), low, jnp.float32)
    true_dist = true_dist.at[jnp.arange(B * Lp1), tclamp].set(confidence)
    kl = true_dist * (jnp.log(jnp.clip(true_dist, 1e-30, None)) - logp2)
    kl = jnp.where(ignore[:, None], 0.0, kl)
    denom = jnp.where(normalize_length, jnp.sum(~ignore), B).astype(jnp.float32)
    return jnp.sum(kl) / denom


def th_accuracy(dec_logp, ys_out_pad, ignore_id):
    pred = jnp.argmax(dec_logp, axis=-1)
    mask = ys_out_pad != ignore_id
    return jnp.sum((pred == ys_out_pad) & mask) / jnp.maximum(jnp.sum(mask), 1)


def add_sos_eos(padding_ys, ys_lens, sos, eos, ignore_id):
    B, L = padding_ys.shape
    idx = jnp.arange(L + 1)[None, :]
    ys_in_pad = jnp.concatenate(
        [jnp.full((B, 1), sos, jnp.int32),
         jnp.where(padding_ys == ignore_id, eos, padding_ys).astype(jnp.int32)],
        axis=1)
    padded = jnp.pad(padding_ys, ((0, 0), (0, 1)), constant_values=0)
    ys_out_pad = jnp.where(
        idx < ys_lens[:, None], padded,
        jnp.where(idx == ys_lens[:, None], eos, ignore_id)).astype(jnp.int32)
    return ys_in_pad, ys_out_pad


# ----------------------------------------------------------------------------
# CRDNN forward
# ----------------------------------------------------------------------------

VOCAB = 32
FEAT = 16
C1, C2 = 8, 16
HID = 32
ENC_D = 32          # encoder_output_size
EMB = 32
IGNORE_ID = -1
SOS = EOS = VOCAB - 1
CTC_WEIGHT = 0.3
LSM_WEIGHT = 0.1


def init_params(key):
    ks = jax.random.split(key, 12)

    def nrm(k, shape, scale=0.1):
        return (scale * jax.random.normal(k, shape)).astype(jnp.float32)

    z = lambda *s: jnp.zeros(s, jnp.float32)
    return {
        "conv1_w": nrm(ks[0], (3, 3, 1, C1)),   "conv1_b": z(1, C1),
        "conv2_w": nrm(ks[1], (3, 3, C1, C2)),  "conv2_b": z(1, C2),
        "proj_w":  nrm(ks[2], (FEAT // 4 * C2, HID)), "proj_b": z(1, HID),
        "gru_w_ih": nrm(ks[3], (HID, 3 * HID)), "gru_b_ih": z(1, 3 * HID),
        "gru_w_hh": nrm(ks[4], (HID, 3 * HID)), "gru_b_hh": z(1, 3 * HID),
        "dnn_w":   nrm(ks[5], (HID, ENC_D)),    "dnn_b": z(1, ENC_D),
        "ctc_w":   nrm(ks[6], (ENC_D, VOCAB)),  "ctc_b": z(1, VOCAB),
        "embed":   nrm(ks[7], (VOCAB, EMB)),
        "dec_q_w": nrm(ks[8], (EMB, ENC_D)),    "dec_q_b": z(1, ENC_D),
        "dec_h_w": nrm(ks[9], (EMB + ENC_D, ENC_D)), "dec_h_b": z(1, ENC_D),
        "dec_o_w": nrm(ks[10], (ENC_D, VOCAB)), "dec_o_b": z(1, VOCAB),
    }


def crdnn_forward(params, xs, xs_lens, padding_ys, ys_lens):
    B, T, F = xs.shape

    # ----- encoder: CNN (Pallas conv) -> GRU + DNN (fused Pallas kernel) -----
    x = xs[..., None]                                         # (B, T, F, 1)
    x = conv3x3_relu(x, params["conv1_w"], params["conv1_b"])
    x = maxpool_freq2(x)                                      # (B, T, F/2, C1)
    x = conv3x3_relu(x, params["conv2_w"], params["conv2_b"])
    x = maxpool_freq2(x)                                      # (B, T, F/4, C2)
    x = x.reshape(B, T, -1)
    x = linear(x.reshape(B * T, -1), params["proj_w"], params["proj_b"],
               activation="relu").reshape(B, T, HID)
    encoder_out = gru_dnn(x, params["gru_w_ih"], params["gru_b_ih"],
                          params["gru_w_hh"], params["gru_b_hh"],
                          params["dnn_w"], params["dnn_b"])   # (B, T, ENC_D)

    # ----- CTC branch: fused logits + log_softmax -----
    ctc_logp = linear_logsoftmax(
        encoder_out.reshape(B * T, ENC_D),
        params["ctc_w"], params["ctc_b"]).reshape(B, T, VOCAB)
    loss_ctc = ctc_loss(ctc_logp, xs_lens, padding_ys, ys_lens, blank=0)
    y_hats = jnp.argmax(ctc_logp, axis=-1)

    # ----- attention decoder branch: fully fused Pallas kernel -----
    ys_in_pad, ys_out_pad = add_sos_eos(padding_ys, ys_lens, SOS, EOS, IGNORE_ID)
    emb = jnp.take(params["embed"], ys_in_pad, axis=0)        # (B, L+1, E)
    dec_logp = decoder_fused(emb, encoder_out,
                             params["dec_q_w"], params["dec_q_b"],
                             params["dec_h_w"], params["dec_h_b"],
                             params["dec_o_w"], params["dec_o_b"])

    loss_att = label_smoothing_loss(dec_logp, ys_out_pad, VOCAB,
                                    IGNORE_ID, LSM_WEIGHT,
                                    normalize_length=False)
    acc_att = th_accuracy(dec_logp, ys_out_pad, IGNORE_ID)
    loss = CTC_WEIGHT * loss_ctc + (1.0 - CTC_WEIGHT) * loss_att

    return {
        "loss": loss,
        "ctc_loss": loss_ctc,
        "att_loss": loss_att,
        "th_acc": acc_att,
        "encoder_out": encoder_out,
        "y_hats": y_hats,
    }


# ----------------------------------------------------------------------------
# main
# ----------------------------------------------------------------------------

if __name__ == "__main__":
    key = jax.random.PRNGKey(0)
    kp, kx, ky = jax.random.split(key, 3)

    params = init_params(kp)

    B, T, L = 2, 16, 6
    xs = jax.random.normal(kx, (B, T, FEAT), jnp.float32)
    xs_lens = jnp.array([16, 12], jnp.int32)
    ys_lens = jnp.array([6, 4], jnp.int32)
    raw_ys = jax.random.randint(ky, (B, L), 1, VOCAB - 1, jnp.int32)
    pos = jnp.arange(L)[None, :]
    padding_ys = jnp.where(pos < ys_lens[:, None], raw_ys, IGNORE_ID)

    fwd = jax.jit(crdnn_forward)
    out = fwd(params, xs, xs_lens, padding_ys, ys_lens)
    jax.block_until_ready(out)

    assert jnp.isfinite(out["loss"]).item()
    assert out["encoder_out"].shape == (B, T, ENC_D)
    assert out["y_hats"].shape == (B, T)
    print("KERNEL_OK")
</pallas_src>

<mosaic_0001>
module attributes {stable_mosaic.version = 11 : i64} {
  func.func @_conv3x3_relu_kernel(%arg0: i32, %arg1: memref<1x18x18xf32, #tpu.memory_space<vmem>>, %arg2: memref<9x16x128xbf16, #tpu.memory_space<vmem>>, %arg3: memref<1x128xf32, #tpu.memory_space<vmem>>, %arg4: memref<1x16x128xf32, #tpu.memory_space<vmem>>) attributes {dimension_semantics = [#tpu.dimension_semantics<parallel>], iteration_bounds = array<i64: 2>, scalar_prefetch = 0 : i64, scratch_operands = 0 : i64, tpu.core_type = #tpu.core_type<tc>, window_params = [{transform_indices = @transform_0, window_bounds = array<i64: 1, 18, 18>}, {pipeline_mode = #tpu.pipeline_mode<synchronous>, transform_indices = @transform_1, window_bounds = array<i64: 9, 16, 128>}, {pipeline_mode = #tpu.pipeline_mode<synchronous>, transform_indices = @transform_2, window_bounds = array<i64: 1, 128>}, {transform_indices = @transform_3, window_bounds = array<i64: 1, 16, 128>}]} {
    %c0 = arith.constant 0 : index
    %c0_0 = arith.constant 0 : index
    %c0_1 = arith.constant 0 : index
    %0 = vector.load %arg1[%c0, %c0_0, %c0_1] : memref<1x18x18xf32, #tpu.memory_space<vmem>>, vector<1x18x18xf32>
    %1 = vector.shape_cast %0 : vector<1x18x18xf32> to vector<18x18xf32>
    %cst = arith.constant 0.000000e+00 : f32
    %2 = vector.broadcast %cst : f32 to vector<16x128xf32>
    %3 = vector.extract_strided_slice %1 {offsets = [0, 0], sizes = [16, 16], strides = [1, 1]} : vector<18x18xf32> to vector<16x16xf32>
    %4 = arith.truncf %3 : vector<16x16xf32> to vector<16x16xbf16>
    %c0_2 = arith.constant 0 : index
    %c0_3 = arith.constant 0 : index
    %c0_4 = arith.constant 0 : index
    %5 = vector.load %arg2[%c0_2, %c0_3, %c0_4] : memref<9x16x128xbf16, #tpu.memory_space<vmem>>, vector<1x16x128xbf16>
    %6 = vector.shape_cast %5 : vector<1x16x128xbf16> to vector<16x128xbf16>
    %cst_5 = arith.constant dense<0.000000e+00> : vector<16x128xf32>
    %7 = tpu.matmul %4, %6, %cst_5 {dimension_numbers = #tpu.dot_dimension_numbers<[1], [0], [0], [1], [0, 0, 1, 1], [], []>} : vector<16x16xbf16>, vector<16x128xbf16>, vector<16x128xf32> -> vector<16x128xf32>
    %8 = arith.addf %2, %7 : vector<16x128xf32>
    %9 = vector.extract_strided_slice %1 {offsets = [0, 1], sizes = [16, 16], strides = [1, 1]} : vector<18x18xf32> to vector<16x16xf32>
    %10 = arith.truncf %9 : vector<16x16xf32> to vector<16x16xbf16>
    %c1 = arith.constant 1 : index
    %c0_6 = arith.constant 0 : index
    %c0_7 = arith.constant 0 : index
    %11 = vector.load %arg2[%c1, %c0_6, %c0_7] : memref<9x16x128xbf16, #tpu.memory_space<vmem>>, vector<1x16x128xbf16>
    %12 = vector.shape_cast %11 : vector<1x16x128xbf16> to vector<16x128xbf16>
    %cst_8 = arith.constant dense<0.000000e+00> : vector<16x128xf32>
    %13 = tpu.matmul %10, %12, %cst_8 {dimension_numbers = #tpu.dot_dimension_numbers<[1], [0], [0], [1], [0, 0, 1, 1], [], []>} : vector<16x16xbf16>, vector<16x128xbf16>, vector<16x128xf32> -> vector<16x128xf32>
    %14 = arith.addf %8, %13 : vector<16x128xf32>
    %15 = vector.extract_strided_slice %1 {offsets = [0, 2], sizes = [16, 16], strides = [1, 1]} : vector<18x18xf32> to vector<16x16xf32>
    %16 = arith.truncf %15 : vector<16x16xf32> to vector<16x16xbf16>
    %c2 = arith.constant 2 : index
    %c0_9 = arith.constant 0 : index
    %c0_10 = arith.constant 0 : index
    %17 = vector.load %arg2[%c2, %c0_9, %c0_10] : memref<9x16x128xbf16, #tpu.memory_space<vmem>>, vector<1x16x128xbf16>
    %18 = vector.shape_cast %17 : vector<1x16x128xbf16> to vector<16x128xbf16>
    %cst_11 = arith.constant dense<0.000000e+00> : vector<16x128xf32>
    %19 = tpu.matmul %16, %18, %cst_11 {dimension_numbers = #tpu.dot_dimension_numbers<[1], [0], [0], [1], [0, 0, 1, 1], [], []>} : vector<16x16xbf16>, vector<16x128xbf16>, vector<16x128xf32> -> vector<16x128xf32>
    %20 = arith.addf %14, %19 : vector<16x128xf32>
    %21 = vector.extract_strided_slice %1 {offsets = [1, 0], sizes = [16, 16], strides = [1, 1]} : vector<18x18xf32> to vector<16x16xf32>
    %22 = arith.truncf %21 : vector<16x16xf32> to vector<16x16xbf16>
    %c3 = arith.constant 3 : index
    %c0_12 = arith.constant 0 : index
    %c0_13 = arith.constant 0 : index
    %23 = vector.load %arg2[%c3, %c0_12, %c0_13] : memref<9x16x128xbf16, #tpu.memory_space<vmem>>, vector<1x16x128xbf16>
    %24 = vector.shape_cast %23 : vector<1x16x128xbf16> to vector<16x128xbf16>
    %cst_14 = arith.constant dense<0.000000e+00> : vector<16x128xf32>
    %25 = tpu.matmul %22, %24, %cst_14 {dimension_numbers = #tpu.dot_dimension_numbers<[1], [0], [0], [1], [0, 0, 1, 1], [], []>} : vector<16x16xbf16>, vector<16x128xbf16>, vector<16x128xf32> -> vector<16x128xf32>
    %26 = arith.addf %20, %25 : vector<16x128xf32>
    %27 = vector.extract_strided_slice %1 {offsets = [1, 1], sizes = [16, 16], strides = [1, 1]} : vector<18x18xf32> to vector<16x16xf32>
    %28 = arith.truncf %27 : vector<16x16xf32> to vector<16x16xbf16>
    %c4 = arith.constant 4 : index
    %c0_15 = arith.constant 0 : index
    %c0_16 = arith.constant 0 : index
    %29 = vector.load %arg2[%c4, %c0_15, %c0_16] : memref<9x16x128xbf16, #tpu.memory_space<vmem>>, vector<1x16x128xbf16>
    %30 = vector.shape_cast %29 : vector<1x16x128xbf16> to vector<16x128xbf16>
    %cst_17 = arith.constant dense<0.000000e+00> : vector<16x128xf32>
    %31 = tpu.matmul %28, %30, %cst_17 {dimension_numbers = #tpu.dot_dimension_numbers<[1], [0], [0], [1], [0, 0, 1, 1], [], []>} : vector<16x16xbf16>, vector<16x128xbf16>, vector<16x128xf32> -> vector<16x128xf32>
    %32 = arith.addf %26, %31 : vector<16x128xf32>
    %33 = vector.extract_strided_slice %1 {offsets = [1, 2], sizes = [16, 16], strides = [1, 1]} : vector<18x18xf32> to vector<16x16xf32>
    %34 = arith.truncf %33 : vector<16x16xf32> to vector<16x16xbf16>
    %c5 = arith.constant 5 : index
    %c0_18 = arith.constant 0 : index
    %c0_19 = arith.constant 0 : index
    %35 = vector.load %arg2[%c5, %c0_18, %c0_19] : memref<9x16x128xbf16, #tpu.memory_space<vmem>>, vector<1x16x128xbf16>
    %36 = vector.shape_cast %35 : vector<1x16x128xbf16> to vector<16x128xbf16>
    %cst_20 = arith.constant dense<0.000000e+00> : vector<16x128xf32>
    %37 = tpu.matmul %34, %36, %cst_20 {dimension_numbers = #tpu.dot_dimension_numbers<[1], [0], [0], [1], [0, 0, 1, 1], [], []>} : vector<16x16xbf16>, vector<16x128xbf16>, vector<16x128xf32> -> vector<16x128xf32>
    %38 = arith.addf %32, %37 : vector<16x128xf32>
    %39 = vector.extract_strided_slice %1 {offsets = [2, 0], sizes = [16, 16], strides = [1, 1]} : vector<18x18xf32> to vector<16x16xf32>
    %40 = arith.truncf %39 : vector<16x16xf32> to vector<16x16xbf16>
    %c6 = arith.constant 6 : index
    %c0_21 = arith.constant 0 : index
    %c0_22 = arith.constant 0 : index
    %41 = vector.load %arg2[%c6, %c0_21, %c0_22] : memref<9x16x128xbf16, #tpu.memory_space<vmem>>, vector<1x16x128xbf16>
    %42 = vector.shape_cast %41 : vector<1x16x128xbf16> to vector<16x128xbf16>
    %cst_23 = arith.constant dense<0.000000e+00> : vector<16x128xf32>
    %43 = tpu.matmul %40, %42, %cst_23 {dimension_numbers = #tpu.dot_dimension_numbers<[1], [0], [0], [1], [0, 0, 1, 1], [], []>} : vector<16x16xbf16>, vector<16x128xbf16>, vector<16x128xf32> -> vector<16x128xf32>
    %44 = arith.addf %38, %43 : vector<16x128xf32>
    %45 = vector.extract_strided_slice %1 {offsets = [2, 1], sizes = [16, 16], strides = [1, 1]} : vector<18x18xf32> to vector<16x16xf32>
    %46 = arith.truncf %45 : vector<16x16xf32> to vector<16x16xbf16>
    %c7 = arith.constant 7 : index
    %c0_24 = arith.constant 0 : index
    %c0_25 = arith.constant 0 : index
    %47 = vector.load %arg2[%c7, %c0_24, %c0_25] : memref<9x16x128xbf16, #tpu.memory_space<vmem>>, vector<1x16x128xbf16>
    %48 = vector.shape_cast %47 : vector<1x16x128xbf16> to vector<16x128xbf16>
    %cst_26 = arith.constant dense<0.000000e+00> : vector<16x128xf32>
    %49 = tpu.matmul %46, %48, %cst_26 {dimension_numbers = #tpu.dot_dimension_numbers<[1], [0], [0], [1], [0, 0, 1, 1], [], []>} : vector<16x16xbf16>, vector<16x128xbf16>, vector<16x128xf32> -> vector<16x128xf32>
    %50 = arith.addf %44, %49 : vector<16x128xf32>
    %51 = vector.extract_strided_slice %1 {offsets = [2, 2], sizes = [16, 16], strides = [1, 1]} : vector<18x18xf32> to vector<16x16xf32>
    %52 = arith.truncf %51 : vector<16x16xf32> to vector<16x16xbf16>
    %c8 = arith.constant 8 : index
    %c0_27 = arith.constant 0 : index
    %c0_28 = arith.constant 0 : index
    %53 = vector.load %arg2[%c8, %c0_27, %c0_28] : memref<9x16x128xbf16, #tpu.memory_space<vmem>>, vector<1x16x128xbf16>
    %54 = vector.shape_cast %53 : vector<1x16x128xbf16> to vector<16x128xbf16>
    %cst_29 = arith.constant dense<0.000000e+00> : vector<16x128xf32>
    %55 = tpu.matmul %52, %54, %cst_29 {dimension_numbers = #tpu.dot_dimension_numbers<[1], [0], [0], [1], [0, 0, 1, 1], [], []>} : vector<16x16xbf16>, vector<16x128xbf16>, vector<16x128xf32> -> vector<16x128xf32>
    %56 = arith.addf %50, %55 : vector<16x128xf32>
    %c0_30 = arith.constant 0 : index
    %c0_31 = arith.constant 0 : index
    %57 = vector.load %arg3[%c0_30, %c0_31] : memref<1x128xf32, #tpu.memory_space<vmem>>, vector<1x128xf32>
    %58 = vector.broadcast %57 : vector<1x128xf32> to vector<16x128xf32>
    %59 = arith.addf %56, %58 : vector<16x128xf32>
    %cst_32 = arith.constant 0.000000e+00 : f32
    %60 = vector.broadcast %cst_32 : f32 to vector<16x128xf32>
    %61 = arith.maximumf %59, %60 : vector<16x128xf32>
    %c0_33 = arith.constant 0 : index
    %c0_34 = arith.constant 0 : index
    %c0_35 = arith.constant 0 : index
    %62 = vector.load %arg4[%c0_33, %c0_34, %c0_35] : memref<1x16x128xf32, #tpu.memory_space<vmem>>, vector<1x16x128xf32>
    %63 = vector.shape_cast %62 : vector<1x16x128xf32> to vector<16x128xf32>
    %64 = vector.shape_cast %61 : vector<16x128xf32> to vector<1x16x128xf32>
    tpu.vector_store %arg4[%c0_33, %c0_34, %c0_35], %64 {strides = array<i32>} : memref<1x16x128xf32, #tpu.memory_space<vmem>>, vector<1x16x128xf32>,
    return
  }
  func.func @transform_0(%arg0: i32) -> (i32, i32, i32) {
    %c0_i32 = arith.constant 0 : i32
    %c0_i32_0 = arith.constant 0 : i32
    %c0_i32_1 = arith.constant 0 : i32
    return %arg0, %c0_i32, %c0_i32_0 : i32, i32, i32
  }
  func.func @transform_1(%arg0: i32) -> (i32, i32, i32) {
    %c0_i32 = arith.constant 0 : i32
    %c0_i32_0 = arith.constant 0 : i32
    %c0_i32_1 = arith.constant 0 : i32
    %c0_i32_2 = arith.constant 0 : i32
    return %c0_i32, %c0_i32_0, %c0_i32_1 : i32, i32, i32
  }
  func.func @transform_2(%arg0: i32) -> (i32, i32) {
    %c0_i32 = arith.constant 0 : i32
    %c0_i32_0 = arith.constant 0 : i32
    %c0_i32_1 = arith.constant 0 : i32
    return %c0_i32, %c0_i32_0 : i32, i32
  }
  func.func @transform_3(%arg0: i32) -> (i32, i32, i32) {
    %c0_i32 = arith.constant 0 : i32
    %c0_i32_0 = arith.constant 0 : i32
    %c0_i32_1 = arith.constant 0 : i32
    return %arg0, %c0_i32, %c0_i32_0 : i32, i32, i32
  }
}

module attributes {stable_mosaic.version = 11 : i64} {
  func.func @_conv3x3_relu_kernel(%arg0: i32, %arg1: memref<1x18x80xf32, #tpu.memory_space<vmem>>, %arg2: memref<9x64x128xbf16, #tpu.memory_space<vmem>>, %arg3: memref<1x128xf32, #tpu.memory_space<vmem>>, %arg4: memref<1x16x128xf32, #tpu.memory_space<vmem>>) attributes {dimension_semantics = [#tpu.dimension_semantics<parallel>], iteration_bounds = array<i64: 2>, scalar_prefetch = 0 : i64, scratch_operands = 0 : i64, tpu.core_type = #tpu.core_type<tc>, window_params = [{transform_indices = @transform_0, window_bounds = array<i64: 1, 18, 80>}, {pipeline_mode = #tpu.pipeline_mode<synchronous>, transform_indices = @transform_1, window_bounds = array<i64: 9, 64, 128>}, {pipeline_mode = #tpu.pipeline_mode<synchronous>, transform_indices = @transform_2, window_bounds = array<i64: 1, 128>}, {transform_indices = @transform_3, window_bounds = array<i64: 1, 16, 128>}]} {
    %c0 = arith.constant 0 : index
    %c0_0 = arith.constant 0 : index
    %c0_1 = arith.constant 0 : index
    %0 = vector.load %arg1[%c0, %c0_0, %c0_1] : memref<1x18x80xf32, #tpu.memory_space<vmem>>, vector<1x18x80xf32>
    %1 = vector.shape_cast %0 : vector<1x18x80xf32> to vector<18x80xf32>
    %cst = arith.constant 0.000000e+00 : f32
    %2 = vector.broadcast %cst : f32 to vector<16x128xf32>
    %3 = vector.extract_strided_slice %1 {offsets = [0, 0], sizes = [16, 64], strides = [1, 1]} : vector<18x80xf32> to vector<16x64xf32>
    %4 = arith.truncf %3 : vector<16x64xf32> to vector<16x64xbf16>
    %c0_2 = arith.constant 0 : index
    %c0_3 = arith.constant 0 : index
    %c0_4 = arith.constant 0 : index
    %5 = vector.load %arg2[%c0_2, %c0_3, %c0_4] : memref<9x64x128xbf16, #tpu.memory_space<vmem>>, vector<1x64x128xbf16>
    %6 = vector.shape_cast %5 : vector<1x64x128xbf16> to vector<64x128xbf16>
    %cst_5 = arith.constant dense<0.000000e+00> : vector<16x128xf32>
    %7 = tpu.matmul %4, %6, %cst_5 {dimension_numbers = #tpu.dot_dimension_numbers<[1], [0], [0], [1], [0, 0, 1, 1], [], []>} : vector<16x64xbf16>, vector<64x128xbf16>, vector<16x128xf32> -> vector<16x128xf32>
    %8 = arith.addf %2, %7 : vector<16x128xf32>
    %9 = vector.extract_strided_slice %1 {offsets = [0, 8], sizes = [16, 64], strides = [1, 1]} : vector<18x80xf32> to vector<16x64xf32>
    %10 = arith.truncf %9 : vector<16x64xf32> to vector<16x64xbf16>
    %c1 = arith.constant 1 : index
    %c0_6 = arith.constant 0 : index
    %c0_7 = arith.constant 0 : index
    %11 = vector.load %arg2[%c1, %c0_6, %c0_7] : memref<9x64x128xbf16, #tpu.memory_space<vmem>>, vector<1x64x128xbf16>
    %12 = vector.shape_cast %11 : vector<1x64x128xbf16> to vector<64x128xbf16>
    %cst_8 = arith.constant dense<0.000000e+00> : vector<16x128xf32>
    %13 = tpu.matmul %10, %12, %cst_8 {dimension_numbers = #tpu.dot_dimension_numbers<[1], [0], [0], [1], [0, 0, 1, 1], [], []>} : vector<16x64xbf16>, vector<64x128xbf16>, vector<16x128xf32> -> vector<16x128xf32>
    %14 = arith.addf %8, %13 : vector<16x128xf32>
    %15 = vector.extract_strided_slice %1 {offsets = [0, 16], sizes = [16, 64], strides = [1, 1]} : vector<18x80xf32> to vector<16x64xf32>
    %16 = arith.truncf %15 : vector<16x64xf32> to vector<16x64xbf16>
    %c2 = arith.constant 2 : index
    %c0_9 = arith.constant 0 : index
    %c0_10 = arith.constant 0 : index
    %17 = vector.load %arg2[%c2, %c0_9, %c0_10] : memref<9x64x128xbf16, #tpu.memory_space<vmem>>, vector<1x64x128xbf16>
    %18 = vector.shape_cast %17 : vector<1x64x128xbf16> to vector<64x128xbf16>
    %cst_11 = arith.constant dense<0.000000e+00> : vector<16x128xf32>
    %19 = tpu.matmul %16, %18, %cst_11 {dimension_numbers = #tpu.dot_dimension_numbers<[1], [0], [0], [1], [0, 0, 1, 1], [], []>} : vector<16x64xbf16>, vector<64x128xbf16>, vector<16x128xf32> -> vector<16x128xf32>
    %20 = arith.addf %14, %19 : vector<16x128xf32>
    %21 = vector.extract_strided_slice %1 {offsets = [1, 0], sizes = [16, 64], strides = [1, 1]} : vector<18x80xf32> to vector<16x64xf32>
    %22 = arith.truncf %21 : vector<16x64xf32> to vector<16x64xbf16>
    %c3 = arith.constant 3 : index
    %c0_12 = arith.constant 0 : index
    %c0_13 = arith.constant 0 : index
    %23 = vector.load %arg2[%c3, %c0_12, %c0_13] : memref<9x64x128xbf16, #tpu.memory_space<vmem>>, vector<1x64x128xbf16>
    %24 = vector.shape_cast %23 : vector<1x64x128xbf16> to vector<64x128xbf16>
    %cst_14 = arith.constant dense<0.000000e+00> : vector<16x128xf32>
    %25 = tpu.matmul %22, %24, %cst_14 {dimension_numbers = #tpu.dot_dimension_numbers<[1], [0], [0], [1], [0, 0, 1, 1], [], []>} : vector<16x64xbf16>, vector<64x128xbf16>, vector<16x128xf32> -> vector<16x128xf32>
    %26 = arith.addf %20, %25 : vector<16x128xf32>
    %27 = vector.extract_strided_slice %1 {offsets = [1, 8], sizes = [16, 64], strides = [1, 1]} : vector<18x80xf32> to vector<16x64xf32>
    %28 = arith.truncf %27 : vector<16x64xf32> to vector<16x64xbf16>
    %c4 = arith.constant 4 : index
    %c0_15 = arith.constant 0 : index
    %c0_16 = arith.constant 0 : index
    %29 = vector.load %arg2[%c4, %c0_15, %c0_16] : memref<9x64x128xbf16, #tpu.memory_space<vmem>>, vector<1x64x128xbf16>
    %30 = vector.shape_cast %29 : vector<1x64x128xbf16> to vector<64x128xbf16>
    %cst_17 = arith.constant dense<0.000000e+00> : vector<16x128xf32>
    %31 = tpu.matmul %28, %30, %cst_17 {dimension_numbers = #tpu.dot_dimension_numbers<[1], [0], [0], [1], [0, 0, 1, 1], [], []>} : vector<16x64xbf16>, vector<64x128xbf16>, vector<16x128xf32> -> vector<16x128xf32>
    %32 = arith.addf %26, %31 : vector<16x128xf32>
    %33 = vector.extract_strided_slice %1 {offsets = [1, 16], sizes = [16, 64], strides = [1, 1]} : vector<18x80xf32> to vector<16x64xf32>
    %34 = arith.truncf %33 : vector<16x64xf32> to vector<16x64xbf16>
    %c5 = arith.constant 5 : index
    %c0_18 = arith.constant 0 : index
    %c0_19 = arith.constant 0 : index
    %35 = vector.load %arg2[%c5, %c0_18, %c0_19] : memref<9x64x128xbf16, #tpu.memory_space<vmem>>, vector<1x64x128xbf16>
    %36 = vector.shape_cast %35 : vector<1x64x128xbf16> to vector<64x128xbf16>
    %cst_20 = arith.constant dense<0.000000e+00> : vector<16x128xf32>
    %37 = tpu.matmul %34, %36, %cst_20 {dimension_numbers = #tpu.dot_dimension_numbers<[1], [0], [0], [1], [0, 0, 1, 1], [], []>} : vector<16x64xbf16>, vector<64x128xbf16>, vector<16x128xf32> -> vector<16x128xf32>
    %38 = arith.addf %32, %37 : vector<16x128xf32>
    %39 = vector.extract_strided_slice %1 {offsets = [2, 0], sizes = [16, 64], strides = [1, 1]} : vector<18x80xf32> to vector<16x64xf32>
    %40 = arith.truncf %39 : vector<16x64xf32> to vector<16x64xbf16>
    %c6 = arith.constant 6 : index
    %c0_21 = arith.constant 0 : index
    %c0_22 = arith.constant 0 : index
    %41 = vector.load %arg2[%c6, %c0_21, %c0_22] : memref<9x64x128xbf16, #tpu.memory_space<vmem>>, vector<1x64x128xbf16>
    %42 = vector.shape_cast %41 : vector<1x64x128xbf16> to vector<64x128xbf16>
    %cst_23 = arith.constant dense<0.000000e+00> : vector<16x128xf32>
    %43 = tpu.matmul %40, %42, %cst_23 {dimension_numbers = #tpu.dot_dimension_numbers<[1], [0], [0], [1], [0, 0, 1, 1], [], []>} : vector<16x64xbf16>, vector<64x128xbf16>, vector<16x128xf32> -> vector<16x128xf32>
    %44 = arith.addf %38, %43 : vector<16x128xf32>
    %45 = vector.extract_strided_slice %1 {offsets = [2, 8], sizes = [16, 64], strides = [1, 1]} : vector<18x80xf32> to vector<16x64xf32>
    %46 = arith.truncf %45 : vector<16x64xf32> to vector<16x64xbf16>
    %c7 = arith.constant 7 : index
    %c0_24 = arith.constant 0 : index
    %c0_25 = arith.constant 0 : index
    %47 = vector.load %arg2[%c7, %c0_24, %c0_25] : memref<9x64x128xbf16, #tpu.memory_space<vmem>>, vector<1x64x128xbf16>
    %48 = vector.shape_cast %47 : vector<1x64x128xbf16> to vector<64x128xbf16>
    %cst_26 = arith.constant dense<0.000000e+00> : vector<16x128xf32>
    %49 = tpu.matmul %46, %48, %cst_26 {dimension_numbers = #tpu.dot_dimension_numbers<[1], [0], [0], [1], [0, 0, 1, 1], [], []>} : vector<16x64xbf16>, vector<64x128xbf16>, vector<16x128xf32> -> vector<16x128xf32>
    %50 = arith.addf %44, %49 : vector<16x128xf32>
    %51 = vector.extract_strided_slice %1 {offsets = [2, 16], sizes = [16, 64], strides = [1, 1]} : vector<18x80xf32> to vector<16x64xf32>
    %52 = arith.truncf %51 : vector<16x64xf32> to vector<16x64xbf16>
    %c8 = arith.constant 8 : index
    %c0_27 = arith.constant 0 : index
    %c0_28 = arith.constant 0 : index
    %53 = vector.load %arg2[%c8, %c0_27, %c0_28] : memref<9x64x128xbf16, #tpu.memory_space<vmem>>, vector<1x64x128xbf16>
    %54 = vector.shape_cast %53 : vector<1x64x128xbf16> to vector<64x128xbf16>
    %cst_29 = arith.constant dense<0.000000e+00> : vector<16x128xf32>
    %55 = tpu.matmul %52, %54, %cst_29 {dimension_numbers = #tpu.dot_dimension_numbers<[1], [0], [0], [1], [0, 0, 1, 1], [], []>} : vector<16x64xbf16>, vector<64x128xbf16>, vector<16x128xf32> -> vector<16x128xf32>
    %56 = arith.addf %50, %55 : vector<16x128xf32>
    %c0_30 = arith.constant 0 : index
    %c0_31 = arith.constant 0 : index
    %57 = vector.load %arg3[%c0_30, %c0_31] : memref<1x128xf32, #tpu.memory_space<vmem>>, vector<1x128xf32>
    %58 = vector.broadcast %57 : vector<1x128xf32> to vector<16x128xf32>
    %59 = arith.addf %56, %58 : vector<16x128xf32>
    %cst_32 = arith.constant 0.000000e+00 : f32
    %60 = vector.broadcast %cst_32 : f32 to vector<16x128xf32>
    %61 = arith.maximumf %59, %60 : vector<16x128xf32>
    %c0_33 = arith.constant 0 : index
    %c0_34 = arith.constant 0 : index
    %c0_35 = arith.constant 0 : index
    %62 = vector.load %arg4[%c0_33, %c0_34, %c0_35] : memref<1x16x128xf32, #tpu.memory_space<vmem>>, vector<1x16x128xf32>
    %63 = vector.shape_cast %62 : vector<1x16x128xf32> to vector<16x128xf32>
    %64 = vector.shape_cast %61 : vector<16x128xf32> to vector<1x16x128xf32>
    tpu.vector_store %arg4[%c0_33, %c0_34, %c0_35], %64 {strides = array<i32>} : memref<1x16x128xf32, #tpu.memory_space<vmem>>, vector<1x16x128xf32>,
    return
  }
  func.func @transform_0(%arg0: i32) -> (i32, i32, i32) {
    %c0_i32 = arith.constant 0 : i32
    %c0_i32_0 = arith.constant 0 : i32
    %c0_i32_1 = arith.constant 0 : i32
    return %arg0, %c0_i32, %c0_i32_0 : i32, i32, i32
  }
  func.func @transform_1(%arg0: i32) -> (i32, i32, i32) {
    %c0_i32 = arith.constant 0 : i32
    %c0_i32_0 = arith.constant 0 : i32
    %c0_i32_1 = arith.constant 0 : i32
    %c0_i32_2 = arith.constant 0 : i32
    return %c0_i32, %c0_i32_0, %c0_i32_1 : i32, i32, i32
  }
  func.func @transform_2(%arg0: i32) -> (i32, i32) {
    %c0_i32 = arith.constant 0 : i32
    %c0_i32_0 = arith.constant 0 : i32
    %c0_i32_1 = arith.constant 0 : i32
    return %c0_i32, %c0_i32_0 : i32, i32
  }
  func.func @transform_3(%arg0: i32) -> (i32, i32, i32) {
    %c0_i32 = arith.constant 0 : i32
    %c0_i32_0 = arith.constant 0 : i32
    %c0_i32_1 = arith.constant 0 : i32
    return %arg0, %c0_i32, %c0_i32_0 : i32, i32, i32
  }
}

module attributes {stable_mosaic.version = 11 : i64} {
  func.func @_linear_kernel(%arg0: i32, %arg1: memref<32x64xbf16, #tpu.memory_space<vmem>>, %arg2: memref<64x128xbf16, #tpu.memory_space<vmem>>, %arg3: memref<1x128xf32, #tpu.memory_space<vmem>>, %arg4: memref<32x128xf32, #tpu.memory_space<vmem>>) attributes {dimension_semantics = [#tpu.dimension_semantics<parallel>], iteration_bounds = array<i64: 1>, scalar_prefetch = 0 : i64, scratch_operands = 0 : i64, tpu.core_type = #tpu.core_type<tc>, window_params = [{transform_indices = @transform_0, window_bounds = array<i64: 32, 64>}, {pipeline_mode = #tpu.pipeline_mode<synchronous>, transform_indices = @transform_1, window_bounds = array<i64: 64, 128>}, {pipeline_mode = #tpu.pipeline_mode<synchronous>, transform_indices = @transform_2, window_bounds = array<i64: 1, 128>}, {transform_indices = @transform_3, window_bounds = array<i64: 32, 128>}]} {
    %c0 = arith.constant 0 : index
    %c0_0 = arith.constant 0 : index
    %0 = vector.load %arg1[%c0, %c0_0] : memref<32x64xbf16, #tpu.memory_space<vmem>>, vector<32x64xbf16>
    %c0_1 = arith.constant 0 : index
    %c0_2 = arith.constant 0 : index
    %1 = vector.load %arg2[%c0_1, %c0_2] : memref<64x128xbf16, #tpu.memory_space<vmem>>, vector<64x128xbf16>
    %cst = arith.constant dense<0.000000e+00> : vector<32x128xf32>
    %2 = tpu.matmul %0, %1, %cst {dimension_numbers = #tpu.dot_dimension_numbers<[1], [0], [0], [1], [0, 0, 1, 1], [], []>} : vector<32x64xbf16>, vector<64x128xbf16>, vector<32x128xf32> -> vector<32x128xf32>
    %c0_3 = arith.constant 0 : index
    %c0_4 = arith.constant 0 : index
    %3 = vector.load %arg3[%c0_3, %c0_4] : memref<1x128xf32, #tpu.memory_space<vmem>>, vector<1x128xf32>
    %4 = vector.broadcast %3 : vector<1x128xf32> to vector<32x128xf32>
    %5 = arith.addf %2, %4 : vector<32x128xf32>
    %cst_5 = arith.constant 0.000000e+00 : f32
    %6 = vector.broadcast %cst_5 : f32 to vector<32x128xf32>
    %7 = arith.maximumf %5, %6 : vector<32x128xf32>
    %c0_6 = arith.constant 0 : index
    %c0_7 = arith.constant 0 : index
    %8 = vector.load %arg4[%c0_6, %c0_7] : memref<32x128xf32, #tpu.memory_space<vmem>>, vector<32x128xf32>
    tpu.vector_store %arg4[%c0_6, %c0_7], %7 {strides = array<i32>} : memref<32x128xf32, #tpu.memory_space<vmem>>, vector<32x128xf32>,
    return
  }
  func.func @transform_0(%arg0: i32) -> (i32, i32) {
    %c0_i32 = arith.constant 0 : i32
    %c0_i32_0 = arith.constant 0 : i32
    return %arg0, %c0_i32 : i32, i32
  }
  func.func @transform_1(%arg0: i32) -> (i32, i32) {
    %c0_i32 = arith.constant 0 : i32
    %c0_i32_0 = arith.constant 0 : i32
    %c0_i32_1 = arith.constant 0 : i32
    return %c0_i32, %c0_i32_0 : i32, i32
  }
  func.func @transform_2(%arg0: i32) -> (i32, i32) {
    %c0_i32 = arith.constant 0 : i32
    %c0_i32_0 = arith.constant 0 : i32
    %c0_i32_1 = arith.constant 0 : i32
    return %c0_i32, %c0_i32_0 : i32, i32
  }
  func.func @transform_3(%arg0: i32) -> (i32, i32) {
    %c0_i32 = arith.constant 0 : i32
    %c0_i32_0 = arith.constant 0 : i32
    return %arg0, %c0_i32 : i32, i32
  }
}

module attributes {stable_mosaic.version = 11 : i64} {
  func.func @_gru_dnn_kernel(%arg0: memref<16x2x32xbf16, #tpu.memory_space<vmem>>, %arg1: memref<32x96xbf16, #tpu.memory_space<vmem>>, %arg2: memref<1x96xf32, #tpu.memory_space<vmem>>, %arg3: memref<32x96xbf16, #tpu.memory_space<vmem>>, %arg4: memref<1x96xf32, #tpu.memory_space<vmem>>, %arg5: memref<32x32xbf16, #tpu.memory_space<vmem>>, %arg6: memref<1x32xf32, #tpu.memory_space<vmem>>, %arg7: memref<16x2x32xf32, #tpu.memory_space<vmem>>) attributes {dimension_semantics = [], scalar_prefetch = 0 : i64, scratch_operands = 0 : i64, tpu.core_type = #tpu.core_type<tc>} {
    %c0 = arith.constant 0 : index
    %c0_0 = arith.constant 0 : index
    %0 = vector.load %arg1[%c0, %c0_0] : memref<32x96xbf16, #tpu.memory_space<vmem>>, vector<32x96xbf16>
    %c0_1 = arith.constant 0 : index
    %c0_2 = arith.constant 0 : index
    %1 = vector.load %arg2[%c0_1, %c0_2] : memref<1x96xf32, #tpu.memory_space<vmem>>, vector<1x96xf32>
    %c0_3 = arith.constant 0 : index
    %c0_4 = arith.constant 0 : index
    %2 = vector.load %arg3[%c0_3, %c0_4] : memref<32x96xbf16, #tpu.memory_space<vmem>>, vector<32x96xbf16>
    %c0_5 = arith.constant 0 : index
    %c0_6 = arith.constant 0 : index
    %3 = vector.load %arg4[%c0_5, %c0_6] : memref<1x96xf32, #tpu.memory_space<vmem>>, vector<1x96xf32>
    %c0_7 = arith.constant 0 : index
    %c0_8 = arith.constant 0 : index
    %4 = vector.load %arg5[%c0_7, %c0_8] : memref<32x32xbf16, #tpu.memory_space<vmem>>, vector<32x32xbf16>
    %c0_9 = arith.constant 0 : index
    %c0_10 = arith.constant 0 : index
    %5 = vector.load %arg6[%c0_9, %c0_10] : memref<1x32xf32, #tpu.memory_space<vmem>>, vector<1x32xf32>
    %cst = arith.constant 0.000000e+00 : f32
    %6 = vector.broadcast %cst : f32 to vector<2x32xf32>
    %c0_i32 = arith.constant 0 : i32
    %c16_i32 = arith.constant 16 : i32
    %7 = arith.addi %c0_i32, %c16_i32 : i32
    %c1_i32 = arith.constant 1 : i32
    %8 = scf.for %arg8 = %c0_i32 to %7 step %c1_i32 iter_args(%arg9 = %6) -> (vector<2x32xf32>)  : i32 {
      %9 = arith.index_cast %arg8 : i32 to index
      %c0_12 = arith.constant 0 : index
      %c0_13 = arith.constant 0 : index
      %10 = vector.load %arg0[%9, %c0_12, %c0_13] : memref<16x2x32xbf16, #tpu.memory_space<vmem>>, vector<1x2x32xbf16>
      %11 = vector.shape_cast %10 : vector<1x2x32xbf16> to vector<2x32xbf16>
      %cst_14 = arith.constant dense<0.000000e+00> : vector<2x96xf32>
      %12 = tpu.matmul %11, %0, %cst_14 {dimension_numbers = #tpu.dot_dimension_numbers<[1], [0], [0], [1], [0, 0, 1, 1], [], []>} : vector<2x32xbf16>, vector<32x96xbf16>, vector<2x96xf32> -> vector<2x96xf32>
      %13 = vector.broadcast %1 : vector<1x96xf32> to vector<2x96xf32>
      %14 = arith.addf %12, %13 : vector<2x96xf32>
      %15 = arith.truncf %arg9 : vector<2x32xf32> to vector<2x32xbf16>
      %cst_15 = arith.constant dense<0.000000e+00> : vector<2x96xf32>
      %16 = tpu.matmul %15, %2, %cst_15 {dimension_numbers = #tpu.dot_dimension_numbers<[1], [0], [0], [1], [0, 0, 1, 1], [], []>} : vector<2x32xbf16>, vector<32x96xbf16>, vector<2x96xf32> -> vector<2x96xf32>
      %17 = vector.broadcast %3 : vector<1x96xf32> to vector<2x96xf32>
      %18 = arith.addf %16, %17 : vector<2x96xf32>
      %19 = vector.extract_strided_slice %14 {offsets = [0, 0], sizes = [2, 32], strides = [1, 1]} : vector<2x96xf32> to vector<2x32xf32>
      %20 = vector.extract_strided_slice %18 {offsets = [0, 0], sizes = [2, 32], strides = [1, 1]} : vector<2x96xf32> to vector<2x32xf32>
      %21 = arith.addf %19, %20 : vector<2x32xf32>
      %cst_16 = arith.constant 0.000000e+00 : f32
      %22 = vector.broadcast %cst_16 : f32 to vector<2x32xf32>
      %23 = arith.subf %22, %21 : vector<2x32xf32>
      %24 = math.exp %23 : vector<2x32xf32>
      %cst_17 = arith.constant 1.000000e+00 : f32
      %25 = vector.broadcast %cst_17 : f32 to vector<2x32xf32>
      %26 = arith.addf %25, %24 : vector<2x32xf32>
      %cst_18 = arith.constant 1.000000e+00 : f32
      %27 = vector.broadcast %cst_18 : f32 to vector<2x32xf32>
      %28 = arith.divf %27, %26 : vector<2x32xf32>
      %29 = vector.extract_strided_slice %14 {offsets = [0, 32], sizes = [2, 32], strides = [1, 1]} : vector<2x96xf32> to vector<2x32xf32>
      %30 = vector.extract_strided_slice %18 {offsets = [0, 32], sizes = [2, 32], strides = [1, 1]} : vector<2x96xf32> to vector<2x32xf32>
      %31 = arith.addf %29, %30 : vector<2x32xf32>
      %cst_19 = arith.constant 0.000000e+00 : f32
      %32 = vector.broadcast %cst_19 : f32 to vector<2x32xf32>
      %33 = arith.subf %32, %31 : vector<2x32xf32>
      %34 = math.exp %33 : vector<2x32xf32>
      %cst_20 = arith.constant 1.000000e+00 : f32
      %35 = vector.broadcast %cst_20 : f32 to vector<2x32xf32>
      %36 = arith.addf %35, %34 : vector<2x32xf32>
      %cst_21 = arith.constant 1.000000e+00 : f32
      %37 = vector.broadcast %cst_21 : f32 to vector<2x32xf32>
      %38 = arith.divf %37, %36 : vector<2x32xf32>
      %39 = vector.extract_strided_slice %14 {offsets = [0, 64], sizes = [2, 32], strides = [1, 1]} : vector<2x96xf32> to vector<2x32xf32>
      %40 = vector.extract_strided_slice %18 {offsets = [0, 64], sizes = [2, 32], strides = [1, 1]} : vector<2x96xf32> to vector<2x32xf32>
      %41 = arith.mulf %28, %40 : vector<2x32xf32>
      %42 = arith.addf %39, %41 : vector<2x32xf32>
      %43 = math.tanh %42 : vector<2x32xf32>
      %cst_22 = arith.constant 1.000000e+00 : f32
      %44 = vector.broadcast %cst_22 : f32 to vector<2x32xf32>
      %45 = arith.subf %44, %38 : vector<2x32xf32>
      %46 = arith.mulf %45, %43 : vector<2x32xf32>
      %47 = arith.mulf %38, %arg9 : vector<2x32xf32>
      %48 = arith.addf %46, %47 : vector<2x32xf32>
      %49 = arith.truncf %48 : vector<2x32xf32> to vector<2x32xbf16>
      %cst_23 = arith.constant dense<0.000000e+00> : vector<2x32xf32>
      %50 = tpu.matmul %49, %4, %cst_23 {dimension_numbers = #tpu.dot_dimension_numbers<[1], [0], [0], [1], [0, 0, 1, 1], [], []>} : vector<2x32xbf16>, vector<32x32xbf16>, vector<2x32xf32> -> vector<2x32xf32>
      %51 = vector.broadcast %5 : vector<1x32xf32> to vector<2x32xf32>
      %52 = arith.addf %50, %51 : vector<2x32xf32>
      %cst_24 = arith.constant 0.000000e+00 : f32
      %53 = vector.broadcast %cst_24 : f32 to vector<2x32xf32>
      %54 = arith.maximumf %52, %53 : vector<2x32xf32>
      %55 = arith.index_cast %arg8 : i32 to index
      %c0_25 = arith.constant 0 : index
      %c0_26 = arith.constant 0 : index
      %56 = vector.load %arg7[%55, %c0_25, %c0_26] : memref<16x2x32xf32, #tpu.memory_space<vmem>>, vector<1x2x32xf32>
      %57 = vector.shape_cast %56 : vector<1x2x32xf32> to vector<2x32xf32>
      %58 = vector.shape_cast %54 : vector<2x32xf32> to vector<1x2x32xf32>
      tpu.vector_store %arg7[%55, %c0_25, %c0_26], %58 {strides = array<i32>} : memref<16x2x32xf32, #tpu.memory_space<vmem>>, vector<1x2x32xf32>,
      scf.yield %48 : vector<2x32xf32>
    }
    %c16_i32_11 = arith.constant 16 : i32
    return
  }
}

module attributes {stable_mosaic.version = 11 : i64} {
  func.func @_linear_logsoftmax_kernel(%arg0: i32, %arg1: memref<32x32xbf16, #tpu.memory_space<vmem>>, %arg2: memref<32x128xbf16, #tpu.memory_space<vmem>>, %arg3: memref<1x128xf32, #tpu.memory_space<vmem>>, %arg4: memref<32x128xf32, #tpu.memory_space<vmem>>) attributes {dimension_semantics = [#tpu.dimension_semantics<parallel>], iteration_bounds = array<i64: 1>, scalar_prefetch = 0 : i64, scratch_operands = 0 : i64, tpu.core_type = #tpu.core_type<tc>, window_params = [{transform_indices = @transform_0, window_bounds = array<i64: 32, 32>}, {pipeline_mode = #tpu.pipeline_mode<synchronous>, transform_indices = @transform_1, window_bounds = array<i64: 32, 128>}, {pipeline_mode = #tpu.pipeline_mode<synchronous>, transform_indices = @transform_2, window_bounds = array<i64: 1, 128>}, {transform_indices = @transform_3, window_bounds = array<i64: 32, 128>}]} {
    %c0 = arith.constant 0 : index
    %c0_0 = arith.constant 0 : index
    %0 = vector.load %arg1[%c0, %c0_0] : memref<32x32xbf16, #tpu.memory_space<vmem>>, vector<32x32xbf16>
    %c0_1 = arith.constant 0 : index
    %c0_2 = arith.constant 0 : index
    %1 = vector.load %arg2[%c0_1, %c0_2] : memref<32x128xbf16, #tpu.memory_space<vmem>>, vector<32x128xbf16>
    %cst = arith.constant dense<0.000000e+00> : vector<32x128xf32>
    %2 = tpu.matmul %0, %1, %cst {dimension_numbers = #tpu.dot_dimension_numbers<[1], [0], [0], [1], [0, 0, 1, 1], [], []>} : vector<32x32xbf16>, vector<32x128xbf16>, vector<32x128xf32> -> vector<32x128xf32>
    %c0_3 = arith.constant 0 : index
    %c0_4 = arith.constant 0 : index
    %3 = vector.load %arg3[%c0_3, %c0_4] : memref<1x128xf32, #tpu.memory_space<vmem>>, vector<1x128xf32>
    %4 = vector.broadcast %3 : vector<1x128xf32> to vector<32x128xf32>
    %5 = arith.addf %2, %4 : vector<32x128xf32>
    %cst_5 = arith.constant dense<0xFF800000> : vector<32xf32>
    %6 = vector.multi_reduction <maximumf>, %5, %cst_5 [1] : vector<32x128xf32> to vector<32xf32>
    %7 = vector.shape_cast %6 : vector<32xf32> to vector<32x1xf32>
    %8 = vector.broadcast %7 : vector<32x1xf32> to vector<32x128xf32>
    %9 = arith.subf %5, %8 : vector<32x128xf32>
    %10 = math.exp %9 : vector<32x128xf32>
    %cst_6 = arith.constant dense<0.000000e+00> : vector<32xf32>
    %11 = vector.multi_reduction <add>, %10, %cst_6 [1] : vector<32x128xf32> to vector<32xf32>
    %12 = vector.shape_cast %11 : vector<32xf32> to vector<32x1xf32>
    %13 = math.log %12 : vector<32x1xf32>
    %14 = vector.broadcast %13 : vector<32x1xf32> to vector<32x128xf32>
    %15 = arith.subf %9, %14 : vector<32x128xf32>
    %c0_7 = arith.constant 0 : index
    %c0_8 = arith.constant 0 : index
    %16 = vector.load %arg4[%c0_7, %c0_8] : memref<32x128xf32, #tpu.memory_space<vmem>>, vector<32x128xf32>
    tpu.vector_store %arg4[%c0_7, %c0_8], %15 {strides = array<i32>} : memref<32x128xf32, #tpu.memory_space<vmem>>, vector<32x128xf32>,
    return
  }
  func.func @transform_0(%arg0: i32) -> (i32, i32) {
    %c0_i32 = arith.constant 0 : i32
    %c0_i32_0 = arith.constant 0 : i32
    return %arg0, %c0_i32 : i32, i32
  }
  func.func @transform_1(%arg0: i32) -> (i32, i32) {
    %c0_i32 = arith.constant 0 : i32
    %c0_i32_0 = arith.constant 0 : i32
    %c0_i32_1 = arith.constant 0 : i32
    return %c0_i32, %c0_i32_0 : i32, i32
  }
  func.func @transform_2(%arg0: i32) -> (i32, i32) {
    %c0_i32 = arith.constant 0 : i32
    %c0_i32_0 = arith.constant 0 : i32
    %c0_i32_1 = arith.constant 0 : i32
    return %c0_i32, %c0_i32_0 : i32, i32
  }
  func.func @transform_3(%arg0: i32) -> (i32, i32) {
    %c0_i32 = arith.constant 0 : i32
    %c0_i32_0 = arith.constant 0 : i32
    return %arg0, %c0_i32 : i32, i32
  }
}

module attributes {stable_mosaic.version = 11 : i64} {
  func.func @_decoder_kernel(%arg0: i32, %arg1: memref<1x7x32xbf16, #tpu.memory_space<vmem>>, %arg2: memref<1x16x32xbf16, #tpu.memory_space<vmem>>, %arg3: memref<1x32x16xbf16, #tpu.memory_space<vmem>>, %arg4: memref<32x32xbf16, #tpu.memory_space<vmem>>, %arg5: memref<1x32xf32, #tpu.memory_space<vmem>>, %arg6: memref<32x32xbf16, #tpu.memory_space<vmem>>, %arg7: memref<32x32xbf16, #tpu.memory_space<vmem>>, %arg8: memref<1x32xf32, #tpu.memory_space<vmem>>, %arg9: memref<32x128xbf16, #tpu.memory_space<vmem>>, %arg10: memref<1x128xf32, #tpu.memory_space<vmem>>, %arg11: memref<1x7x128xf32, #tpu.memory_space<vmem>>) attributes {dimension_semantics = [#tpu.dimension_semantics<parallel>], iteration_bounds = array<i64: 2>, scalar_prefetch = 0 : i64, scratch_operands = 0 : i64, tpu.core_type = #tpu.core_type<tc>, window_params = [{transform_indices = @transform_0, window_bounds = array<i64: 1, 7, 32>}, {transform_indices = @transform_1, window_bounds = array<i64: 1, 16, 32>}, {transform_indices = @transform_2, window_bounds = array<i64: 1, 32, 16>}, {pipeline_mode = #tpu.pipeline_mode<synchronous>, transform_indices = @transform_3, window_bounds = array<i64: 32, 32>}, {pipeline_mode = #tpu.pipeline_mode<synchronous>, transform_indices = @transform_4, window_bounds = array<i64: 1, 32>}, {pipeline_mode = #tpu.pipeline_mode<synchronous>, transform_indices = @transform_5, window_bounds = array<i64: 32, 32>}, {pipeline_mode = #tpu.pipeline_mode<synchronous>, transform_indices = @transform_6, window_bounds = array<i64: 32, 32>}, {pipeline_mode = #tpu.pipeline_mode<synchronous>, transform_indices = @transform_7, window_bounds = array<i64: 1, 32>}, {pipeline_mode = #tpu.pipeline_mode<synchronous>, transform_indices = @transform_8, window_bounds = array<i64: 32, 128>}, {pipeline_mode = #tpu.pipeline_mode<synchronous>, transform_indices = @transform_9, window_bounds = array<i64: 1, 128>}, {transform_indices = @transform_10, window_bounds = array<i64: 1, 7, 128>}]} {
    %c0 = arith.constant 0 : index
    %c0_0 = arith.constant 0 : index
    %c0_1 = arith.constant 0 : index
    %0 = vector.load %arg1[%c0, %c0_0, %c0_1] : memref<1x7x32xbf16, #tpu.memory_space<vmem>>, vector<1x7x32xbf16>
    %1 = vector.shape_cast %0 : vector<1x7x32xbf16> to vector<7x32xbf16>
    %c0_2 = arith.constant 0 : index
    %c0_3 = arith.constant 0 : index
    %c0_4 = arith.constant 0 : index
    %2 = vector.load %arg2[%c0_2, %c0_3, %c0_4] : memref<1x16x32xbf16, #tpu.memory_space<vmem>>, vector<1x16x32xbf16>
    %3 = vector.shape_cast %2 : vector<1x16x32xbf16> to vector<16x32xbf16>
    %c0_5 = arith.constant 0 : index
    %c0_6 = arith.constant 0 : index
    %c0_7 = arith.constant 0 : index
    %4 = vector.load %arg3[%c0_5, %c0_6, %c0_7] : memref<1x32x16xbf16, #tpu.memory_space<vmem>>, vector<1x32x16xbf16>
    %5 = vector.shape_cast %4 : vector<1x32x16xbf16> to vector<32x16xbf16>
    %c0_8 = arith.constant 0 : index
    %c0_9 = arith.constant 0 : index
    %6 = vector.load %arg4[%c0_8, %c0_9] : memref<32x32xbf16, #tpu.memory_space<vmem>>, vector<32x32xbf16>
    %cst = arith.constant dense<0.000000e+00> : vector<7x32xf32>
    %7 = tpu.matmul %1, %6, %cst {dimension_numbers = #tpu.dot_dimension_numbers<[1], [0], [0], [1], [0, 0, 1, 1], [], []>} : vector<7x32xbf16>, vector<32x32xbf16>, vector<7x32xf32> -> vector<7x32xf32>
    %c0_10 = arith.constant 0 : index
    %c0_11 = arith.constant 0 : index
    %8 = vector.load %arg5[%c0_10, %c0_11] : memref<1x32xf32, #tpu.memory_space<vmem>>, vector<1x32xf32>
    %9 = vector.broadcast %8 : vector<1x32xf32> to vector<7x32xf32>
    %10 = arith.addf %7, %9 : vector<7x32xf32>
    %11 = arith.truncf %10 : vector<7x32xf32> to vector<7x32xbf16>
    %cst_12 = arith.constant dense<0.000000e+00> : vector<7x16xf32>
    %12 = tpu.matmul %11, %5, %cst_12 {dimension_numbers = #tpu.dot_dimension_numbers<[1], [0], [0], [1], [0, 0, 1, 1], [], []>} : vector<7x32xbf16>, vector<32x16xbf16>, vector<7x16xf32> -> vector<7x16xf32>
    %cst_13 = arith.constant 0.176776692 : f32
    %13 = vector.broadcast %cst_13 : f32 to vector<7x16xf32>
    %14 = arith.mulf %12, %13 : vector<7x16xf32>
    %cst_14 = arith.constant dense<0xFF800000> : vector<7xf32>
    %15 = vector.multi_reduction <maximumf>, %14, %cst_14 [1] : vector<7x16xf32> to vector<7xf32>
    %16 = vector.shape_cast %15 : vector<7xf32> to vector<7x1xf32>
    %17 = vector.broadcast %16 : vector<7x1xf32> to vector<7x16xf32>
    %18 = arith.subf %14, %17 : vector<7x16xf32>
    %19 = math.exp %18 : vector<7x16xf32>
    %cst_15 = arith.constant dense<0.000000e+00> : vector<7xf32>
    %20 = vector.multi_reduction <add>, %19, %cst_15 [1] : vector<7x16xf32> to vector<7xf32>
    %21 = vector.shape_cast %20 : vector<7xf32> to vector<7x1xf32>
    %22 = tpu.reciprocal %21 {approx = true} : vector<7x1xf32> -> vector<7x1xf32>
    %23 = vector.broadcast %22 : vector<7x1xf32> to vector<7x16xf32>
    %24 = arith.mulf %19, %23 : vector<7x16xf32>
    %25 = arith.truncf %24 : vector<7x16xf32> to vector<7x16xbf16>
    %cst_16 = arith.constant dense<0.000000e+00> : vector<7x32xf32>
    %26 = tpu.matmul %25, %3, %cst_16 {dimension_numbers = #tpu.dot_dimension_numbers<[1], [0], [0], [1], [0, 0, 1, 1], [], []>} : vector<7x16xbf16>, vector<16x32xbf16>, vector<7x32xf32> -> vector<7x32xf32>
    %c0_17 = arith.constant 0 : index
    %c0_18 = arith.constant 0 : index
    %27 = vector.load %arg6[%c0_17, %c0_18] : memref<32x32xbf16, #tpu.memory_space<vmem>>, vector<32x32xbf16>
    %cst_19 = arith.constant dense<0.000000e+00> : vector<7x32xf32>
    %28 = tpu.matmul %1, %27, %cst_19 {dimension_numbers = #tpu.dot_dimension_numbers<[1], [0], [0], [1], [0, 0, 1, 1], [], []>} : vector<7x32xbf16>, vector<32x32xbf16>, vector<7x32xf32> -> vector<7x32xf32>
    %29 = arith.truncf %26 : vector<7x32xf32> to vector<7x32xbf16>
    %c0_20 = arith.constant 0 : index
    %c0_21 = arith.constant 0 : index
    %30 = vector.load %arg7[%c0_20, %c0_21] : memref<32x32xbf16, #tpu.memory_space<vmem>>, vector<32x32xbf16>
    %cst_22 = arith.constant dense<0.000000e+00> : vector<7x32xf32>
    %31 = tpu.matmul %29, %30, %cst_22 {dimension_numbers = #tpu.dot_dimension_numbers<[1], [0], [0], [1], [0, 0, 1, 1], [], []>} : vector<7x32xbf16>, vector<32x32xbf16>, vector<7x32xf32> -> vector<7x32xf32>
    %32 = arith.addf %28, %31 : vector<7x32xf32>
    %c0_23 = arith.constant 0 : index
    %c0_24 = arith.constant 0 : index
    %33 = vector.load %arg8[%c0_23, %c0_24] : memref<1x32xf32, #tpu.memory_space<vmem>>, vector<1x32xf32>
    %34 = vector.broadcast %33 : vector<1x32xf32> to vector<7x32xf32>
    %35 = arith.addf %32, %34 : vector<7x32xf32>
    %36 = math.tanh %35 : vector<7x32xf32>
    %37 = arith.truncf %36 : vector<7x32xf32> to vector<7x32xbf16>
    %c0_25 = arith.constant 0 : index
    %c0_26 = arith.constant 0 : index
    %38 = vector.load %arg9[%c0_25, %c0_26] : memref<32x128xbf16, #tpu.memory_space<vmem>>, vector<32x128xbf16>
    %cst_27 = arith.constant dense<0.000000e+00> : vector<7x128xf32>
    %39 = tpu.matmul %37, %38, %cst_27 {dimension_numbers = #tpu.dot_dimension_numbers<[1], [0], [0], [1], [0, 0, 1, 1], [], []>} : vector<7x32xbf16>, vector<32x128xbf16>, vector<7x128xf32> -> vector<7x128xf32>
    %c0_28 = arith.constant 0 : index
    %c0_29 = arith.constant 0 : index
    %40 = vector.load %arg10[%c0_28, %c0_29] : memref<1x128xf32, #tpu.memory_space<vmem>>, vector<1x128xf32>
    %41 = vector.broadcast %40 : vector<1x128xf32> to vector<7x128xf32>
    %42 = arith.addf %39, %41 : vector<7x128xf32>
    %cst_30 = arith.constant dense<0xFF800000> : vector<7xf32>
    %43 = vector.multi_reduction <maximumf>, %42, %cst_30 [1] : vector<7x128xf32> to vector<7xf32>
    %44 = vector.shape_cast %43 : vector<7xf32> to vector<7x1xf32>
    %45 = vector.broadcast %44 : vector<7x1xf32> to vector<7x128xf32>
    %46 = arith.subf %42, %45 : vector<7x128xf32>
    %47 = math.exp %46 : vector<7x128xf32>
    %cst_31 = arith.constant dense<0.000000e+00> : vector<7xf32>
    %48 = vector.multi_reduction <add>, %47, %cst_31 [1] : vector<7x128xf32> to vector<7xf32>
    %49 = vector.shape_cast %48 : vector<7xf32> to vector<7x1xf32>
    %50 = math.log %49 : vector<7x1xf32>
    %51 = vector.broadcast %50 : vector<7x1xf32> to vector<7x128xf32>
    %52 = arith.subf %46, %51 : vector<7x128xf32>
    %c0_32 = arith.constant 0 : index
    %c0_33 = arith.constant 0 : index
    %c0_34 = arith.constant 0 : index
    %53 = vector.load %arg11[%c0_32, %c0_33, %c0_34] : memref<1x7x128xf32, #tpu.memory_space<vmem>>, vector<1x7x128xf32>
    %54 = vector.shape_cast %53 : vector<1x7x128xf32> to vector<7x128xf32>
    %55 = vector.shape_cast %52 : vector<7x128xf32> to vector<1x7x128xf32>
    tpu.vector_store %arg11[%c0_32, %c0_33, %c0_34], %55 {strides = array<i32>} : memref<1x7x128xf32, #tpu.memory_space<vmem>>, vector<1x7x128xf32>,
    return
  }
  func.func @transform_0(%arg0: i32) -> (i32, i32, i32) {
    %c0_i32 = arith.constant 0 : i32
    %c0_i32_0 = arith.constant 0 : i32
    %c0_i32_1 = arith.constant 0 : i32
    return %arg0, %c0_i32, %c0_i32_0 : i32, i32, i32
  }
  func.func @transform_1(%arg0: i32) -> (i32, i32, i32) {
    %c0_i32 = arith.constant 0 : i32
    %c0_i32_0 = arith.constant 0 : i32
    %c0_i32_1 = arith.constant 0 : i32
    return %arg0, %c0_i32, %c0_i32_0 : i32, i32, i32
  }
  func.func @transform_2(%arg0: i32) -> (i32, i32, i32) {
    %c0_i32 = arith.constant 0 : i32
    %c0_i32_0 = arith.constant 0 : i32
    %c0_i32_1 = arith.constant 0 : i32
    return %arg0, %c0_i32, %c0_i32_0 : i32, i32, i32
  }
  func.func @transform_3(%arg0: i32) -> (i32, i32) {
    %c0_i32 = arith.constant 0 : i32
    %c0_i32_0 = arith.constant 0 : i32
    %c0_i32_1 = arith.constant 0 : i32
    return %c0_i32, %c0_i32_0 : i32, i32
  }
  func.func @transform_4(%arg0: i32) -> (i32, i32) {
    %c0_i32 = arith.constant 0 : i32
    %c0_i32_0 = arith.constant 0 : i32
    %c0_i32_1 = arith.constant 0 : i32
    return %c0_i32, %c0_i32_0 : i32, i32
  }
  func.func @transform_5(%arg0: i32) -> (i32, i32) {
    %c0_i32 = arith.constant 0 : i32
    %c0_i32_0 = arith.constant 0 : i32
    %c0_i32_1 = arith.constant 0 : i32
    return %c0_i32, %c0_i32_0 : i32, i32
  }
  func.func @transform_6(%arg0: i32) -> (i32, i32) {
    %c0_i32 = arith.constant 0 : i32
    %c0_i32_0 = arith.constant 0 : i32
    %c0_i32_1 = arith.constant 0 : i32
    return %c0_i32, %c0_i32_0 : i32, i32
  }
  func.func @transform_7(%arg0: i32) -> (i32, i32) {
    %c0_i32 = arith.constant 0 : i32
    %c0_i32_0 = arith.constant 0 : i32
    %c0_i32_1 = arith.constant 0 : i32
    return %c0_i32, %c0_i32_0 : i32, i32
  }
  func.func @transform_8(%arg0: i32) -> (i32, i32) {
    %c0_i32 = arith.constant 0 : i32
    %c0_i32_0 = arith.constant 0 : i32
    %c0_i32_1 = arith.constant 0 : i32
    return %c0_i32, %c0_i32_0 : i32, i32
  }
  func.func @transform_9(%arg0: i32) -> (i32, i32) {
    %c0_i32 = arith.constant 0 : i32
    %c0_i32_0 = arith.constant 0 : i32
    %c0_i32_1 = arith.constant 0 : i32
    return %c0_i32, %c0_i32_0 : i32, i32
  }
  func.func @transform_10(%arg0: i32) -> (i32, i32, i32) {
    %c0_i32 = arith.constant 0 : i32
    %c0_i32_0 = arith.constant 0 : i32
    %c0_i32_1 = arith.constant 0 : i32
    return %arg0, %c0_i32, %c0_i32_0 : i32, i32, i32
  }
}

</mosaic_0001>

<llo_original>
// kernel: crdnn_forward.6
$region0: #{crdnn_forward.6}
  #allocation0 [shape = 'u32[]', space=smem, size = 0x4, offset = 0x4, fixed_abs, tag = 'smem constant byte address 0x4 - core index']
  #allocation1 [shape = 'u32[72,128]{1,0:T(1,128)}', space=vmem, size = 0x9000, scoped, tag = 'internal scratch']
  %s0 = inlined_call_operand.vmem [shape: f32[2,18,18], index: 0, kind: input, shape index: {}]
  %s1 = inlined_call_operand.vmem [shape: bf16[9,16,128], index: 1, kind: input, shape index: {}]
  %s2 = inlined_call_operand.vmem [shape: f32[1,128], index: 2, kind: input, shape index: {}]
  %s3 = inlined_call_operand.vmem [shape: f32[2,16,128], index: 3, kind: output, shape index: {}]
  %s4 = sld [smem:[#allocation0]]
  $region45: #{crdnn_forward.6} parent=0
    _
  %s6 = ssub.s32 1, %s4
  %s7 = scalar_select 0, %s6, %s4
  loop: start=0, step=1, limit=4
  $region2: #{crdnn_forward.6} parent=0 // loop_pre_header
    _
  $region3: #{crdnn_forward.6} parent=0 // loop_header
    %s9 = sphi 0, %s13
    %p10 = scmp.ge.s32.totalorder %s9, 4
    %s19 = sphi 0, %s21
    %s22 = sphi 0, %s19
    %s23 = sphi 0, %s22
    %s39 = sphi 0, %s23
    %s43 = sphi 0, %s43
    %s45 = sphi 0, %s43
    %s46 = sphi 0, %s45
    %s60 = sphi 0, %s46
    %s64 = sphi 0, %s64
    %s66 = sphi 0, %s64
    %s67 = sphi 0, %s66
    %s81 = sphi 0, %s67
    %s87 = sphi 0, %s89
    %s90 = sphi 0, %s87
    %s91 = sphi 0, %s90
    %s107 = sphi 0, %s91
  $region4: #{crdnn_forward.6} parent=0 // loop_header_branch
    %12 = sbr.rel (%p10) target = $region8
  $region5: #{crdnn_forward.6} parent=0 // loop_body
    %s14 = ssub.s32 %s9, 1
    %s15 = ssub.s32 %s9, 2
    %s16 = sadd.s32 %s9, 1
    %s17 = ssub.s32 %s9, %s16
    %p18 = scmp.eq.s32.totalorder %s17, 0
    %s20 = sadd.s32 %s19, 1
    %s21 = scalar_select %p18, %s19, %s20
    %p24 = pneg %p18
    %p25 = scmp.eq.s32.totalorder %s9, 1
    %p26 = por %p24, %p25
    %p27 = scmp.ne.s32.totalorder %s19, %s22
    %p28 = scmp.eq.s32.totalorder %s9, 0
    %p29 = por %p27, %p28
    %p30 = scmp.ne.s32.totalorder %s19, %s22
    %p31 = scmp.eq.s32.totalorder %s14, 1
    %p32 = por %p30, %p31
    %p33 = scmp.ne.s32.totalorder %s22, %s23
    %p34 = scmp.eq.s32.totalorder %s14, 0
    %p35 = por %p33, %p34
    %p36 = scmp.ne.s32.totalorder %s22, %s23
    %p37 = scmp.eq.s32.totalorder %s15, 1
    %p38 = por %p36, %p37
    %p40 = scmp.ne.s32.totalorder %s23, %s39
    %p41 = scmp.eq.s32.totalorder %s15, 0
    %p42 = por %p40, %p41
    %s44 = sadd.s32 %s43, 1
    %p47 = scmp.eq.s32.totalorder %s9, 1
    %p48 = scmp.ne.s32.totalorder %s43, %s45
    %p49 = scmp.eq.s32.totalorder %s9, 0
    %p50 = por %p48, %p49
    %p51 = scmp.ne.s32.totalorder %s43, %s45
    %p52 = scmp.eq.s32.totalorder %s14, 1
    %p53 = por %p51, %p52
    %p54 = scmp.ne.s32.totalorder %s45, %s46
    %p55 = scmp.eq.s32.totalorder %s14, 0
    %p56 = por %p54, %p55
    %p57 = scmp.ne.s32.totalorder %s45, %s46
    %p58 = scmp.eq.s32.totalorder %s15, 1
    %p59 = por %p57, %p58
    %p61 = scmp.ne.s32.totalorder %s46, %s60
    %p62 = scmp.eq.s32.totalorder %s15, 0
    %p63 = por %p61, %p62
    %s65 = sadd.s32 %s64, 1
    %p68 = scmp.eq.s32.totalorder %s9, 1
    %p69 = scmp.ne.s32.totalorder %s64, %s66
    %p70 = scmp.eq.s32.totalorder %s9, 0
    %p71 = por %p69, %p70
    %p72 = scmp.ne.s32.totalorder %s64, %s66
    %p73 = scmp.eq.s32.totalorder %s14, 1
    %p74 = por %p72, %p73
    %p75 = scmp.ne.s32.totalorder %s66, %s67
    %p76 = scmp.eq.s32.totalorder %s14, 0
    %p77 = por %p75, %p76
    %p78 = scmp.ne.s32.totalorder %s66, %s67
    %p79 = scmp.eq.s32.totalorder %s15, 1
    %p80 = por %p78, %p79
    %p82 = scmp.ne.s32.totalorder %s67, %s81
    %p83 = scmp.eq.s32.totalorder %s15, 0
    %p84 = por %p82, %p83
    %s85 = ssub.s32 %s9, %s16
    %p86 = scmp.eq.s32.totalorder %s85, 0
    %s88 = sadd.s32 %s87, 1
    %s89 = scalar_select %p86, %s87, %s88
    %p92 = pneg %p86
    %p93 = scmp.eq.s32.totalorder %s9, 1
    %p94 = por %p92, %p93
    %p95 = scmp.ne.s32.totalorder %s87, %s90
    %p96 = scmp.eq.s32.totalorder %s9, 0
    %p97 = por %p95, %p96
    %p98 = scmp.ne.s32.totalorder %s87, %s90
    %p99 = scmp.eq.s32.totalorder %s14, 1
    %p100 = por %p98, %p99
    %p101 = scmp.ne.s32.totalorder %s90, %s91
    %p102 = scmp.eq.s32.totalorder %s14, 0
    %p103 = por %p101, %p102
    %p104 = scmp.ne.s32.totalorder %s90, %s91
    %p105 = scmp.eq.s32.totalorder %s15, 1
    %p106 = por %p104, %p105
    %p108 = scmp.ne.s32.totalorder %s91, %s107
    %p109 = scmp.eq.s32.totalorder %s15, 0
    %p110 = por %p108, %p109
    %p111 = scmp.le.s32.totalorder 1, %s9
    %p112 = scmp.lt.s32.totalorder %s9, 3
    %p113 = pnand %p111, %p112
    %p114 = pneg %p113
    // Predicated region
    $region9: #{crdnn_forward.6} parent=5 // pred_check
      _
    $region10: #{crdnn_forward.6} parent=5 // pred_check_branch
      %116 = sbr.rel (%p113) target = $region12
    $region11: #{crdnn_forward.6} parent=5 // pred_region
      %s117 = ssub.s32 %s9, 1
      // Predicated region
      $region13: #{crdnn_forward.6} parent=11 // pred_check
        %p118 = pneg %p56
      $region14: #{crdnn_forward.6} parent=11 // pred_check_branch
        %120 = sbr.rel (%p118) target = $region16
      $region15: #{crdnn_forward.6} parent=11 // pred_region
        _
      $region16: #{crdnn_forward.6} parent=11 // pred_fallthru
        _
      // Predicated region
      $region17: #{crdnn_forward.6} parent=11 // pred_check
        %p121 = pneg %p77
      $region18: #{crdnn_forward.6} parent=11 // pred_check_branch
        %123 = sbr.rel (%p121) target = $region20
      $region19: #{crdnn_forward.6} parent=11 // pred_region
        _
      $region20: #{crdnn_forward.6} parent=11 // pred_fallthru
        _
    $region12: #{crdnn_forward.6} parent=5 // pred_fallthru
      _
    %p124 = scmp.lt.s32.totalorder %s9, 2
    // Predicated region
    $region21: #{crdnn_forward.6} parent=5 // pred_check
      %p125 = pneg %p124
    $region22: #{crdnn_forward.6} parent=5 // pred_check_branch
      %127 = sbr.rel (%p125) target = $region24
    $region23: #{crdnn_forward.6} parent=5 // pred_region
      // Predicated region
      $region25: #{crdnn_forward.6} parent=23 // pred_check
        %p128 = pneg %p29
      $region26: #{crdnn_forward.6} parent=23 // pred_check_branch
        %130 = sbr.rel (%p128) target = $region28
      $region27: #{crdnn_forward.6} parent=23 // pred_region
        %p131 = scmp.lt.s32.totalorder %s9, 1
        %s132 = scalar_select %p131, %s9, 1
        %s133 = smul.addr %s132, 3
        %s134 = smul.addr %s133, 8
        %s135 = scalar_lea.vmem %s0, %s134
      $region28: #{crdnn_forward.6} parent=23 // pred_fallthru
        _
    $region24: #{crdnn_forward.6} parent=5 // pred_fallthru
      _
    %p136 = scmp.le.s32.totalorder 1, %s9
    %p137 = scmp.lt.s32.totalorder %s9, 3
    %p138 = pnand %p136, %p137
    %p139 = pneg %p138
    // Predicated region
    $region29: #{crdnn_forward.6} parent=5 // pred_check
      _
    $region30: #{crdnn_forward.6} parent=5 // pred_check_branch
      %141 = sbr.rel (%p138) target = $region32
    $region31: #{crdnn_forward.6} parent=5 // pred_region
      %s142 = ssub.s32 %s9, 1
      %p143 = scmp.lt.s32.totalorder %s14, 1
      %s144 = scalar_select %p143, %s14, 1
      %s145 = smul.addr %s144, 3
      %s146 = smul.addr %s145, 8
      %s147 = scalar_lea.vmem %s0, %s146
      %p148 = pneg %p35
      %p149 = pneg %p32
      %p150 = pneg %p56
      %p151 = pneg %p53
      %p152 = pneg %p77
      %p153 = pneg %p74
      %p154 = pneg %p103
      %p155 = pneg %p100
      %p156 = scmp.lt.s32.totalorder %s14, 1
      %s157 = scalar_select %p156, %s14, 1
      %s158 = smul.addr %s157, 2
      %s159 = smul.addr %s158, 8
      %s160 = scalar_lea.vmem %s3, %s159
      %p161 = scmp.lt.s32.totalorder %s14, 1
      %s162 = scalar_select %p161, %s14, 1
      %s163 = smul.addr %s162, 3
      %s164 = smul.addr %s163, 8
      %s165 = scalar_lea.vmem %s0, %s164
      %p166 = scmp.lt.s32.totalorder %s14, 1
      %s167 = scalar_select %p166, %s14, 1
      %s168 = smul.addr %s167, 2
      %s169 = smul.addr %s168, 8
      %s170 = scalar_lea.vmem %s3, %s169
      %v172 = vld [vmem:[%s165] sm:$0xff]
      %v173 = vld [vmem:[%s165 + $0x8] sm:$0xff]
      %v174 = vld [vmem:[%s165 + $0x10] sm:$0x3]
      %v175 = vpack.c.bf16 %v173, %v172
      %v176 = vld [vmem:[%s1] sm:$0xf]
      %v177 = vld [vmem:[%s1 + $0x4] sm:$0xf]
      %s178 = scalar_lea.vmem %s1, 8
      %v179 = vld [vmem:[%s178] sm:$0xf]
      %v180 = vld [vmem:[%s178 + $0x4] sm:$0xf]
      %182 = vrot.lane.b32.xlu0 %v175, 127
      %v183 = vpop.permute.xlu0 %182
      %v186 = vunpack.c.l.b16 %v179
      %v187 = vunpack.c.l.b16 %v180
      %v188 = vpack.c.b16 %v187, %v186
      %vm190 = vcmask 130048
      %v192 = vsel %vm190, %v183, 0
      %194 = vmatpush.bf16.msra.mxu0 0
      %195 = vmatpush.bf16.msra.mxu0 0
      %196 = vmatpush.bf16.msra.mxu0 0
      %197 = vmatpush.bf16.msra.mxu0 0
      %198 = vmatpush.bf16.msra.mxu0 0
      %199 = vmatpush.bf16.msra.mxu0 0
      %200 = vmatpush.bf16.msra.mxu0 0
      %201 = vmatpush.bf16.msra.mxu0 %v188
      %202 = vmatmul.bf16.gmra.mxu0 %v192
      %v203 = vpop.f32.mrf.mxu0
      %v204 = vadd.f32 0.0, %v203
      %v205 = vpop.f32.mrf.mxu0
      %v206 = vadd.f32 0.0, %v205
      %207 = vdwg.mxu0
      %v210 = vunpack.c.l.b16 %v176
      %v211 = vunpack.c.l.b16 %v177
      %v212 = vpack.c.b16 %v211, %v210
      %v215 = vsel %vm190, %v175, 0
      %217 = vmatpush.bf16.msra.mxu0 0
      %218 = vmatpush.bf16.msra.mxu0 0
      %219 = vmatpush.bf16.msra.mxu0 0
      %220 = vmatpush.bf16.msra.mxu0 0
      %221 = vmatpush.bf16.msra.mxu0 0
      %222 = vmatpush.bf16.msra.mxu0 0
      %223 = vmatpush.bf16.msra.mxu0 0
      %224 = vmatpush.bf16.msra.mxu0 %v212
      %225 = vmatmul.bf16.gmra.mxu0 %v215
      %v226 = vpop.f32.mrf.mxu0
      %v227 = vadd.f32 %v204, %v226
      %v228 = vpop.f32.mrf.mxu0
      %v229 = vadd.f32 %v206, %v228
      %230 = vdwg.mxu0
      %s231 = scalar_lea.vmem %s1, 16
      %v232 = vld [vmem:[%s231] sm:$0xf]
      %v233 = vld [vmem:[%s231 + $0x4] sm:$0xf]
      %234 = vrot.lane.b32.xlu0 %v175, 126
      %v235 = vpop.permute.xlu0 %234
      %v238 = vunpack.c.l.b16 %v232
      %v239 = vunpack.c.l.b16 %v233
      %v240 = vpack.c.b16 %v239, %v238
      %v243 = vsel %vm190, %v235, 0
      %245 = vmatpush.bf16.msra.mxu0 0
      %246 = vmatpush.bf16.msra.mxu0 0
      %247 = vmatpush.bf16.msra.mxu0 0
      %248 = vmatpush.bf16.msra.mxu0 0
      %249 = vmatpush.bf16.msra.mxu0 0
      %250 = vmatpush.bf16.msra.mxu0 0
      %251 = vmatpush.bf16.msra.mxu0 0
      %252 = vmatpush.bf16.msra.mxu0 %v240
      %253 = vmatmul.bf16.gmra.mxu0 %v243
      %v254 = vpop.f32.mrf.mxu0
      %v255 = vadd.f32 0.0, %v254
      %v256 = vpop.f32.mrf.mxu0
      %v257 = vadd.f32 0.0, %v256
      %258 = vdwg.mxu0
      %v259 = vadd.f32 %v227, %v255
      %v260 = vadd.f32 %v229, %v257
      %v261 = vpack.c.bf16 %v174, %v174
      %s262 = scalar_lea.vmem %s1, 24
      %v263 = vld [vmem:[%s262] sm:$0xf]
      %v264 = vld [vmem:[%s262 + $0x4] sm:$0xf]
      %vm265 = vsmask.f32 7424
      %v266 = vshrl.u32 %v175, 16
      %v268 = vshll.u32 %v175, 16
      %v270 = vrot.slane %v268, 1
      %v271 = vor.u32 %v266, %v270
      %v273 = vshll.u32 %v261, 16
      %v275 = vrot.slane %v273, 1
      %v276 = vsel %vm265, %v271, %v275
      %v279 = vunpack.c.l.b16 %v263
      %v280 = vunpack.c.l.b16 %v264
      %v281 = vpack.c.b16 %v280, %v279
      %v284 = vsel %vm190, %v276, 0
      %286 = vmatpush.bf16.msra.mxu0 0
      %287 = vmatpush.bf16.msra.mxu0 0
      %288 = vmatpush.bf16.msra.mxu0 0
      %289 = vmatpush.bf16.msra.mxu0 0
      %290 = vmatpush.bf16.msra.mxu0 0
      %291 = vmatpush.bf16.msra.mxu0 0
      %292 = vmatpush.bf16.msra.mxu0 0
      %293 = vmatpush.bf16.msra.mxu0 %v281
      %294 = vmatmul.bf16.gmra.mxu0 %v284
      %v295 = vpop.f32.mrf.mxu0
      %v296 = vadd.f32 0.0, %v295
      %v297 = vpop.f32.mrf.mxu0
      %v298 = vadd.f32 0.0, %v297
      %299 = vdwg.mxu0
      %v300 = vadd.f32 %v259, %v296
      %v301 = vadd.f32 %v260, %v298
      %s302 = scalar_lea.vmem %s1, 32
      %v303 = vld [vmem:[%s302] sm:$0xf]
      %v304 = vld [vmem:[%s302 + $0x4] sm:$0xf]
      %305 = vrot.lane.b32.xlu0 %v276, 127
      %v306 = vpop.permute.xlu0 %305
      %v309 = vunpack.c.l.b16 %v303
      %v310 = vunpack.c.l.b16 %v304
      %v311 = vpack.c.b16 %v310, %v309
      %v314 = vsel %vm190, %v306, 0
      %316 = vmatpush.bf16.msra.mxu0 0
      %317 = vmatpush.bf16.msra.mxu0 0
      %318 = vmatpush.bf16.msra.mxu0 0
      %319 = vmatpush.bf16.msra.mxu0 0
      %320 = vmatpush.bf16.msra.mxu0 0
      %321 = vmatpush.bf16.msra.mxu0 0
      %322 = vmatpush.bf16.msra.mxu0 0
      %323 = vmatpush.bf16.msra.mxu0 %v311
      %324 = vmatmul.bf16.gmra.mxu0 %v314
      %v325 = vpop.f32.mrf.mxu0
      %v326 = vadd.f32 0.0, %v325
      %v327 = vpop.f32.mrf.mxu0
      %v328 = vadd.f32 0.0, %v327
      %329 = vdwg.mxu0
      %v330 = vadd.f32 %v300, %v326
      %v331 = vadd.f32 %v301, %v328
      %s332 = scalar_lea.vmem %s1, 40
      %v333 = vld [vmem:[%s332] sm:$0xf]
      %v334 = vld [vmem:[%s332 + $0x4] sm:$0xf]
      %335 = vrot.lane.b32.xlu0 %v276, 126
      %v336 = vpop.permute.xlu0 %335
      %v339 = vunpack.c.l.b16 %v333
      %v340 = vunpack.c.l.b16 %v334
      %v341 = vpack.c.b16 %v340, %v339
      %v344 = vsel %vm190, %v336, 0
      %346 = vmatpush.bf16.msra.mxu0 0
      %347 = vmatpush.bf16.msra.mxu0 0
      %348 = vmatpush.bf16.msra.mxu0 0
      %349 = vmatpush.bf16.msra.mxu0 0
      %350 = vmatpush.bf16.msra.mxu0 0
      %351 = vmatpush.bf16.msra.mxu0 0
      %352 = vmatpush.bf16.msra.mxu0 0
      %353 = vmatpush.bf16.msra.mxu0 %v341
      %354 = vmatmul.bf16.gmra.mxu0 %v344
      %v355 = vpop.f32.mrf.mxu0
      %v356 = vadd.f32 0.0, %v355
      %v357 = vpop.f32.mrf.mxu0
      %v358 = vadd.f32 0.0, %v357
      %359 = vdwg.mxu0
      %v360 = vadd.f32 %v330, %v356
      %v361 = vadd.f32 %v331, %v358
      %s362 = scalar_lea.vmem %s1, 48
      %v363 = vld [vmem:[%s362] sm:$0xf]
      %v364 = vld [vmem:[%s362 + $0x4] sm:$0xf]
      %vm366 = vcmask 1046528
      %v367 = vrot.slane %v175, 1
      %v368 = vrot.slane %v261, 1
      %v369 = vsel %vm366, %v367, %v368
      %v372 = vunpack.c.l.b16 %v363
      %v373 = vunpack.c.l.b16 %v364
      %v374 = vpack.c.b16 %v373, %v372
      %v377 = vsel %vm190, %v369, 0
      %379 = vmatpush.bf16.msra.mxu0 0
      %380 = vmatpush.bf16.msra.mxu0 0
      %381 = vmatpush.bf16.msra.mxu0 0
      %382 = vmatpush.bf16.msra.mxu0 0
      %383 = vmatpush.bf16.msra.mxu0 0
      %384 = vmatpush.bf16.msra.mxu0 0
      %385 = vmatpush.bf16.msra.mxu0 0
      %386 = vmatpush.bf16.msra.mxu0 %v374
      %387 = vmatmul.bf16.gmra.mxu0 %v377
      %v388 = vpop.f32.mrf.mxu0
      %v389 = vadd.f32 0.0, %v388
      %v390 = vpop.f32.mrf.mxu0
      %v391 = vadd.f32 0.0, %v390
      %392 = vdwg.mxu0
      %v393 = vadd.f32 %v360, %v389
      %v394 = vadd.f32 %v361, %v391
      %s395 = scalar_lea.vmem %s1, 56
      %v396 = vld [vmem:[%s395] sm:$0xf]
      %v397 = vld [vmem:[%s395 + $0x4] sm:$0xf]
      %398 = vrot.lane.b32.xlu0 %v369, 127
      %v399 = vpop.permute.xlu0 %398
      %v402 = vunpack.c.l.b16 %v396
      %v403 = vunpack.c.l.b16 %v397
      %v404 = vpack.c.b16 %v403, %v402
      %v407 = vsel %vm190, %v399, 0
      %409 = vmatpush.bf16.msra.mxu0 0
      %410 = vmatpush.bf16.msra.mxu0 0
      %411 = vmatpush.bf16.msra.mxu0 0
      %412 = vmatpush.bf16.msra.mxu0 0
      %413 = vmatpush.bf16.msra.mxu0 0
      %414 = vmatpush.bf16.msra.mxu0 0
      %415 = vmatpush.bf16.msra.mxu0 0
      %416 = vmatpush.bf16.msra.mxu0 %v404
      %417 = vmatmul.bf16.gmra.mxu0 %v407
      %v418 = vpop.f32.mrf.mxu0
      %v419 = vadd.f32 0.0, %v418
      %v420 = vpop.f32.mrf.mxu0
      %v421 = vadd.f32 0.0, %v420
      %422 = vdwg.mxu0
      %v423 = vadd.f32 %v393, %v419
      %v424 = vadd.f32 %v394, %v421
      %s425 = scalar_lea.vmem %s1, 64
      %v426 = vld [vmem:[%s425] sm:$0xf]
      %v427 = vld [vmem:[%s425 + $0x4] sm:$0xf]
      %428 = vrot.lane.b32.xlu0 %v369, 126
      %v429 = vpop.permute.xlu0 %428
      %v432 = vunpack.c.l.b16 %v426
      %v433 = vunpack.c.l.b16 %v427
      %v434 = vpack.c.b16 %v433, %v432
      %v437 = vsel %vm190, %v429, 0
      %439 = vmatpush.bf16.msra.mxu0 0
      %440 = vmatpush.bf16.msra.mxu0 0
      %441 = vmatpush.bf16.msra.mxu0 0
      %442 = vmatpush.bf16.msra.mxu0 0
      %443 = vmatpush.bf16.msra.mxu0 0
      %444 = vmatpush.bf16.msra.mxu0 0
      %445 = vmatpush.bf16.msra.mxu0 0
      %446 = vmatpush.bf16.msra.mxu0 %v434
      %447 = vmatmul.bf16.gmra.mxu0 %v437
      %v448 = vpop.f32.mrf.mxu0
      %v449 = vadd.f32 0.0, %v448
      %v450 = vpop.f32.mrf.mxu0
      %v451 = vadd.f32 0.0, %v450
      %452 = vdwg.mxu0
      %v453 = vadd.f32 %v423, %v449
      %v454 = vadd.f32 %v424, %v451
      %v455 = vld [vmem:[%s2] sm:$0x1]
      %v457 = vperm.slane %v455, 0
      %v459 = vadd.f32 %v453, %v457
      %v460 = vadd.f32 %v454, %v457
      %v461 = vmax.f32 %v459, 0.0
      %v462 = vmax.f32 %v460, 0.0
      %463 = vst [vmem:[%s170] sm:$0xff] %v461
      %464 = vst [vmem:[%s170 + $0x8] sm:$0xff] %v462
      %p465 = scmp.lt.s32.totalorder %s14, 1
      %s466 = scalar_select %p465, %s14, 1
      %s467 = smul.addr %s466, 2
      %s468 = smul.addr %s467, 8
      %s469 = scalar_lea.vmem %s3, %s468
      // Predicated region
      $region33: #{crdnn_forward.6} parent=31 // pred_check
        %p470 = pneg %p100
      $region34: #{crdnn_forward.6} parent=31 // pred_check_branch
        %472 = sbr.rel (%p470) target = $region36
      $region35: #{crdnn_forward.6} parent=31 // pred_region
        _
      $region36: #{crdnn_forward.6} parent=31 // pred_fallthru
        _
    $region32: #{crdnn_forward.6} parent=5 // pred_fallthru
      _
    %p473 = scmp.le.s32.totalorder 2, %s9
    // Predicated region
    $region37: #{crdnn_forward.6} parent=5 // pred_check
      %p474 = pneg %p473
    $region38: #{crdnn_forward.6} parent=5 // pred_check_branch
      %476 = sbr.rel (%p474) target = $region40
    $region39: #{crdnn_forward.6} parent=5 // pred_region
      %s477 = ssub.s32 %s9, 2
      // Predicated region
      $region41: #{crdnn_forward.6} parent=39 // pred_check
        %p478 = pneg %p106
      $region42: #{crdnn_forward.6} parent=39 // pred_check_branch
        %480 = sbr.rel (%p478) target = $region44
      $region43: #{crdnn_forward.6} parent=39 // pred_region
        %p481 = scmp.lt.s32.totalorder %s15, 1
        %s482 = scalar_select %p481, %s15, 1
        %s483 = smul.addr %s482, 2
        %s484 = smul.addr %s483, 8
        %s485 = scalar_lea.vmem %s3, %s484
      $region44: #{crdnn_forward.6} parent=39 // pred_fallthru
        _
    $region40: #{crdnn_forward.6} parent=5 // pred_fallthru
      _
  $region6: #{crdnn_forward.6} parent=0 // loop_footer
    %s13 = sadd.s32 1, %s9
  $region7: #{crdnn_forward.6} parent=0 // loop_footer_branch
    %8 = sbr.rel target = $region3
  $region8: #{crdnn_forward.6} parent=0 // loop_exit
    _

// kernel: crdnn_forward.7
$region0: #{crdnn_forward.7}
  #allocation0 [shape = 'u32[]', space=smem, size = 0x4, offset = 0x4, fixed_abs, tag = 'smem constant byte address 0x4 - core index']
  #allocation1 [shape = 'u32[72,128]{1,0:T(1,128)}', space=vmem, size = 0x9000, scoped, tag = 'internal scratch']
  %s0 = inlined_call_operand.vmem [shape: f32[2,18,80], index: 0, kind: input, shape index: {}]
  %s1 = inlined_call_operand.vmem [shape: bf16[9,64,128], index: 1, kind: input, shape index: {}]
  %s2 = inlined_call_operand.vmem [shape: f32[1,128], index: 2, kind: input, shape index: {}]
  %s3 = inlined_call_operand.vmem [shape: f32[2,16,128], index: 3, kind: output, shape index: {}]
  %s4 = sld [smem:[#allocation0]]
  $region45: #{crdnn_forward.7} parent=0
    _
  %s6 = ssub.s32 1, %s4
  %s7 = scalar_select 0, %s6, %s4
  loop: start=0, step=1, limit=4
  $region2: #{crdnn_forward.7} parent=0 // loop_pre_header
    _
  $region3: #{crdnn_forward.7} parent=0 // loop_header
    %s9 = sphi 0, %s13
    %p10 = scmp.ge.s32.totalorder %s9, 4
    %s19 = sphi 0, %s21
    %s22 = sphi 0, %s19
    %s23 = sphi 0, %s22
    %s39 = sphi 0, %s23
    %s43 = sphi 0, %s43
    %s45 = sphi 0, %s43
    %s46 = sphi 0, %s45
    %s60 = sphi 0, %s46
    %s64 = sphi 0, %s64
    %s66 = sphi 0, %s64
    %s67 = sphi 0, %s66
    %s81 = sphi 0, %s67
    %s87 = sphi 0, %s89
    %s90 = sphi 0, %s87
    %s91 = sphi 0, %s90
    %s107 = sphi 0, %s91
  $region4: #{crdnn_forward.7} parent=0 // loop_header_branch
    %12 = sbr.rel (%p10) target = $region8
  $region5: #{crdnn_forward.7} parent=0 // loop_body
    %s14 = ssub.s32 %s9, 1
    %s15 = ssub.s32 %s9, 2
    %s16 = sadd.s32 %s9, 1
    %s17 = ssub.s32 %s9, %s16
    %p18 = scmp.eq.s32.totalorder %s17, 0
    %s20 = sadd.s32 %s19, 1
    %s21 = scalar_select %p18, %s19, %s20
    %p24 = pneg %p18
    %p25 = scmp.eq.s32.totalorder %s9, 1
    %p26 = por %p24, %p25
    %p27 = scmp.ne.s32.totalorder %s19, %s22
    %p28 = scmp.eq.s32.totalorder %s9, 0
    %p29 = por %p27, %p28
    %p30 = scmp.ne.s32.totalorder %s19, %s22
    %p31 = scmp.eq.s32.totalorder %s14, 1
    %p32 = por %p30, %p31
    %p33 = scmp.ne.s32.totalorder %s22, %s23
    %p34 = scmp.eq.s32.totalorder %s14, 0
    %p35 = por %p33, %p34
    %p36 = scmp.ne.s32.totalorder %s22, %s23
    %p37 = scmp.eq.s32.totalorder %s15, 1
    %p38 = por %p36, %p37
    %p40 = scmp.ne.s32.totalorder %s23, %s39
    %p41 = scmp.eq.s32.totalorder %s15, 0
    %p42 = por %p40, %p41
    %s44 = sadd.s32 %s43, 1
    %p47 = scmp.eq.s32.totalorder %s9, 1
    %p48 = scmp.ne.s32.totalorder %s43, %s45
    %p49 = scmp.eq.s32.totalorder %s9, 0
    %p50 = por %p48, %p49
    %p51 = scmp.ne.s32.totalorder %s43, %s45
    %p52 = scmp.eq.s32.totalorder %s14, 1
    %p53 = por %p51, %p52
    %p54 = scmp.ne.s32.totalorder %s45, %s46
    %p55 = scmp.eq.s32.totalorder %s14, 0
    %p56 = por %p54, %p55
    %p57 = scmp.ne.s32.totalorder %s45, %s46
    %p58 = scmp.eq.s32.totalorder %s15, 1
    %p59 = por %p57, %p58
    %p61 = scmp.ne.s32.totalorder %s46, %s60
    %p62 = scmp.eq.s32.totalorder %s15, 0
    %p63 = por %p61, %p62
    %s65 = sadd.s32 %s64, 1
    %p68 = scmp.eq.s32.totalorder %s9, 1
    %p69 = scmp.ne.s32.totalorder %s64, %s66
    %p70 = scmp.eq.s32.totalorder %s9, 0
    %p71 = por %p69, %p70
    %p72 = scmp.ne.s32.totalorder %s64, %s66
    %p73 = scmp.eq.s32.totalorder %s14, 1
    %p74 = por %p72, %p73
    %p75 = scmp.ne.s32.totalorder %s66, %s67
    %p76 = scmp.eq.s32.totalorder %s14, 0
    %p77 = por %p75, %p76
    %p78 = scmp.ne.s32.totalorder %s66, %s67
    %p79 = scmp.eq.s32.totalorder %s15, 1
    %p80 = por %p78, %p79
    %p82 = scmp.ne.s32.totalorder %s67, %s81
    %p83 = scmp.eq.s32.totalorder %s15, 0
    %p84 = por %p82, %p83
    %s85 = ssub.s32 %s9, %s16
    %p86 = scmp.eq.s32.totalorder %s85, 0
    %s88 = sadd.s32 %s87, 1
    %s89 = scalar_select %p86, %s87, %s88
    %p92 = pneg %p86
    %p93 = scmp.eq.s32.totalorder %s9, 1
    %p94 = por %p92, %p93
    %p95 = scmp.ne.s32.totalorder %s87, %s90
    %p96 = scmp.eq.s32.totalorder %s9, 0
    %p97 = por %p95, %p96
    %p98 = scmp.ne.s32.totalorder %s87, %s90
    %p99 = scmp.eq.s32.totalorder %s14, 1
    %p100 = por %p98, %p99
    %p101 = scmp.ne.s32.totalorder %s90, %s91
    %p102 = scmp.eq.s32.totalorder %s14, 0
    %p103 = por %p101, %p102
    %p104 = scmp.ne.s32.totalorder %s90, %s91
    %p105 = scmp.eq.s32.totalorder %s15, 1
    %p106 = por %p104, %p105
    %p108 = scmp.ne.s32.totalorder %s91, %s107
    %p109 = scmp.eq.s32.totalorder %s15, 0
    %p110 = por %p108, %p109
    %p111 = scmp.le.s32.totalorder 1, %s9
    %p112 = scmp.lt.s32.totalorder %s9, 3
    %p113 = pnand %p111, %p112
    %p114 = pneg %p113
    // Predicated region
    $region9: #{crdnn_forward.7} parent=5 // pred_check
      _
    $region10: #{crdnn_forward.7} parent=5 // pred_check_branch
      %116 = sbr.rel (%p113) target = $region12
    $region11: #{crdnn_forward.7} parent=5 // pred_region
      %s117 = ssub.s32 %s9, 1
      // Predicated region
      $region13: #{crdnn_forward.7} parent=11 // pred_check
        %p118 = pneg %p56
      $region14: #{crdnn_forward.7} parent=11 // pred_check_branch
        %120 = sbr.rel (%p118) target = $region16
      $region15: #{crdnn_forward.7} parent=11 // pred_region
        _
      $region16: #{crdnn_forward.7} parent=11 // pred_fallthru
        _
      // Predicated region
      $region17: #{crdnn_forward.7} parent=11 // pred_check
        %p121 = pneg %p77
      $region18: #{crdnn_forward.7} parent=11 // pred_check_branch
        %123 = sbr.rel (%p121) target = $region20
      $region19: #{crdnn_forward.7} parent=11 // pred_region
        _
      $region20: #{crdnn_forward.7} parent=11 // pred_fallthru
        _
    $region12: #{crdnn_forward.7} parent=5 // pred_fallthru
      _
    %p124 = scmp.lt.s32.totalorder %s9, 2
    // Predicated region
    $region21: #{crdnn_forward.7} parent=5 // pred_check
      %p125 = pneg %p124
    $region22: #{crdnn_forward.7} parent=5 // pred_check_branch
      %127 = sbr.rel (%p125) target = $region24
    $region23: #{crdnn_forward.7} parent=5 // pred_region
      // Predicated region
      $region25: #{crdnn_forward.7} parent=23 // pred_check
        %p128 = pneg %p29
      $region26: #{crdnn_forward.7} parent=23 // pred_check_branch
        %130 = sbr.rel (%p128) target = $region28
      $region27: #{crdnn_forward.7} parent=23 // pred_region
        %p131 = scmp.lt.s32.totalorder %s9, 1
        %s132 = scalar_select %p131, %s9, 1
        %s133 = smul.addr %s132, 3
        %s134 = smul.addr %s133, 8
        %s135 = scalar_lea.vmem %s0, %s134
      $region28: #{crdnn_forward.7} parent=23 // pred_fallthru
        _
    $region24: #{crdnn_forward.7} parent=5 // pred_fallthru
      _
    %p136 = scmp.le.s32.totalorder 1, %s9
    %p137 = scmp.lt.s32.totalorder %s9, 3
    %p138 = pnand %p136, %p137
    %p139 = pneg %p138
    // Predicated region
    $region29: #{crdnn_forward.7} parent=5 // pred_check
      _
    $region30: #{crdnn_forward.7} parent=5 // pred_check_branch
      %141 = sbr.rel (%p138) target = $region32
    $region31: #{crdnn_forward.7} parent=5 // pred_region
      %s142 = ssub.s32 %s9, 1
      %p143 = scmp.lt.s32.totalorder %s14, 1
      %s144 = scalar_select %p143, %s14, 1
      %s145 = smul.addr %s144, 3
      %s146 = smul.addr %s145, 8
      %s147 = scalar_lea.vmem %s0, %s146
      %p148 = pneg %p35
      %p149 = pneg %p32
      %p150 = pneg %p56
      %p151 = pneg %p53
      %p152 = pneg %p77
      %p153 = pneg %p74
      %p154 = pneg %p103
      %p155 = pneg %p100
      %p156 = scmp.lt.s32.totalorder %s14, 1
      %s157 = scalar_select %p156, %s14, 1
      %s158 = smul.addr %s157, 2
      %s159 = smul.addr %s158, 8
      %s160 = scalar_lea.vmem %s3, %s159
      %p161 = scmp.lt.s32.totalorder %s14, 1
      %s162 = scalar_select %p161, %s14, 1
      %s163 = smul.addr %s162, 3
      %s164 = smul.addr %s163, 8
      %s165 = scalar_lea.vmem %s0, %s164
      %p166 = scmp.lt.s32.totalorder %s14, 1
      %s167 = scalar_select %p166, %s14, 1
      %s168 = smul.addr %s167, 2
      %s169 = smul.addr %s168, 8
      %s170 = scalar_lea.vmem %s3, %s169
      %v172 = vld [vmem:[%s165] sm:$0xff]
      %v173 = vld [vmem:[%s165 + $0x8] sm:$0xff]
      %v174 = vld [vmem:[%s165 + $0x10] sm:$0x3]
      %v175 = vpack.c.bf16 %v173, %v172
      %v176 = vld [vmem:[%s1] sm:$0xf]
      %v177 = vld [vmem:[%s1 + $0x4] sm:$0xf]
      %v178 = vld [vmem:[%s1 + $0x8] sm:$0xf]
      %v179 = vld [vmem:[%s1 + $0xc] sm:$0xf]
      %v180 = vld [vmem:[%s1 + $0x10] sm:$0xf]
      %v181 = vld [vmem:[%s1 + $0x14] sm:$0xf]
      %v182 = vld [vmem:[%s1 + $0x18] sm:$0xf]
      %v183 = vld [vmem:[%s1 + $0x1c] sm:$0xf]
      %s184 = scalar_lea.vmem %s1, 32
      %v185 = vld [vmem:[%s184] sm:$0xf]
      %v186 = vld [vmem:[%s184 + $0x4] sm:$0xf]
      %v187 = vld [vmem:[%s184 + $0x8] sm:$0xf]
      %v188 = vld [vmem:[%s184 + $0xc] sm:$0xf]
      %v189 = vld [vmem:[%s184 + $0x10] sm:$0xf]
      %v190 = vld [vmem:[%s184 + $0x14] sm:$0xf]
      %v191 = vld [vmem:[%s184 + $0x18] sm:$0xf]
      %v192 = vld [vmem:[%s184 + $0x1c] sm:$0xf]
      %194 = vrot.lane.b32.xlu0 %v175, 120
      %v195 = vpop.permute.xlu0 %194
      %v204 = vunpack.c.l.b16 %v185
      %v205 = vunpack.c.l.b16 %v186
      %v206 = vunpack.c.l.b16 %v187
      %v207 = vunpack.c.l.b16 %v188
      %v208 = vunpack.c.l.b16 %v189
      %v209 = vunpack.c.l.b16 %v190
      %v210 = vunpack.c.l.b16 %v191
      %v211 = vunpack.c.l.b16 %v192
      %v212 = vpack.c.b16 %v205, %v204
      %v213 = vpack.c.b16 %v207, %v206
      %v214 = vpack.c.b16 %v209, %v208
      %v215 = vpack.c.b16 %v211, %v210
      %vm220 = vcmask 523264
      %v222 = vsel %vm220, %v195, 0
      %224 = vmatpush.bf16.msra.mxu0 0
      %225 = vmatpush.bf16.msra.mxu0 0
      %226 = vmatpush.bf16.msra.mxu0 0
      %227 = vmatpush.bf16.msra.mxu0 0
      %228 = vmatpush.bf16.msra.mxu0 %v215
      %229 = vmatpush.bf16.msra.mxu0 %v214
      %230 = vmatpush.bf16.msra.mxu0 %v213
      %231 = vmatpush.bf16.msra.mxu0 %v212
      %232 = vmatmul.bf16.gmra.mxu0 %v222
      %v233 = vpop.f32.mrf.mxu0
      %v234 = vadd.f32 0.0, %v233
      %v235 = vpop.f32.mrf.mxu0
      %v236 = vadd.f32 0.0, %v235
      %237 = vdwg.mxu0
      %v246 = vunpack.c.l.b16 %v176
      %v247 = vunpack.c.l.b16 %v177
      %v248 = vunpack.c.l.b16 %v178
      %v249 = vunpack.c.l.b16 %v179
      %v250 = vunpack.c.l.b16 %v180
      %v251 = vunpack.c.l.b16 %v181
      %v252 = vunpack.c.l.b16 %v182
      %v253 = vunpack.c.l.b16 %v183
      %v254 = vpack.c.b16 %v247, %v246
      %v255 = vpack.c.b16 %v249, %v248
      %v256 = vpack.c.b16 %v251, %v250
      %v257 = vpack.c.b16 %v253, %v252
      %v263 = vsel %vm220, %v175, 0
      %265 = vmatpush.bf16.msra.mxu0 0
      %266 = vmatpush.bf16.msra.mxu0 0
      %267 = vmatpush.bf16.msra.mxu0 0
      %268 = vmatpush.bf16.msra.mxu0 0
      %269 = vmatpush.bf16.msra.mxu0 %v257
      %270 = vmatpush.bf16.msra.mxu0 %v256
      %271 = vmatpush.bf16.msra.mxu0 %v255
      %272 = vmatpush.bf16.msra.mxu0 %v254
      %273 = vmatmul.bf16.gmra.mxu0 %v263
      %v274 = vpop.f32.mrf.mxu0
      %v275 = vadd.f32 %v234, %v274
      %v276 = vpop.f32.mrf.mxu0
      %v277 = vadd.f32 %v236, %v276
      %278 = vdwg.mxu0
      %s279 = scalar_lea.vmem %s1, 64
      %v280 = vld [vmem:[%s279] sm:$0xf]
      %v281 = vld [vmem:[%s279 + $0x4] sm:$0xf]
      %v282 = vld [vmem:[%s279 + $0x8] sm:$0xf]
      %v283 = vld [vmem:[%s279 + $0xc] sm:$0xf]
      %v284 = vld [vmem:[%s279 + $0x10] sm:$0xf]
      %v285 = vld [vmem:[%s279 + $0x14] sm:$0xf]
      %v286 = vld [vmem:[%s279 + $0x18] sm:$0xf]
      %v287 = vld [vmem:[%s279 + $0x1c] sm:$0xf]
      %288 = vrot.lane.b32.xlu0 %v175, 112
      %v289 = vpop.permute.xlu0 %288
      %v298 = vunpack.c.l.b16 %v280
      %v299 = vunpack.c.l.b16 %v281
      %v300 = vunpack.c.l.b16 %v282
      %v301 = vunpack.c.l.b16 %v283
      %v302 = vunpack.c.l.b16 %v284
      %v303 = vunpack.c.l.b16 %v285
      %v304 = vunpack.c.l.b16 %v286
      %v305 = vunpack.c.l.b16 %v287
      %v306 = vpack.c.b16 %v299, %v298
      %v307 = vpack.c.b16 %v301, %v300
      %v308 = vpack.c.b16 %v303, %v302
      %v309 = vpack.c.b16 %v305, %v304
      %v315 = vsel %vm220, %v289, 0
      %317 = vmatpush.bf16.msra.mxu0 0
      %318 = vmatpush.bf16.msra.mxu0 0
      %319 = vmatpush.bf16.msra.mxu0 0
      %320 = vmatpush.bf16.msra.mxu0 0
      %321 = vmatpush.bf16.msra.mxu0 %v309
      %322 = vmatpush.bf16.msra.mxu0 %v308
      %323 = vmatpush.bf16.msra.mxu0 %v307
      %324 = vmatpush.bf16.msra.mxu0 %v306
      %325 = vmatmul.bf16.gmra.mxu0 %v315
      %v326 = vpop.f32.mrf.mxu0
      %v327 = vadd.f32 0.0, %v326
      %v328 = vpop.f32.mrf.mxu0
      %v329 = vadd.f32 0.0, %v328
      %330 = vdwg.mxu0
      %v331 = vadd.f32 %v275, %v327
      %v332 = vadd.f32 %v277, %v329
      %v333 = vpack.c.bf16 %v174, %v174
      %s334 = scalar_lea.vmem %s1, 96
      %v335 = vld [vmem:[%s334] sm:$0xf]
      %v336 = vld [vmem:[%s334 + $0x4] sm:$0xf]
      %v337 = vld [vmem:[%s334 + $0x8] sm:$0xf]
      %v338 = vld [vmem:[%s334 + $0xc] sm:$0xf]
      %v339 = vld [vmem:[%s334 + $0x10] sm:$0xf]
      %v340 = vld [vmem:[%s334 + $0x14] sm:$0xf]
      %v341 = vld [vmem:[%s334 + $0x18] sm:$0xf]
      %v342 = vld [vmem:[%s334 + $0x1c] sm:$0xf]
      %vm343 = vsmask.f32 7424
      %v344 = vshrl.u32 %v175, 16
      %v346 = vshll.u32 %v175, 16
      %v348 = vrot.slane %v346, 1
      %v349 = vor.u32 %v344, %v348
      %v351 = vshll.u32 %v333, 16
      %v353 = vrot.slane %v351, 1
      %v354 = vsel %vm343, %v349, %v353
      %v363 = vunpack.c.l.b16 %v335
      %v364 = vunpack.c.l.b16 %v336
      %v365 = vunpack.c.l.b16 %v337
      %v366 = vunpack.c.l.b16 %v338
      %v367 = vunpack.c.l.b16 %v339
      %v368 = vunpack.c.l.b16 %v340
      %v369 = vunpack.c.l.b16 %v341
      %v370 = vunpack.c.l.b16 %v342
      %v371 = vpack.c.b16 %v364, %v363
      %v372 = vpack.c.b16 %v366, %v365
      %v373 = vpack.c.b16 %v368, %v367
      %v374 = vpack.c.b16 %v370, %v369
      %v380 = vsel %vm220, %v354, 0
      %382 = vmatpush.bf16.msra.mxu0 0
      %383 = vmatpush.bf16.msra.mxu0 0
      %384 = vmatpush.bf16.msra.mxu0 0
      %385 = vmatpush.bf16.msra.mxu0 0
      %386 = vmatpush.bf16.msra.mxu0 %v374
      %387 = vmatpush.bf16.msra.mxu0 %v373
      %388 = vmatpush.bf16.msra.mxu0 %v372
      %389 = vmatpush.bf16.msra.mxu0 %v371
      %390 = vmatmul.bf16.gmra.mxu0 %v380
      %v391 = vpop.f32.mrf.mxu0
      %v392 = vadd.f32 0.0, %v391
      %v393 = vpop.f32.mrf.mxu0
      %v394 = vadd.f32 0.0, %v393
      %395 = vdwg.mxu0
      %v396 = vadd.f32 %v331, %v392
      %v397 = vadd.f32 %v332, %v394
      %s398 = scalar_lea.vmem %s1, 128
      %v399 = vld [vmem:[%s398] sm:$0xf]
      %v400 = vld [vmem:[%s398 + $0x4] sm:$0xf]
      %v401 = vld [vmem:[%s398 + $0x8] sm:$0xf]
      %v402 = vld [vmem:[%s398 + $0xc] sm:$0xf]
      %v403 = vld [vmem:[%s398 + $0x10] sm:$0xf]
      %v404 = vld [vmem:[%s398 + $0x14] sm:$0xf]
      %v405 = vld [vmem:[%s398 + $0x18] sm:$0xf]
      %v406 = vld [vmem:[%s398 + $0x1c] sm:$0xf]
      %407 = vrot.lane.b32.xlu0 %v354, 120
      %v408 = vpop.permute.xlu0 %407
      %v417 = vunpack.c.l.b16 %v399
      %v418 = vunpack.c.l.b16 %v400
      %v419 = vunpack.c.l.b16 %v401
      %v420 = vunpack.c.l.b16 %v402
      %v421 = vunpack.c.l.b16 %v403
      %v422 = vunpack.c.l.b16 %v404
      %v423 = vunpack.c.l.b16 %v405
      %v424 = vunpack.c.l.b16 %v406
      %v425 = vpack.c.b16 %v418, %v417
      %v426 = vpack.c.b16 %v420, %v419
      %v427 = vpack.c.b16 %v422, %v421
      %v428 = vpack.c.b16 %v424, %v423
      %v434 = vsel %vm220, %v408, 0
      %436 = vmatpush.bf16.msra.mxu0 0
      %437 = vmatpush.bf16.msra.mxu0 0
      %438 = vmatpush.bf16.msra.mxu0 0
      %439 = vmatpush.bf16.msra.mxu0 0
      %440 = vmatpush.bf16.msra.mxu0 %v428
      %441 = vmatpush.bf16.msra.mxu0 %v427
      %442 = vmatpush.bf16.msra.mxu0 %v426
      %443 = vmatpush.bf16.msra.mxu0 %v425
      %444 = vmatmul.bf16.gmra.mxu0 %v434
      %v445 = vpop.f32.mrf.mxu0
      %v446 = vadd.f32 0.0, %v445
      %v447 = vpop.f32.mrf.mxu0
      %v448 = vadd.f32 0.0, %v447
      %449 = vdwg.mxu0
      %v450 = vadd.f32 %v396, %v446
      %v451 = vadd.f32 %v397, %v448
      %s452 = scalar_lea.vmem %s1, 160
      %v453 = vld [vmem:[%s452] sm:$0xf]
      %v454 = vld [vmem:[%s452 + $0x4] sm:$0xf]
      %v455 = vld [vmem:[%s452 + $0x8] sm:$0xf]
      %v456 = vld [vmem:[%s452 + $0xc] sm:$0xf]
      %v457 = vld [vmem:[%s452 + $0x10] sm:$0xf]
      %v458 = vld [vmem:[%s452 + $0x14] sm:$0xf]
      %v459 = vld [vmem:[%s452 + $0x18] sm:$0xf]
      %v460 = vld [vmem:[%s452 + $0x1c] sm:$0xf]
      %461 = vrot.lane.b32.xlu0 %v354, 112
      %v462 = vpop.permute.xlu0 %461
      %v471 = vunpack.c.l.b16 %v453
      %v472 = vunpack.c.l.b16 %v454
      %v473 = vunpack.c.l.b16 %v455
      %v474 = vunpack.c.l.b16 %v456
      %v475 = vunpack.c.l.b16 %v457
      %v476 = vunpack.c.l.b16 %v458
      %v477 = vunpack.c.l.b16 %v459
      %v478 = vunpack.c.l.b16 %v460
      %v479 = vpack.c.b16 %v472, %v471
      %v480 = vpack.c.b16 %v474, %v473
      %v481 = vpack.c.b16 %v476, %v475
      %v482 = vpack.c.b16 %v478, %v477
      %v488 = vsel %vm220, %v462, 0
      %490 = vmatpush.bf16.msra.mxu0 0
      %491 = vmatpush.bf16.msra.mxu0 0
      %492 = vmatpush.bf16.msra.mxu0 0
      %493 = vmatpush.bf16.msra.mxu0 0
      %494 = vmatpush.bf16.msra.mxu0 %v482
      %495 = vmatpush.bf16.msra.mxu0 %v481
      %496 = vmatpush.bf16.msra.mxu0 %v480
      %497 = vmatpush.bf16.msra.mxu0 %v479
      %498 = vmatmul.bf16.gmra.mxu0 %v488
      %v499 = vpop.f32.mrf.mxu0
      %v500 = vadd.f32 0.0, %v499
      %v501 = vpop.f32.mrf.mxu0
      %v502 = vadd.f32 0.0, %v501
      %503 = vdwg.mxu0
      %v504 = vadd.f32 %v450, %v500
      %v505 = vadd.f32 %v451, %v502
      %s506 = scalar_lea.vmem %s1, 192
      %v507 = vld [vmem:[%s506] sm:$0xf]
      %v508 = vld [vmem:[%s506 + $0x4] sm:$0xf]
      %v509 = vld [vmem:[%s506 + $0x8] sm:$0xf]
      %v510 = vld [vmem:[%s506 + $0xc] sm:$0xf]
      %v511 = vld [vmem:[%s506 + $0x10] sm:$0xf]
      %v512 = vld [vmem:[%s506 + $0x14] sm:$0xf]
      %v513 = vld [vmem:[%s506 + $0x18] sm:$0xf]
      %v514 = vld [vmem:[%s506 + $0x1c] sm:$0xf]
      %vm516 = vcmask 1046528
      %v517 = vrot.slane %v175, 1
      %v518 = vrot.slane %v333, 1
      %v519 = vsel %vm516, %v517, %v518
      %v528 = vunpack.c.l.b16 %v507
      %v529 = vunpack.c.l.b16 %v508
      %v530 = vunpack.c.l.b16 %v509
      %v531 = vunpack.c.l.b16 %v510
      %v532 = vunpack.c.l.b16 %v511
      %v533 = vunpack.c.l.b16 %v512
      %v534 = vunpack.c.l.b16 %v513
      %v535 = vunpack.c.l.b16 %v514
      %v536 = vpack.c.b16 %v529, %v528
      %v537 = vpack.c.b16 %v531, %v530
      %v538 = vpack.c.b16 %v533, %v532
      %v539 = vpack.c.b16 %v535, %v534
      %v545 = vsel %vm220, %v519, 0
      %547 = vmatpush.bf16.msra.mxu0 0
      %548 = vmatpush.bf16.msra.mxu0 0
      %549 = vmatpush.bf16.msra.mxu0 0
      %550 = vmatpush.bf16.msra.mxu0 0
      %551 = vmatpush.bf16.msra.mxu0 %v539
      %552 = vmatpush.bf16.msra.mxu0 %v538
      %553 = vmatpush.bf16.msra.mxu0 %v537
      %554 = vmatpush.bf16.msra.mxu0 %v536
      %555 = vmatmul.bf16.gmra.mxu0 %v545
      %v556 = vpop.f32.mrf.mxu0
      %v557 = vadd.f32 0.0, %v556
      %v558 = vpop.f32.mrf.mxu0
      %v559 = vadd.f32 0.0, %v558
      %560 = vdwg.mxu0
      %v561 = vadd.f32 %v504, %v557
      %v562 = vadd.f32 %v505, %v559
      %s563 = scalar_lea.vmem %s1, 224
      %v564 = vld [vmem:[%s563] sm:$0xf]
      %v565 = vld [vmem:[%s563 + $0x4] sm:$0xf]
      %v566 = vld [vmem:[%s563 + $0x8] sm:$0xf]
      %v567 = vld [vmem:[%s563 + $0xc] sm:$0xf]
      %v568 = vld [vmem:[%s563 + $0x10] sm:$0xf]
      %v569 = vld [vmem:[%s563 + $0x14] sm:$0xf]
      %v570 = vld [vmem:[%s563 + $0x18] sm:$0xf]
      %v571 = vld [vmem:[%s563 + $0x1c] sm:$0xf]
      %572 = vrot.lane.b32.xlu0 %v519, 120
      %v573 = vpop.permute.xlu0 %572
      %v582 = vunpack.c.l.b16 %v564
      %v583 = vunpack.c.l.b16 %v565
      %v584 = vunpack.c.l.b16 %v566
      %v585 = vunpack.c.l.b16 %v567
      %v586 = vunpack.c.l.b16 %v568
      %v587 = vunpack.c.l.b16 %v569
      %v588 = vunpack.c.l.b16 %v570
      %v589 = vunpack.c.l.b16 %v571
      %v590 = vpack.c.b16 %v583, %v582
      %v591 = vpack.c.b16 %v585, %v584
      %v592 = vpack.c.b16 %v587, %v586
      %v593 = vpack.c.b16 %v589, %v588
      %v599 = vsel %vm220, %v573, 0
      %601 = vmatpush.bf16.msra.mxu0 0
      %602 = vmatpush.bf16.msra.mxu0 0
      %603 = vmatpush.bf16.msra.mxu0 0
      %604 = vmatpush.bf16.msra.mxu0 0
      %605 = vmatpush.bf16.msra.mxu0 %v593
      %606 = vmatpush.bf16.msra.mxu0 %v592
      %607 = vmatpush.bf16.msra.mxu0 %v591
      %608 = vmatpush.bf16.msra.mxu0 %v590
      %609 = vmatmul.bf16.gmra.mxu0 %v599
      %v610 = vpop.f32.mrf.mxu0
      %v611 = vadd.f32 0.0, %v610
      %v612 = vpop.f32.mrf.mxu0
      %v613 = vadd.f32 0.0, %v612
      %614 = vdwg.mxu0
      %v615 = vadd.f32 %v561, %v611
      %v616 = vadd.f32 %v562, %v613
      %s617 = scalar_lea.vmem %s1, 256
      %v618 = vld [vmem:[%s617] sm:$0xf]
      %v619 = vld [vmem:[%s617 + $0x4] sm:$0xf]
      %v620 = vld [vmem:[%s617 + $0x8] sm:$0xf]
      %v621 = vld [vmem:[%s617 + $0xc] sm:$0xf]
      %v622 = vld [vmem:[%s617 + $0x10] sm:$0xf]
      %v623 = vld [vmem:[%s617 + $0x14] sm:$0xf]
      %v624 = vld [vmem:[%s617 + $0x18] sm:$0xf]
      %v625 = vld [vmem:[%s617 + $0x1c] sm:$0xf]
      %626 = vrot.lane.b32.xlu0 %v519, 112
      %v627 = vpop.permute.xlu0 %626
      %v636 = vunpack.c.l.b16 %v618
      %v637 = vunpack.c.l.b16 %v619
      %v638 = vunpack.c.l.b16 %v620
      %v639 = vunpack.c.l.b16 %v621
      %v640 = vunpack.c.l.b16 %v622
      %v641 = vunpack.c.l.b16 %v623
      %v642 = vunpack.c.l.b16 %v624
      %v643 = vunpack.c.l.b16 %v625
      %v644 = vpack.c.b16 %v637, %v636
      %v645 = vpack.c.b16 %v639, %v638
      %v646 = vpack.c.b16 %v641, %v640
      %v647 = vpack.c.b16 %v643, %v642
      %v653 = vsel %vm220, %v627, 0
      %655 = vmatpush.bf16.msra.mxu0 0
      %656 = vmatpush.bf16.msra.mxu0 0
      %657 = vmatpush.bf16.msra.mxu0 0
      %658 = vmatpush.bf16.msra.mxu0 0
      %659 = vmatpush.bf16.msra.mxu0 %v647
      %660 = vmatpush.bf16.msra.mxu0 %v646
      %661 = vmatpush.bf16.msra.mxu0 %v645
      %662 = vmatpush.bf16.msra.mxu0 %v644
      %663 = vmatmul.bf16.gmra.mxu0 %v653
      %v664 = vpop.f32.mrf.mxu0
      %v665 = vadd.f32 0.0, %v664
      %v666 = vpop.f32.mrf.mxu0
      %v667 = vadd.f32 0.0, %v666
      %668 = vdwg.mxu0
      %v669 = vadd.f32 %v615, %v665
      %v670 = vadd.f32 %v616, %v667
      %v671 = vld [vmem:[%s2] sm:$0x1]
      %v673 = vperm.slane %v671, 0
      %v675 = vadd.f32 %v669, %v673
      %v676 = vadd.f32 %v670, %v673
      %v677 = vmax.f32 %v675, 0.0
      %v678 = vmax.f32 %v676, 0.0
      %679 = vst [vmem:[%s170] sm:$0xff] %v677
      %680 = vst [vmem:[%s170 + $0x8] sm:$0xff] %v678
      %p681 = scmp.lt.s32.totalorder %s14, 1
      %s682 = scalar_select %p681, %s14, 1
      %s683 = smul.addr %s682, 2
      %s684 = smul.addr %s683, 8
      %s685 = scalar_lea.vmem %s3, %s684
      // Predicated region
      $region33: #{crdnn_forward.7} parent=31 // pred_check
        %p686 = pneg %p100
      $region34: #{crdnn_forward.7} parent=31 // pred_check_branch
        %688 = sbr.rel (%p686) target = $region36
      $region35: #{crdnn_forward.7} parent=31 // pred_region
        _
      $region36: #{crdnn_forward.7} parent=31 // pred_fallthru
        _
    $region32: #{crdnn_forward.7} parent=5 // pred_fallthru
      _
    %p689 = scmp.le.s32.totalorder 2, %s9
    // Predicated region
    $region37: #{crdnn_forward.7} parent=5 // pred_check
      %p690 = pneg %p689
    $region38: #{crdnn_forward.7} parent=5 // pred_check_branch
      %692 = sbr.rel (%p690) target = $region40
    $region39: #{crdnn_forward.7} parent=5 // pred_region
      %s693 = ssub.s32 %s9, 2
      // Predicated region
      $region41: #{crdnn_forward.7} parent=39 // pred_check
        %p694 = pneg %p106
      $region42: #{crdnn_forward.7} parent=39 // pred_check_branch
        %696 = sbr.rel (%p694) target = $region44
      $region43: #{crdnn_forward.7} parent=39 // pred_region
        %p697 = scmp.lt.s32.totalorder %s15, 1
        %s698 = scalar_select %p697, %s15, 1
        %s699 = smul.addr %s698, 2
        %s700 = smul.addr %s699, 8
        %s701 = scalar_lea.vmem %s3, %s700
      $region44: #{crdnn_forward.7} parent=39 // pred_fallthru
        _
    $region40: #{crdnn_forward.7} parent=5 // pred_fallthru
      _
  $region6: #{crdnn_forward.7} parent=0 // loop_footer
    %s13 = sadd.s32 1, %s9
  $region7: #{crdnn_forward.7} parent=0 // loop_footer_branch
    %8 = sbr.rel target = $region3
  $region8: #{crdnn_forward.7} parent=0 // loop_exit
    _

// kernel: crdnn_forward.8
$region0: #{crdnn_forward.8}
  #allocation0 [shape = 'u32[]', space=smem, size = 0x4, offset = 0x4, fixed_abs, tag = 'smem constant byte address 0x4 - core index']
  #allocation1 [shape = 'u32[72,128]{1,0:T(1,128)}', space=vmem, size = 0x9000, scoped, tag = 'internal scratch']
  %s0 = inlined_call_operand.vmem [shape: bf16[32,64], index: 0, kind: input, shape index: {}]
  %s1 = inlined_call_operand.vmem [shape: bf16[64,128], index: 1, kind: input, shape index: {}]
  %s2 = inlined_call_operand.vmem [shape: f32[1,128], index: 2, kind: input, shape index: {}]
  %s3 = inlined_call_operand.vmem [shape: f32[32,128], index: 3, kind: output, shape index: {}]
  %s4 = sld [smem:[#allocation0]]
  $region22: #{crdnn_forward.8} parent=0
    _
  %s6 = ssub.s32 1, %s4
  %s7 = scalar_select 0, %s6, %s4
  // Predicated region
  $region2: #{crdnn_forward.8} parent=0 // pred_check
    _
  $region3: #{crdnn_forward.8} parent=0 // pred_check_branch
    %9 = sbr.rel (0) target = $region5
  $region4: #{crdnn_forward.8} parent=0 // pred_region
    _
  $region5: #{crdnn_forward.8} parent=0 // pred_fallthru
    _
  // Predicated region
  $region6: #{crdnn_forward.8} parent=0 // pred_check
    _
  $region7: #{crdnn_forward.8} parent=0 // pred_check_branch
    %11 = sbr.rel (0) target = $region9
  $region8: #{crdnn_forward.8} parent=0 // pred_region
    _
  $region9: #{crdnn_forward.8} parent=0 // pred_fallthru
    _
  // Predicated region
  $region10: #{crdnn_forward.8} parent=0 // pred_check
    _
  $region11: #{crdnn_forward.8} parent=0 // pred_check_branch
    %13 = sbr.rel (0) target = $region13
  $region12: #{crdnn_forward.8} parent=0 // pred_region
    _
  $region13: #{crdnn_forward.8} parent=0 // pred_fallthru
    _
  %v15 = vld [vmem:[%s0] sm:$0xf]
  %v16 = vld [vmem:[%s0 + $0x4] sm:$0xf]
  %v17 = vld [vmem:[%s0 + $0x8] sm:$0xf]
  %v18 = vld [vmem:[%s0 + $0xc] sm:$0xf]
  %v19 = vld [vmem:[%s1] sm:$0xf]
  %v20 = vld [vmem:[%s1 + $0x4] sm:$0xf]
  %v21 = vld [vmem:[%s1 + $0x8] sm:$0xf]
  %v22 = vld [vmem:[%s1 + $0xc] sm:$0xf]
  %v23 = vld [vmem:[%s1 + $0x10] sm:$0xf]
  %v24 = vld [vmem:[%s1 + $0x14] sm:$0xf]
  %v25 = vld [vmem:[%s1 + $0x18] sm:$0xf]
  %v26 = vld [vmem:[%s1 + $0x1c] sm:$0xf]
  %v27 = vld [vmem:[%s2] sm:$0x1]
  %v29 = vperm.slane %v27, 0
  %v35 = vunpack.c.l.b16 %v15
  %v36 = vunpack.c.l.b16 %v16
  %v37 = vunpack.c.l.b16 %v17
  %v38 = vunpack.c.l.b16 %v18
  %v39 = vpack.c.b16 %v36, %v35
  %v40 = vpack.c.b16 %v38, %v37
  %v49 = vunpack.c.l.b16 %v19
  %v50 = vunpack.c.l.b16 %v20
  %v51 = vunpack.c.l.b16 %v21
  %v52 = vunpack.c.l.b16 %v22
  %v53 = vunpack.c.l.b16 %v23
  %v54 = vunpack.c.l.b16 %v24
  %v55 = vunpack.c.l.b16 %v25
  %v56 = vunpack.c.l.b16 %v26
  %v57 = vpack.c.b16 %v50, %v49
  %v58 = vpack.c.b16 %v52, %v51
  %v59 = vpack.c.b16 %v54, %v53
  %v60 = vpack.c.b16 %v56, %v55
  %vm65 = vcmask 523264
  %v67 = vsel %vm65, %v39, 0
  %v70 = vsel %vm65, %v40, 0
  %72 = vmatpush.bf16.msra.mxu0 0
  %73 = vmatpush.bf16.msra.mxu0 0
  %74 = vmatpush.bf16.msra.mxu0 0
  %75 = vmatpush.bf16.msra.mxu0 0
  %76 = vmatpush.bf16.msra.mxu0 %v60
  %77 = vmatpush.bf16.msra.mxu0 %v59
  %78 = vmatpush.bf16.msra.mxu0 %v58
  %79 = vmatpush.bf16.msra.mxu0 %v57
  %80 = vmatmul.bf16.gmra.mxu0 %v67
  %v81 = vpop.f32.mrf.mxu0
  %v82 = vadd.f32 %v29, %v81
  %v83 = vpop.f32.mrf.mxu0
  %v84 = vadd.f32 %v29, %v83
  %85 = vmatmul.bf16.gmra.mxu0 %v70
  %v86 = vpop.f32.mrf.mxu0
  %v87 = vadd.f32 %v29, %v86
  %v88 = vpop.f32.mrf.mxu0
  %v89 = vadd.f32 %v29, %v88
  %90 = vdwg.mxu0
  %v91 = vmax.f32 %v82, 0.0
  %v92 = vmax.f32 %v84, 0.0
  %v93 = vmax.f32 %v87, 0.0
  %v94 = vmax.f32 %v89, 0.0
  %95 = vst [vmem:[%s3] sm:$0xff] %v91
  %96 = vst [vmem:[%s3 + $0x8] sm:$0xff] %v92
  %97 = vst [vmem:[%s3 + $0x10] sm:$0xff] %v93
  %98 = vst [vmem:[%s3 + $0x18] sm:$0xff] %v94
  // Predicated region
  $region14: #{crdnn_forward.8} parent=0 // pred_check
    _
  $region15: #{crdnn_forward.8} parent=0 // pred_check_branch
    %100 = sbr.rel (0) target = $region17
  $region16: #{crdnn_forward.8} parent=0 // pred_region
    _
  $region17: #{crdnn_forward.8} parent=0 // pred_fallthru
    _
  // Predicated region
  $region18: #{crdnn_forward.8} parent=0 // pred_check
    _
  $region19: #{crdnn_forward.8} parent=0 // pred_check_branch
    %102 = sbr.rel (0) target = $region21
  $region20: #{crdnn_forward.8} parent=0 // pred_region
    _
  $region21: #{crdnn_forward.8} parent=0 // pred_fallthru
    _

// kernel: crdnn_forward.9
$region0: #{crdnn_forward.9}
  #allocation0 [shape = 'u32[]', space=smem, size = 0x4, offset = 0x4, fixed_abs, tag = 'smem constant byte address 0x4 - core index']
  #allocation1 [shape = 'u32[72,128]{1,0:T(1,128)}', space=vmem, size = 0x9000, scoped, tag = 'internal scratch']
  %s0 = inlined_call_operand.vmem [shape: bf16[16,2,32], index: 0, kind: input, shape index: {}]
  %s1 = inlined_call_operand.vmem [shape: bf16[32,96], index: 1, kind: input, shape index: {}]
  %s2 = inlined_call_operand.vmem [shape: f32[1,96], index: 2, kind: input, shape index: {}]
  %s3 = inlined_call_operand.vmem [shape: bf16[32,96], index: 3, kind: input, shape index: {}]
  %s4 = inlined_call_operand.vmem [shape: f32[1,96], index: 4, kind: input, shape index: {}]
  %s5 = inlined_call_operand.vmem [shape: bf16[32,32], index: 5, kind: input, shape index: {}]
  %s6 = inlined_call_operand.vmem [shape: f32[1,32], index: 6, kind: input, shape index: {}]
  %s7 = inlined_call_operand.vmem [shape: f32[16,2,32], index: 7, kind: output, shape index: {}]
  %s8 = sld [smem:[#allocation0]]
  $region45: #{crdnn_forward.9} parent=0
    _
  %s10 = ssub.s32 1, %s8
  %s11 = scalar_select 0, %s10, %s8
  // Predicated region
  $region2: #{crdnn_forward.9} parent=0 // pred_check
    _
  $region3: #{crdnn_forward.9} parent=0 // pred_check_branch
    %13 = sbr.rel (0) target = $region5
  $region4: #{crdnn_forward.9} parent=0 // pred_region
    _
  $region5: #{crdnn_forward.9} parent=0 // pred_fallthru
    _
  // Predicated region
  $region6: #{crdnn_forward.9} parent=0 // pred_check
    _
  $region7: #{crdnn_forward.9} parent=0 // pred_check_branch
    %15 = sbr.rel (0) target = $region9
  $region8: #{crdnn_forward.9} parent=0 // pred_region
    _
  $region9: #{crdnn_forward.9} parent=0 // pred_fallthru
    _
  // Predicated region
  $region10: #{crdnn_forward.9} parent=0 // pred_check
    _
  $region11: #{crdnn_forward.9} parent=0 // pred_check_branch
    %17 = sbr.rel (0) target = $region13
  $region12: #{crdnn_forward.9} parent=0 // pred_region
    _
  $region13: #{crdnn_forward.9} parent=0 // pred_fallthru
    _
  // Predicated region
  $region14: #{crdnn_forward.9} parent=0 // pred_check
    _
  $region15: #{crdnn_forward.9} parent=0 // pred_check_branch
    %19 = sbr.rel (0) target = $region17
  $region16: #{crdnn_forward.9} parent=0 // pred_region
    _
  $region17: #{crdnn_forward.9} parent=0 // pred_fallthru
    _
  // Predicated region
  $region18: #{crdnn_forward.9} parent=0 // pred_check
    _
  $region19: #{crdnn_forward.9} parent=0 // pred_check_branch
    %21 = sbr.rel (0) target = $region21
  $region20: #{crdnn_forward.9} parent=0 // pred_region
    _
  $region21: #{crdnn_forward.9} parent=0 // pred_fallthru
    _
  // Predicated region
  $region22: #{crdnn_forward.9} parent=0 // pred_check
    _
  $region23: #{crdnn_forward.9} parent=0 // pred_check_branch
    %23 = sbr.rel (0) target = $region25
  $region24: #{crdnn_forward.9} parent=0 // pred_region
    _
  $region25: #{crdnn_forward.9} parent=0 // pred_fallthru
    _
  // Predicated region
  $region26: #{crdnn_forward.9} parent=0 // pred_check
    _
  $region27: #{crdnn_forward.9} parent=0 // pred_check_branch
    %25 = sbr.rel (0) target = $region29
  $region28: #{crdnn_forward.9} parent=0 // pred_region
    _
  $region29: #{crdnn_forward.9} parent=0 // pred_fallthru
    _
  %v27 = vld [vmem:[%s1] sm:$0xf]
  %v28 = vld [vmem:[%s1 + $0x4] sm:$0xf]
  %v29 = vld [vmem:[%s1 + $0x8] sm:$0xf]
  %v30 = vld [vmem:[%s1 + $0xc] sm:$0xf]
  %v31 = vld [vmem:[%s2] sm:$0x1]
  %v32 = vld [vmem:[%s3] sm:$0xf]
  %v33 = vld [vmem:[%s3 + $0x4] sm:$0xf]
  %v34 = vld [vmem:[%s3 + $0x8] sm:$0xf]
  %v35 = vld [vmem:[%s3 + $0xc] sm:$0xf]
  %v36 = vld [vmem:[%s4] sm:$0x1]
  %v37 = vld [vmem:[%s5] sm:$0xf]
  %v38 = vld [vmem:[%s5 + $0x4] sm:$0xf]
  %v39 = vld [vmem:[%s5 + $0x8] sm:$0xf]
  %v40 = vld [vmem:[%s5 + $0xc] sm:$0xf]
  %v41 = vld [vmem:[%s6] sm:$0x1]
  loop: start=0, step=1, limit=16
  $region30: #{crdnn_forward.9} parent=0 // loop_pre_header
    _
  $region31: #{crdnn_forward.9} parent=0 // loop_header
    %s43 = sphi 0, %s47
    %p44 = scmp.ge.s32.totalorder %s43, 16
    %v48 = vphi 0.0, %v156
  $region32: #{crdnn_forward.9} parent=0 // loop_header_branch
    %46 = sbr.rel (%p44) target = $region36
  $region33: #{crdnn_forward.9} parent=0 // loop_body
    %s49 = scalar_lea.vmem %s0, %s43
    %v50 = vld [vmem:[%s49] sm:$0x1]
    %v52 = vperm.slane %v31, 0
    %v58 = vunpack.c.l.b16 %v27
    %v59 = vunpack.c.l.b16 %v28
    %v60 = vunpack.c.l.b16 %v29
    %v61 = vunpack.c.l.b16 %v30
    %v62 = vpack.c.b16 %v59, %v58
    %v63 = vpack.c.b16 %v61, %v60
    %vm66 = vcmask 261120
    %v68 = vsel %vm66, %v50, 0
    %70 = vmatpush.bf16.msra.mxu0 0
    %71 = vmatpush.bf16.msra.mxu0 0
    %72 = vmatpush.bf16.msra.mxu0 0
    %73 = vmatpush.bf16.msra.mxu0 0
    %74 = vmatpush.bf16.msra.mxu0 0
    %75 = vmatpush.bf16.msra.mxu0 0
    %76 = vmatpush.bf16.msra.mxu0 %v63
    %77 = vmatpush.bf16.msra.mxu0 %v62
    %78 = vmatmul.bf16.gmra.mxu0 %v68
    %v79 = vpop.f32.mrf.mxu0
    %v80 = vadd.f32 %v52, %v79
    %v81 = vpop.f32.mrf.mxu0
    %82 = vdwg.mxu0
    %v83 = vpack.c.bf16 %v48, %v48
    %v85 = vperm.slane %v36, 0
    %88 = vrot.lane.b32.xlu0 %v83, 96
    %v89 = vpop.permute.xlu0 %88
    %v94 = vunpack.c.l.b16 %v32
    %v95 = vunpack.c.l.b16 %v33
    %v96 = vunpack.c.l.b16 %v34
    %v97 = vunpack.c.l.b16 %v35
    %v98 = vpack.c.b16 %v95, %v94
    %v99 = vpack.c.b16 %v97, %v96
    %v103 = vsel %vm66, %v89, 0
    %105 = vmatpush.bf16.msra.mxu0 0
    %106 = vmatpush.bf16.msra.mxu0 0
    %107 = vmatpush.bf16.msra.mxu0 0
    %108 = vmatpush.bf16.msra.mxu0 0
    %109 = vmatpush.bf16.msra.mxu0 0
    %110 = vmatpush.bf16.msra.mxu0 0
    %111 = vmatpush.bf16.msra.mxu0 %v99
    %112 = vmatpush.bf16.msra.mxu0 %v98
    %113 = vmatmul.bf16.gmra.mxu0 %v103
    %v114 = vpop.f32.mrf.mxu0
    %v115 = vadd.f32 %v85, %v114
    %v116 = vpop.f32.mrf.mxu0
    %117 = vdwg.mxu0
    %v118 = vadd.f32 %v80, %v115
    %v119 = vsub.f32 0.0, %v118
    %v120 = vmul.f32 %v119, 1.442695
    %v121 = vpow.pop %v120
    %v122 = vadd.f32 %v121, 1.0
    %v123 = vrcp.pop %v122
    %v124 = vmul.f32 %v122, %v123
    %v125 = vsub.f32 1.0, %v124
    %v126 = vmul.f32 %v123, %v125
    %v127 = vadd.f32 %v123, %v126
    %vm128 = vweird.f32 %v122
    %vm129 = vweird.f32 %v123
    %vm130 = vmor %vm128, %vm129
    %v131 = vsel %vm130, %v123, %v127
    %v132 = vand.u32 2147483647, %v122
    %vm133 = vcmp.eq.f32.partialorder %v132, 8.507059e+37
    %v134 = vand.u32 %v122, 2147483648
    %v135 = vor.u32 1.1754944e-38, %v134
    %v136 = vsel %vm133, %v135, %v131
    %v137 = vmul.f32 1.0, %v136
    %139 = vrot.lane.b32.xlu0 %v115, 64
    %v140 = vpop.permute.xlu0 %139
    %v142 = vmul.f32 %v137, %v140
    %144 = vrot.lane.b32.xlu0 %v142, 64
    %v145 = vpop.permute.xlu0 %144
    %v147 = vadd.f32 %v80, %v145
    %v148 = vtanh.pop %v147
    %v149 = vsub.f32 1.0, %v137
    %151 = vrot.lane.b32.xlu0 %v148, 96
    %v152 = vpop.permute.xlu0 %151
    %v154 = vmul.f32 %v149, %v152
    %v155 = vmul.f32 %v137, %v48
    %v156 = vadd.f32 %v154, %v155
    %v157 = vpack.c.bf16 %v156, %v156
    %v159 = vperm.slane %v41, 0
    %162 = vrot.lane.b32.xlu0 %v157, 96
    %v163 = vpop.permute.xlu0 %162
    %v168 = vunpack.c.l.b16 %v37
    %v169 = vunpack.c.l.b16 %v38
    %v170 = vunpack.c.l.b16 %v39
    %v171 = vunpack.c.l.b16 %v40
    %v172 = vpack.c.b16 %v169, %v168
    %v173 = vpack.c.b16 %v171, %v170
    %v177 = vsel %vm66, %v163, 0
    %179 = vmatpush.bf16.msra.mxu0 0
    %180 = vmatpush.bf16.msra.mxu0 0
    %181 = vmatpush.bf16.msra.mxu0 0
    %182 = vmatpush.bf16.msra.mxu0 0
    %183 = vmatpush.bf16.msra.mxu0 0
    %184 = vmatpush.bf16.msra.mxu0 0
    %185 = vmatpush.bf16.msra.mxu0 %v173
    %186 = vmatpush.bf16.msra.mxu0 %v172
    %187 = vmatmul.bf16.gmra.mxu0 %v177
    %v188 = vpop.f32.mrf.mxu0
    %v189 = vadd.f32 %v159, %v188
    %v190 = vpop.f32.mrf.mxu0
    %191 = vdwg.mxu0
    %v192 = vmax.f32 %v189, 0.0
    %s193 = smul.u32 %s43, 2
    %s194 = scalar_lea.vmem %s7, %s193
    %vm195 = vcmask 254976
    %196 = vst.msk [vmem:[%s194] sm:$0x3] %vm195, %v192
  $region34: #{crdnn_forward.9} parent=0 // loop_footer
    %s47 = sadd.s32 1, %s43
  $region35: #{crdnn_forward.9} parent=0 // loop_footer_branch
    %42 = sbr.rel target = $region31
  $region36: #{crdnn_forward.9} parent=0 // loop_exit
    _
  // Predicated region
  $region37: #{crdnn_forward.9} parent=0 // pred_check
    _
  $region38: #{crdnn_forward.9} parent=0 // pred_check_branch
    %198 = sbr.rel (0) target = $region40
  $region39: #{crdnn_forward.9} parent=0 // pred_region
    _
  $region40: #{crdnn_forward.9} parent=0 // pred_fallthru
    _
  // Predicated region
  $region41: #{crdnn_forward.9} parent=0 // pred_check
    _
  $region42: #{crdnn_forward.9} parent=0 // pred_check_branch
    %200 = sbr.rel (0) target = $region44
  $region43: #{crdnn_forward.9} parent=0 // pred_region
    _
  $region44: #{crdnn_forward.9} parent=0 // pred_fallthru
    _

// kernel: crdnn_forward.10
$region0: #{crdnn_forward.10}
  #allocation0 [shape = 'u32[]', space=smem, size = 0x4, offset = 0x4, fixed_abs, tag = 'smem constant byte address 0x4 - core index']
  #allocation1 [shape = 'u32[72,128]{1,0:T(1,128)}', space=vmem, size = 0x9000, scoped, tag = 'internal scratch']
  %s0 = inlined_call_operand.vmem [shape: bf16[32,32], index: 0, kind: input, shape index: {}]
  %s1 = inlined_call_operand.vmem [shape: bf16[32,128], index: 1, kind: input, shape index: {}]
  %s2 = inlined_call_operand.vmem [shape: f32[1,128], index: 2, kind: input, shape index: {}]
  %s3 = inlined_call_operand.vmem [shape: f32[32,128], index: 3, kind: output, shape index: {}]
  %s4 = sld [smem:[#allocation0]]
  $region22: #{crdnn_forward.10} parent=0
    _
  %s6 = ssub.s32 1, %s4
  %s7 = scalar_select 0, %s6, %s4
  // Predicated region
  $region2: #{crdnn_forward.10} parent=0 // pred_check
    _
  $region3: #{crdnn_forward.10} parent=0 // pred_check_branch
    %9 = sbr.rel (0) target = $region5
  $region4: #{crdnn_forward.10} parent=0 // pred_region
    _
  $region5: #{crdnn_forward.10} parent=0 // pred_fallthru
    _
  // Predicated region
  $region6: #{crdnn_forward.10} parent=0 // pred_check
    _
  $region7: #{crdnn_forward.10} parent=0 // pred_check_branch
    %11 = sbr.rel (0) target = $region9
  $region8: #{crdnn_forward.10} parent=0 // pred_region
    _
  $region9: #{crdnn_forward.10} parent=0 // pred_fallthru
    _
  // Predicated region
  $region10: #{crdnn_forward.10} parent=0 // pred_check
    _
  $region11: #{crdnn_forward.10} parent=0 // pred_check_branch
    %13 = sbr.rel (0) target = $region13
  $region12: #{crdnn_forward.10} parent=0 // pred_region
    _
  $region13: #{crdnn_forward.10} parent=0 // pred_fallthru
    _
  %v15 = vld [vmem:[%s0] sm:$0xf]
  %v16 = vld [vmem:[%s0 + $0x4] sm:$0xf]
  %v17 = vld [vmem:[%s0 + $0x8] sm:$0xf]
  %v18 = vld [vmem:[%s0 + $0xc] sm:$0xf]
  %v19 = vld [vmem:[%s1] sm:$0xf]
  %v20 = vld [vmem:[%s1 + $0x4] sm:$0xf]
  %v21 = vld [vmem:[%s1 + $0x8] sm:$0xf]
  %v22 = vld [vmem:[%s1 + $0xc] sm:$0xf]
  %v23 = vld [vmem:[%s2] sm:$0x1]
  %v25 = vperm.slane %v23, 0
  %v31 = vunpack.c.l.b16 %v15
  %v32 = vunpack.c.l.b16 %v16
  %v33 = vunpack.c.l.b16 %v17
  %v34 = vunpack.c.l.b16 %v18
  %v35 = vpack.c.b16 %v32, %v31
  %v36 = vpack.c.b16 %v34, %v33
  %v41 = vunpack.c.l.b16 %v19
  %v42 = vunpack.c.l.b16 %v20
  %v43 = vunpack.c.l.b16 %v21
  %v44 = vunpack.c.l.b16 %v22
  %v45 = vpack.c.b16 %v42, %v41
  %v46 = vpack.c.b16 %v44, %v43
  %vm49 = vcmask 261120
  %v51 = vsel %vm49, %v35, 0
  %v54 = vsel %vm49, %v36, 0
  %56 = vmatpush.bf16.msra.mxu0 0
  %57 = vmatpush.bf16.msra.mxu0 0
  %58 = vmatpush.bf16.msra.mxu0 0
  %59 = vmatpush.bf16.msra.mxu0 0
  %60 = vmatpush.bf16.msra.mxu0 0
  %61 = vmatpush.bf16.msra.mxu0 0
  %62 = vmatpush.bf16.msra.mxu0 %v46
  %63 = vmatpush.bf16.msra.mxu0 %v45
  %64 = vmatmul.bf16.gmra.mxu0 %v51
  %v65 = vpop.f32.mrf.mxu0
  %v66 = vadd.f32 %v25, %v65
  %v67 = vpop.f32.mrf.mxu0
  %v68 = vadd.f32 %v25, %v67
  %69 = vmatmul.bf16.gmra.mxu0 %v54
  %v70 = vpop.f32.mrf.mxu0
  %v71 = vadd.f32 %v25, %v70
  %v72 = vpop.f32.mrf.mxu0
  %v73 = vadd.f32 %v25, %v72
  %74 = vdwg.mxu0
  %75 = vmax.xlane.f32.xlu0 %v66
  %v76 = vpop.xlane.xlu0 %75
  %77 = vmax.xlane.f32.xlu0 %v68
  %v78 = vpop.xlane.xlu0 %77
  %79 = vmax.xlane.f32.xlu0 %v71
  %v80 = vpop.xlane.xlu0 %79
  %81 = vmax.xlane.f32.xlu0 %v73
  %v82 = vpop.xlane.xlu0 %81
  %v83 = vsub.f32 %v66, %v76
  %v84 = vsub.f32 %v68, %v78
  %v85 = vsub.f32 %v71, %v80
  %v86 = vsub.f32 %v73, %v82
  %v87 = vmul.f32 %v83, 1.442695
  %v88 = vpow.pop %v87
  %v89 = vmul.f32 %v84, 1.442695
  %v90 = vpow.pop %v89
  %v91 = vmul.f32 %v85, 1.442695
  %v92 = vpow.pop %v91
  %v93 = vmul.f32 %v86, 1.442695
  %v94 = vpow.pop %v93
  %95 = vadd.xlane.f32.xlu0 %v88
  %v96 = vpop.xlane.xlu0 %95
  %97 = vadd.xlane.f32.xlu0 %v90
  %v98 = vpop.xlane.xlu0 %97
  %99 = vadd.xlane.f32.xlu0 %v92
  %v100 = vpop.xlane.xlu0 %99
  %101 = vadd.xlane.f32.xlu0 %v94
  %v102 = vpop.xlane.xlu0 %101
  %v103 = vlog2.pop %v96
  %v104 = vmul.f32 %v103, 0.6931472
  %v105 = vlog2.pop %v98
  %v106 = vmul.f32 %v105, 0.6931472
  %v107 = vlog2.pop %v100
  %v108 = vmul.f32 %v107, 0.6931472
  %v109 = vlog2.pop %v102
  %v110 = vmul.f32 %v109, 0.6931472
  %v111 = vsub.f32 %v83, %v104
  %v112 = vsub.f32 %v84, %v106
  %v113 = vsub.f32 %v85, %v108
  %v114 = vsub.f32 %v86, %v110
  %115 = vst [vmem:[%s3] sm:$0xff] %v111
  %116 = vst [vmem:[%s3 + $0x8] sm:$0xff] %v112
  %117 = vst [vmem:[%s3 + $0x10] sm:$0xff] %v113
  %118 = vst [vmem:[%s3 + $0x18] sm:$0xff] %v114
  // Predicated region
  $region14: #{crdnn_forward.10} parent=0 // pred_check
    _
  $region15: #{crdnn_forward.10} parent=0 // pred_check_branch
    %120 = sbr.rel (0) target = $region17
  $region16: #{crdnn_forward.10} parent=0 // pred_region
    _
  $region17: #{crdnn_forward.10} parent=0 // pred_fallthru
    _
  // Predicated region
  $region18: #{crdnn_forward.10} parent=0 // pred_check
    _
  $region19: #{crdnn_forward.10} parent=0 // pred_check_branch
    %122 = sbr.rel (0) target = $region21
  $region20: #{crdnn_forward.10} parent=0 // pred_region
    _
  $region21: #{crdnn_forward.10} parent=0 // pred_fallthru
    _

// kernel: crdnn_forward.11
$region0: #{crdnn_forward.11}
  #allocation0 [shape = 'u32[]', space=smem, size = 0x4, offset = 0x4, fixed_abs, tag = 'smem constant byte address 0x4 - core index']
  #allocation1 [shape = 'u32[72,128]{1,0:T(1,128)}', space=vmem, size = 0x9000, scoped, tag = 'internal scratch']
  %s0 = inlined_call_operand.vmem [shape: bf16[2,7,32], index: 0, kind: input, shape index: {}]
  %s1 = inlined_call_operand.vmem [shape: bf16[2,16,32], index: 1, kind: input, shape index: {}]
  %s2 = inlined_call_operand.vmem [shape: bf16[2,32,16], index: 2, kind: input, shape index: {}]
  %s3 = inlined_call_operand.vmem [shape: bf16[32,32], index: 3, kind: input, shape index: {}]
  %s4 = inlined_call_operand.vmem [shape: f32[1,32], index: 4, kind: input, shape index: {}]
  %s5 = inlined_call_operand.vmem [shape: bf16[32,32], index: 5, kind: input, shape index: {}]
  %s6 = inlined_call_operand.vmem [shape: bf16[32,32], index: 6, kind: input, shape index: {}]
  %s7 = inlined_call_operand.vmem [shape: f32[1,32], index: 7, kind: input, shape index: {}]
  %s8 = inlined_call_operand.vmem [shape: bf16[32,128], index: 8, kind: input, shape index: {}]
  %s9 = inlined_call_operand.vmem [shape: f32[1,128], index: 9, kind: input, shape index: {}]
  %s10 = inlined_call_operand.vmem [shape: f32[2,7,128], index: 10, kind: output, shape index: {}]
  %s11 = sld [smem:[#allocation0]]
  $region73: #{crdnn_forward.11} parent=0
    _
  %s13 = ssub.s32 1, %s11
  %s14 = scalar_select 0, %s13, %s11
  loop: start=0, step=1, limit=4
  $region2: #{crdnn_forward.11} parent=0 // loop_pre_header
    _
  $region3: #{crdnn_forward.11} parent=0 // loop_header
    %s16 = sphi 0, %s20
    %p17 = scmp.ge.s32.totalorder %s16, 4
    %s26 = sphi 0, %s28
    %s29 = sphi 0, %s26
    %s30 = sphi 0, %s29
    %s46 = sphi 0, %s30
    %s52 = sphi 0, %s54
    %s55 = sphi 0, %s52
    %s56 = sphi 0, %s55
    %s72 = sphi 0, %s56
    %s78 = sphi 0, %s80
    %s81 = sphi 0, %s78
    %s82 = sphi 0, %s81
    %s98 = sphi 0, %s82
    %s102 = sphi 0, %s102
    %s104 = sphi 0, %s102
    %s105 = sphi 0, %s104
    %s119 = sphi 0, %s105
    %s123 = sphi 0, %s123
    %s125 = sphi 0, %s123
    %s126 = sphi 0, %s125
    %s140 = sphi 0, %s126
    %s144 = sphi 0, %s144
    %s146 = sphi 0, %s144
    %s147 = sphi 0, %s146
    %s161 = sphi 0, %s147
    %s165 = sphi 0, %s165
    %s167 = sphi 0, %s165
    %s168 = sphi 0, %s167
    %s182 = sphi 0, %s168
    %s186 = sphi 0, %s186
    %s188 = sphi 0, %s186
    %s189 = sphi 0, %s188
    %s203 = sphi 0, %s189
    %s207 = sphi 0, %s207
    %s209 = sphi 0, %s207
    %s210 = sphi 0, %s209
    %s224 = sphi 0, %s210
    %s228 = sphi 0, %s228
    %s230 = sphi 0, %s228
    %s231 = sphi 0, %s230
    %s245 = sphi 0, %s231
    %s251 = sphi 0, %s253
    %s254 = sphi 0, %s251
    %s255 = sphi 0, %s254
    %s271 = sphi 0, %s255
  $region4: #{crdnn_forward.11} parent=0 // loop_header_branch
    %19 = sbr.rel (%p17) target = $region8
  $region5: #{crdnn_forward.11} parent=0 // loop_body
    %s21 = ssub.s32 %s16, 1
    %s22 = ssub.s32 %s16, 2
    %s23 = sadd.s32 %s16, 1
    %s24 = ssub.s32 %s16, %s23
    %p25 = scmp.eq.s32.totalorder %s24, 0
    %s27 = sadd.s32 %s26, 1
    %s28 = scalar_select %p25, %s26, %s27
    %p31 = pneg %p25
    %p32 = scmp.eq.s32.totalorder %s16, 1
    %p33 = por %p31, %p32
    %p34 = scmp.ne.s32.totalorder %s26, %s29
    %p35 = scmp.eq.s32.totalorder %s16, 0
    %p36 = por %p34, %p35
    %p37 = scmp.ne.s32.totalorder %s26, %s29
    %p38 = scmp.eq.s32.totalorder %s21, 1
    %p39 = por %p37, %p38
    %p40 = scmp.ne.s32.totalorder %s29, %s30
    %p41 = scmp.eq.s32.totalorder %s21, 0
    %p42 = por %p40, %p41
    %p43 = scmp.ne.s32.totalorder %s29, %s30
    %p44 = scmp.eq.s32.totalorder %s22, 1
    %p45 = por %p43, %p44
    %p47 = scmp.ne.s32.totalorder %s30, %s46
    %p48 = scmp.eq.s32.totalorder %s22, 0
    %p49 = por %p47, %p48
    %s50 = ssub.s32 %s16, %s23
    %p51 = scmp.eq.s32.totalorder %s50, 0
    %s53 = sadd.s32 %s52, 1
    %s54 = scalar_select %p51, %s52, %s53
    %p57 = pneg %p51
    %p58 = scmp.eq.s32.totalorder %s16, 1
    %p59 = por %p57, %p58
    %p60 = scmp.ne.s32.totalorder %s52, %s55
    %p61 = scmp.eq.s32.totalorder %s16, 0
    %p62 = por %p60, %p61
    %p63 = scmp.ne.s32.totalorder %s52, %s55
    %p64 = scmp.eq.s32.totalorder %s21, 1
    %p65 = por %p63, %p64
    %p66 = scmp.ne.s32.totalorder %s55, %s56
    %p67 = scmp.eq.s32.totalorder %s21, 0
    %p68 = por %p66, %p67
    %p69 = scmp.ne.s32.totalorder %s55, %s56
    %p70 = scmp.eq.s32.totalorder %s22, 1
    %p71 = por %p69, %p70
    %p73 = scmp.ne.s32.totalorder %s56, %s72
    %p74 = scmp.eq.s32.totalorder %s22, 0
    %p75 = por %p73, %p74
    %s76 = ssub.s32 %s16, %s23
    %p77 = scmp.eq.s32.totalorder %s76, 0
    %s79 = sadd.s32 %s78, 1
    %s80 = scalar_select %p77, %s78, %s79
    %p83 = pneg %p77
    %p84 = scmp.eq.s32.totalorder %s16, 1
    %p85 = por %p83, %p84
    %p86 = scmp.ne.s32.totalorder %s78, %s81
    %p87 = scmp.eq.s32.totalorder %s16, 0
    %p88 = por %p86, %p87
    %p89 = scmp.ne.s32.totalorder %s78, %s81
    %p90 = scmp.eq.s32.totalorder %s21, 1
    %p91 = por %p89, %p90
    %p92 = scmp.ne.s32.totalorder %s81, %s82
    %p93 = scmp.eq.s32.totalorder %s21, 0
    %p94 = por %p92, %p93
    %p95 = scmp.ne.s32.totalorder %s81, %s82
    %p96 = scmp.eq.s32.totalorder %s22, 1
    %p97 = por %p95, %p96
    %p99 = scmp.ne.s32.totalorder %s82, %s98
    %p100 = scmp.eq.s32.totalorder %s22, 0
    %p101 = por %p99, %p100
    %s103 = sadd.s32 %s102, 1
    %p106 = scmp.eq.s32.totalorder %s16, 1
    %p107 = scmp.ne.s32.totalorder %s102, %s104
    %p108 = scmp.eq.s32.totalorder %s16, 0
    %p109 = por %p107, %p108
    %p110 = scmp.ne.s32.totalorder %s102, %s104
    %p111 = scmp.eq.s32.totalorder %s21, 1
    %p112 = por %p110, %p111
    %p113 = scmp.ne.s32.totalorder %s104, %s105
    %p114 = scmp.eq.s32.totalorder %s21, 0
    %p115 = por %p113, %p114
    %p116 = scmp.ne.s32.totalorder %s104, %s105
    %p117 = scmp.eq.s32.totalorder %s22, 1
    %p118 = por %p116, %p117
    %p120 = scmp.ne.s32.totalorder %s105, %s119
    %p121 = scmp.eq.s32.totalorder %s22, 0
    %p122 = por %p120, %p121
    %s124 = sadd.s32 %s123, 1
    %p127 = scmp.eq.s32.totalorder %s16, 1
    %p128 = scmp.ne.s32.totalorder %s123, %s125
    %p129 = scmp.eq.s32.totalorder %s16, 0
    %p130 = por %p128, %p129
    %p131 = scmp.ne.s32.totalorder %s123, %s125
    %p132 = scmp.eq.s32.totalorder %s21, 1
    %p133 = por %p131, %p132
    %p134 = scmp.ne.s32.totalorder %s125, %s126
    %p135 = scmp.eq.s32.totalorder %s21, 0
    %p136 = por %p134, %p135
    %p137 = scmp.ne.s32.totalorder %s125, %s126
    %p138 = scmp.eq.s32.totalorder %s22, 1
    %p139 = por %p137, %p138
    %p141 = scmp.ne.s32.totalorder %s126, %s140
    %p142 = scmp.eq.s32.totalorder %s22, 0
    %p143 = por %p141, %p142
    %s145 = sadd.s32 %s144, 1
    %p148 = scmp.eq.s32.totalorder %s16, 1
    %p149 = scmp.ne.s32.totalorder %s144, %s146
    %p150 = scmp.eq.s32.totalorder %s16, 0
    %p151 = por %p149, %p150
    %p152 = scmp.ne.s32.totalorder %s144, %s146
    %p153 = scmp.eq.s32.totalorder %s21, 1
    %p154 = por %p152, %p153
    %p155 = scmp.ne.s32.totalorder %s146, %s147
    %p156 = scmp.eq.s32.totalorder %s21, 0
    %p157 = por %p155, %p156
    %p158 = scmp.ne.s32.totalorder %s146, %s147
    %p159 = scmp.eq.s32.totalorder %s22, 1
    %p160 = por %p158, %p159
    %p162 = scmp.ne.s32.totalorder %s147, %s161
    %p163 = scmp.eq.s32.totalorder %s22, 0
    %p164 = por %p162, %p163
    %s166 = sadd.s32 %s165, 1
    %p169 = scmp.eq.s32.totalorder %s16, 1
    %p170 = scmp.ne.s32.totalorder %s165, %s167
    %p171 = scmp.eq.s32.totalorder %s16, 0
    %p172 = por %p170, %p171
    %p173 = scmp.ne.s32.totalorder %s165, %s167
    %p174 = scmp.eq.s32.totalorder %s21, 1
    %p175 = por %p173, %p174
    %p176 = scmp.ne.s32.totalorder %s167, %s168
    %p177 = scmp.eq.s32.totalorder %s21, 0
    %p178 = por %p176, %p177
    %p179 = scmp.ne.s32.totalorder %s167, %s168
    %p180 = scmp.eq.s32.totalorder %s22, 1
    %p181 = por %p179, %p180
    %p183 = scmp.ne.s32.totalorder %s168, %s182
    %p184 = scmp.eq.s32.totalorder %s22, 0
    %p185 = por %p183, %p184
    %s187 = sadd.s32 %s186, 1
    %p190 = scmp.eq.s32.totalorder %s16, 1
    %p191 = scmp.ne.s32.totalorder %s186, %s188
    %p192 = scmp.eq.s32.totalorder %s16, 0
    %p193 = por %p191, %p192
    %p194 = scmp.ne.s32.totalorder %s186, %s188
    %p195 = scmp.eq.s32.totalorder %s21, 1
    %p196 = por %p194, %p195
    %p197 = scmp.ne.s32.totalorder %s188, %s189
    %p198 = scmp.eq.s32.totalorder %s21, 0
    %p199 = por %p197, %p198
    %p200 = scmp.ne.s32.totalorder %s188, %s189
    %p201 = scmp.eq.s32.totalorder %s22, 1
    %p202 = por %p200, %p201
    %p204 = scmp.ne.s32.totalorder %s189, %s203
    %p205 = scmp.eq.s32.totalorder %s22, 0
    %p206 = por %p204, %p205
    %s208 = sadd.s32 %s207, 1
    %p211 = scmp.eq.s32.totalorder %s16, 1
    %p212 = scmp.ne.s32.totalorder %s207, %s209
    %p213 = scmp.eq.s32.totalorder %s16, 0
    %p214 = por %p212, %p213
    %p215 = scmp.ne.s32.totalorder %s207, %s209
    %p216 = scmp.eq.s32.totalorder %s21, 1
    %p217 = por %p215, %p216
    %p218 = scmp.ne.s32.totalorder %s209, %s210
    %p219 = scmp.eq.s32.totalorder %s21, 0
    %p220 = por %p218, %p219
    %p221 = scmp.ne.s32.totalorder %s209, %s210
    %p222 = scmp.eq.s32.totalorder %s22, 1
    %p223 = por %p221, %p222
    %p225 = scmp.ne.s32.totalorder %s210, %s224
    %p226 = scmp.eq.s32.totalorder %s22, 0
    %p227 = por %p225, %p226
    %s229 = sadd.s32 %s228, 1
    %p232 = scmp.eq.s32.totalorder %s16, 1
    %p233 = scmp.ne.s32.totalorder %s228, %s230
    %p234 = scmp.eq.s32.totalorder %s16, 0
    %p235 = por %p233, %p234
    %p236 = scmp.ne.s32.totalorder %s228, %s230
    %p237 = scmp.eq.s32.totalorder %s21, 1
    %p238 = por %p236, %p237
    %p239 = scmp.ne.s32.totalorder %s230, %s231
    %p240 = scmp.eq.s32.totalorder %s21, 0
    %p241 = por %p239, %p240
    %p242 = scmp.ne.s32.totalorder %s230, %s231
    %p243 = scmp.eq.s32.totalorder %s22, 1
    %p244 = por %p242, %p243
    %p246 = scmp.ne.s32.totalorder %s231, %s245
    %p247 = scmp.eq.s32.totalorder %s22, 0
    %p248 = por %p246, %p247
    %s249 = ssub.s32 %s16, %s23
    %p250 = scmp.eq.s32.totalorder %s249, 0
    %s252 = sadd.s32 %s251, 1
    %s253 = scalar_select %p250, %s251, %s252
    %p256 = pneg %p250
    %p257 = scmp.eq.s32.totalorder %s16, 1
    %p258 = por %p256, %p257
    %p259 = scmp.ne.s32.totalorder %s251, %s254
    %p260 = scmp.eq.s32.totalorder %s16, 0
    %p261 = por %p259, %p260
    %p262 = scmp.ne.s32.totalorder %s251, %s254
    %p263 = scmp.eq.s32.totalorder %s21, 1
    %p264 = por %p262, %p263
    %p265 = scmp.ne.s32.totalorder %s254, %s255
    %p266 = scmp.eq.s32.totalorder %s21, 0
    %p267 = por %p265, %p266
    %p268 = scmp.ne.s32.totalorder %s254, %s255
    %p269 = scmp.eq.s32.totalorder %s22, 1
    %p270 = por %p268, %p269
    %p272 = scmp.ne.s32.totalorder %s255, %s271
    %p273 = scmp.eq.s32.totalorder %s22, 0
    %p274 = por %p272, %p273
    %p275 = scmp.le.s32.totalorder 1, %s16
    %p276 = scmp.lt.s32.totalorder %s16, 3
    %p277 = pnand %p275, %p276
    %p278 = pneg %p277
    // Predicated region
    $region9: #{crdnn_forward.11} parent=5 // pred_check
      _
    $region10: #{crdnn_forward.11} parent=5 // pred_check_branch
      %280 = sbr.rel (%p277) target = $region12
    $region11: #{crdnn_forward.11} parent=5 // pred_region
      %s281 = ssub.s32 %s16, 1
      // Predicated region
      $region13: #{crdnn_forward.11} parent=11 // pred_check
        %p282 = pneg %p115
      $region14: #{crdnn_forward.11} parent=11 // pred_check_branch
        %284 = sbr.rel (%p282) target = $region16
      $region15: #{crdnn_forward.11} parent=11 // pred_region
        _
      $region16: #{crdnn_forward.11} parent=11 // pred_fallthru
        _
      // Predicated region
      $region17: #{crdnn_forward.11} parent=11 // pred_check
        %p285 = pneg %p136
      $region18: #{crdnn_forward.11} parent=11 // pred_check_branch
        %287 = sbr.rel (%p285) target = $region20
      $region19: #{crdnn_forward.11} parent=11 // pred_region
        _
      $region20: #{crdnn_forward.11} parent=11 // pred_fallthru
        _
      // Predicated region
      $region21: #{crdnn_forward.11} parent=11 // pred_check
        %p288 = pneg %p157
      $region22: #{crdnn_forward.11} parent=11 // pred_check_branch
        %290 = sbr.rel (%p288) target = $region24
      $region23: #{crdnn_forward.11} parent=11 // pred_region
        _
      $region24: #{crdnn_forward.11} parent=11 // pred_fallthru
        _
      // Predicated region
      $region25: #{crdnn_forward.11} parent=11 // pred_check
        %p291 = pneg %p178
      $region26: #{crdnn_forward.11} parent=11 // pred_check_branch
        %293 = sbr.rel (%p291) target = $region28
      $region27: #{crdnn_forward.11} parent=11 // pred_region
        _
      $region28: #{crdnn_forward.11} parent=11 // pred_fallthru
        _
      // Predicated region
      $region29: #{crdnn_forward.11} parent=11 // pred_check
        %p294 = pneg %p199
      $region30: #{crdnn_forward.11} parent=11 // pred_check_branch
        %296 = sbr.rel (%p294) target = $region32
      $region31: #{crdnn_forward.11} parent=11 // pred_region
        _
      $region32: #{crdnn_forward.11} parent=11 // pred_fallthru
        _
      // Predicated region
      $region33: #{crdnn_forward.11} parent=11 // pred_check
        %p297 = pneg %p220
      $region34: #{crdnn_forward.11} parent=11 // pred_check_branch
        %299 = sbr.rel (%p297) target = $region36
      $region35: #{crdnn_forward.11} parent=11 // pred_region
        _
      $region36: #{crdnn_forward.11} parent=11 // pred_fallthru
        _
      // Predicated region
      $region37: #{crdnn_forward.11} parent=11 // pred_check
        %p300 = pneg %p241
      $region38: #{crdnn_forward.11} parent=11 // pred_check_branch
        %302 = sbr.rel (%p300) target = $region40
      $region39: #{crdnn_forward.11} parent=11 // pred_region
        _
      $region40: #{crdnn_forward.11} parent=11 // pred_fallthru
        _
    $region12: #{crdnn_forward.11} parent=5 // pred_fallthru
      _
    %p303 = scmp.lt.s32.totalorder %s16, 2
    // Predicated region
    $region41: #{crdnn_forward.11} parent=5 // pred_check
      %p304 = pneg %p303
    $region42: #{crdnn_forward.11} parent=5 // pred_check_branch
      %306 = sbr.rel (%p304) target = $region44
    $region43: #{crdnn_forward.11} parent=5 // pred_region
      // Predicated region
      $region45: #{crdnn_forward.11} parent=43 // pred_check
        %p307 = pneg %p36
      $region46: #{crdnn_forward.11} parent=43 // pred_check_branch
        %309 = sbr.rel (%p307) target = $region48
      $region47: #{crdnn_forward.11} parent=43 // pred_region
        %p310 = scmp.lt.s32.totalorder %s16, 1
        %s311 = scalar_select %p310, %s16, 1
        %s312 = smul.addr %s311, 4
        %s313 = scalar_lea.vmem %s0, %s312
      $region48: #{crdnn_forward.11} parent=43 // pred_fallthru
        _
      // Predicated region
      $region49: #{crdnn_forward.11} parent=43 // pred_check
        %p314 = pneg %p62
      $region50: #{crdnn_forward.11} parent=43 // pred_check_branch
        %316 = sbr.rel (%p314) target = $region52
      $region51: #{crdnn_forward.11} parent=43 // pred_region
        %p317 = scmp.lt.s32.totalorder %s16, 1
        %s318 = scalar_select %p317, %s16, 1
        %s319 = smul.addr %s318, 2
        %s320 = smul.addr %s319, 4
        %s321 = scalar_lea.vmem %s1, %s320
      $region52: #{crdnn_forward.11} parent=43 // pred_fallthru
        _
      // Predicated region
      $region53: #{crdnn_forward.11} parent=43 // pred_check
        %p322 = pneg %p88
      $region54: #{crdnn_forward.11} parent=43 // pred_check_branch
        %324 = sbr.rel (%p322) target = $region56
      $region55: #{crdnn_forward.11} parent=43 // pred_region
        %p325 = scmp.lt.s32.totalorder %s16, 1
        %s326 = scalar_select %p325, %s16, 1
        %s327 = smul.addr %s326, 4
        %s328 = smul.addr %s327, 4
        %s329 = scalar_lea.vmem %s2, %s328
      $region56: #{crdnn_forward.11} parent=43 // pred_fallthru
        _
    $region44: #{crdnn_forward.11} parent=5 // pred_fallthru
      _
    %p330 = scmp.le.s32.totalorder 1, %s16
    %p331 = scmp.lt.s32.totalorder %s16, 3
    %p332 = pnand %p330, %p331
    %p333 = pneg %p332
    // Predicated region
    $region57: #{crdnn_forward.11} parent=5 // pred_check
      _
    $region58: #{crdnn_forward.11} parent=5 // pred_check_branch
      %335 = sbr.rel (%p332) target = $region60
    $region59: #{crdnn_forward.11} parent=5 // pred_region
      %s336 = ssub.s32 %s16, 1
      %p337 = scmp.lt.s32.totalorder %s21, 1
      %s338 = scalar_select %p337, %s21, 1
      %s339 = smul.addr %s338, 4
      %s340 = scalar_lea.vmem %s0, %s339
      %p341 = pneg %p42
      %p342 = pneg %p39
      %p343 = scmp.lt.s32.totalorder %s21, 1
      %s344 = scalar_select %p343, %s21, 1
      %s345 = smul.addr %s344, 2
      %s346 = smul.addr %s345, 4
      %s347 = scalar_lea.vmem %s1, %s346
      %p348 = pneg %p68
      %p349 = pneg %p65
      %p350 = scmp.lt.s32.totalorder %s21, 1
      %s351 = scalar_select %p350, %s21, 1
      %s352 = smul.addr %s351, 4
      %s353 = smul.addr %s352, 4
      %s354 = scalar_lea.vmem %s2, %s353
      %p355 = pneg %p94
      %p356 = pneg %p91
      %p357 = pneg %p115
      %p358 = pneg %p112
      %p359 = pneg %p136
      %p360 = pneg %p133
      %p361 = pneg %p157
      %p362 = pneg %p154
      %p363 = pneg %p178
      %p364 = pneg %p175
      %p365 = pneg %p199
      %p366 = pneg %p196
      %p367 = pneg %p220
      %p368 = pneg %p217
      %p369 = pneg %p241
      %p370 = pneg %p238
      %p371 = pneg %p267
      %p372 = pneg %p264
      %p373 = scmp.lt.s32.totalorder %s21, 1
      %s374 = scalar_select %p373, %s21, 1
      %s375 = smul.addr %s374, 8
      %s376 = scalar_lea.vmem %s10, %s375
      %p377 = scmp.lt.s32.totalorder %s21, 1
      %s378 = scalar_select %p377, %s21, 1
      %s379 = smul.addr %s378, 4
      %s380 = scalar_lea.vmem %s0, %s379
      %p381 = scmp.lt.s32.totalorder %s21, 1
      %s382 = scalar_select %p381, %s21, 1
      %s383 = smul.addr %s382, 2
      %s384 = smul.addr %s383, 4
      %s385 = scalar_lea.vmem %s1, %s384
      %p386 = scmp.lt.s32.totalorder %s21, 1
      %s387 = scalar_select %p386, %s21, 1
      %s388 = smul.addr %s387, 4
      %s389 = smul.addr %s388, 4
      %s390 = scalar_lea.vmem %s2, %s389
      %p391 = scmp.lt.s32.totalorder %s21, 1
      %s392 = scalar_select %p391, %s21, 1
      %s393 = smul.addr %s392, 8
      %s394 = scalar_lea.vmem %s10, %s393
      %v396 = vld [vmem:[%s380] sm:$0xf]
      %v397 = vld [vmem:[%s385] sm:$0xf]
      %v398 = vld [vmem:[%s385 + $0x4] sm:$0xf]
      %v399 = vld [vmem:[%s390] sm:$0xf]
      %v400 = vld [vmem:[%s390 + $0x4] sm:$0xf]
      %v401 = vld [vmem:[%s390 + $0x8] sm:$0xf]
      %v402 = vld [vmem:[%s390 + $0xc] sm:$0xf]
      %v403 = vld [vmem:[%s3] sm:$0xf]
      %v404 = vld [vmem:[%s3 + $0x4] sm:$0xf]
      %v405 = vld [vmem:[%s3 + $0x8] sm:$0xf]
      %v406 = vld [vmem:[%s3 + $0xc] sm:$0xf]
      %v407 = vld [vmem:[%s4] sm:$0x1]
      %v409 = vperm.slane %v407, 0
      %v415 = vunpack.c.l.b16 %v403
      %v416 = vunpack.c.l.b16 %v404
      %v417 = vunpack.c.l.b16 %v405
      %v418 = vunpack.c.l.b16 %v406
      %v419 = vpack.c.b16 %v416, %v415
      %v420 = vpack.c.b16 %v418, %v417
      %vm423 = vcmask 261120
      %v425 = vsel %vm423, %v396, 0
      %427 = vmatpush.bf16.msra.mxu0 0
      %428 = vmatpush.bf16.msra.mxu0 0
      %429 = vmatpush.bf16.msra.mxu0 0
      %430 = vmatpush.bf16.msra.mxu0 0
      %431 = vmatpush.bf16.msra.mxu0 0
      %432 = vmatpush.bf16.msra.mxu0 0
      %433 = vmatpush.bf16.msra.mxu0 %v420
      %434 = vmatpush.bf16.msra.mxu0 %v419
      %435 = vmatmul.bf16.gmra.mxu0 %v425
      %v436 = vpop.f32.mrf.mxu0
      %v437 = vadd.f32 %v409, %v436
      %v438 = vpop.f32.mrf.mxu0
      %439 = vdwg.mxu0
      %v440 = vpack.c.bf16 %v437, %v437
      %v445 = vunpack.c.l.b16 %v399
      %v446 = vunpack.c.l.b16 %v400
      %v447 = vunpack.c.l.b16 %v401
      %v448 = vunpack.c.l.b16 %v402
      %v449 = vpack.c.b16 %v446, %v445
      %v450 = vpack.c.b16 %v448, %v447
      %v454 = vsel %vm423, %v440, 0
      %456 = vmatpush.bf16.msra.mxu0 0
      %457 = vmatpush.bf16.msra.mxu0 0
      %458 = vmatpush.bf16.msra.mxu0 0
      %459 = vmatpush.bf16.msra.mxu0 0
      %460 = vmatpush.bf16.msra.mxu0 0
      %461 = vmatpush.bf16.msra.mxu0 0
      %462 = vmatpush.bf16.msra.mxu0 %v450
      %463 = vmatpush.bf16.msra.mxu0 %v449
      %464 = vmatmul.bf16.gmra.mxu0 %v454
      %v465 = vpop.f32.mrf.mxu0
      %v466 = vadd.f32 0.0, %v465
      %v467 = vpop.f32.mrf.mxu0
      %468 = vdwg.mxu0
      %v469 = vmul.f32 %v466, 0.17677669
      %vm470 = vcmask 129024
      %v471 = vsel %vm470, %v469, -inf
      %472 = vmax.xlane.f32.xlu0 %v471
      %v473 = vpop.xlane.xlu0 %472
      %v474 = vsub.f32 %v469, %v473
      %v475 = vmul.f32 %v474, 1.442695
      %v476 = vpow.pop %v475
      %v477 = vsel %vm470, %v476, 0.0
      %478 = vadd.xlane.f32.xlu0 %v477
      %v479 = vpop.xlane.xlu0 %478
      %v480 = vrcp.pop %v479
      %v481 = vmul.f32 %v476, %v480
      %v482 = vpack.c.bf16 %v481, %v481
      %v485 = vunpack.c.l.b16 %v397
      %v486 = vunpack.c.l.b16 %v398
      %v487 = vpack.c.b16 %v486, %v485
      %vm489 = vcmask 130048
      %v491 = vsel %vm489, %v482, 0
      %493 = vmatpush.bf16.msra.mxu0 0
      %494 = vmatpush.bf16.msra.mxu0 0
      %495 = vmatpush.bf16.msra.mxu0 0
      %496 = vmatpush.bf16.msra.mxu0 0
      %497 = vmatpush.bf16.msra.mxu0 0
      %498 = vmatpush.bf16.msra.mxu0 0
      %499 = vmatpush.bf16.msra.mxu0 0
      %500 = vmatpush.bf16.msra.mxu0 %v487
      %501 = vmatmul.bf16.gmra.mxu0 %v491
      %v502 = vpop.f32.mrf.mxu0
      %v503 = vadd.f32 0.0, %v502
      %v504 = vpop.f32.mrf.mxu0
      %505 = vdwg.mxu0
      %v506 = vld [vmem:[%s5] sm:$0xf]
      %v507 = vld [vmem:[%s5 + $0x4] sm:$0xf]
      %v508 = vld [vmem:[%s5 + $0x8] sm:$0xf]
      %v509 = vld [vmem:[%s5 + $0xc] sm:$0xf]
      %v510 = vpack.c.bf16 %v503, %v503
      %v511 = vld [vmem:[%s6] sm:$0xf]
      %v512 = vld [vmem:[%s6 + $0x4] sm:$0xf]
      %v513 = vld [vmem:[%s6 + $0x8] sm:$0xf]
      %v514 = vld [vmem:[%s6 + $0xc] sm:$0xf]
      %v519 = vunpack.c.l.b16 %v511
      %v520 = vunpack.c.l.b16 %v512
      %v521 = vunpack.c.l.b16 %v513
      %v522 = vunpack.c.l.b16 %v514
      %v523 = vpack.c.b16 %v520, %v519
      %v524 = vpack.c.b16 %v522, %v521
      %v528 = vsel %vm423, %v510, 0
      %530 = vmatpush.bf16.msra.mxu0 0
      %531 = vmatpush.bf16.msra.mxu0 0
      %532 = vmatpush.bf16.msra.mxu0 0
      %533 = vmatpush.bf16.msra.mxu0 0
      %534 = vmatpush.bf16.msra.mxu0 0
      %535 = vmatpush.bf16.msra.mxu0 0
      %536 = vmatpush.bf16.msra.mxu0 %v524
      %537 = vmatpush.bf16.msra.mxu0 %v523
      %538 = vmatmul.bf16.gmra.mxu0 %v528
      %v539 = vpop.f32.mrf.mxu0
      %v540 = vadd.f32 0.0, %v539
      %v541 = vpop.f32.mrf.mxu0
      %542 = vdwg.mxu0
      %v547 = vunpack.c.l.b16 %v506
      %v548 = vunpack.c.l.b16 %v507
      %v549 = vunpack.c.l.b16 %v508
      %v550 = vunpack.c.l.b16 %v509
      %v551 = vpack.c.b16 %v548, %v547
      %v552 = vpack.c.b16 %v550, %v549
      %555 = vmatpush.bf16.msra.mxu0 0
      %556 = vmatpush.bf16.msra.mxu0 0
      %557 = vmatpush.bf16.msra.mxu0 0
      %558 = vmatpush.bf16.msra.mxu0 0
      %559 = vmatpush.bf16.msra.mxu0 0
      %560 = vmatpush.bf16.msra.mxu0 0
      %561 = vmatpush.bf16.msra.mxu0 %v552
      %562 = vmatpush.bf16.msra.mxu0 %v551
      %563 = vmatmul.bf16.gmra.mxu0 %v425
      %v564 = vpop.f32.mrf.mxu0
      %v565 = vadd.f32 %v540, %v564
      %v566 = vpop.f32.mrf.mxu0
      %567 = vdwg.mxu0
      %v568 = vld [vmem:[%s7] sm:$0x1]
      %v570 = vperm.slane %v568, 0
      %v572 = vadd.f32 %v565, %v570
      %v573 = vtanh.pop %v572
      %v574 = vpack.c.bf16 %v573, %v573
      %v575 = vld [vmem:[%s8] sm:$0xf]
      %v576 = vld [vmem:[%s8 + $0x4] sm:$0xf]
      %v577 = vld [vmem:[%s8 + $0x8] sm:$0xf]
      %v578 = vld [vmem:[%s8 + $0xc] sm:$0xf]
      %v579 = vld [vmem:[%s9] sm:$0x1]
      %v581 = vperm.slane %v579, 0
      %v587 = vunpack.c.l.b16 %v575
      %v588 = vunpack.c.l.b16 %v576
      %v589 = vunpack.c.l.b16 %v577
      %v590 = vunpack.c.l.b16 %v578
      %v591 = vpack.c.b16 %v588, %v587
      %v592 = vpack.c.b16 %v590, %v589
      %v596 = vsel %vm423, %v574, 0
      %598 = vmatpush.bf16.msra.mxu0 0
      %599 = vmatpush.bf16.msra.mxu0 0
      %600 = vmatpush.bf16.msra.mxu0 0
      %601 = vmatpush.bf16.msra.mxu0 0
      %602 = vmatpush.bf16.msra.mxu0 0
      %603 = vmatpush.bf16.msra.mxu0 0
      %604 = vmatpush.bf16.msra.mxu0 %v592
      %605 = vmatpush.bf16.msra.mxu0 %v591
      %606 = vmatmul.bf16.gmra.mxu0 %v596
      %v607 = vpop.f32.mrf.mxu0
      %v608 = vadd.f32 %v581, %v607
      %v609 = vpop.f32.mrf.mxu0
      %610 = vdwg.mxu0
      %vm611 = vcmask 1046528
      %v612 = vsel %vm611, %v608, -inf
      %613 = vmax.xlane.f32.xlu0 %v612
      %v614 = vpop.xlane.xlu0 %613
      %v615 = vsub.f32 %v608, %v614
      %v616 = vmul.f32 %v615, 1.442695
      %v617 = vpow.pop %v616
      %v618 = vsel %vm611, %v617, 0.0
      %619 = vadd.xlane.f32.xlu0 %v618
      %v620 = vpop.xlane.xlu0 %619
      %v621 = vlog2.pop %v620
      %v622 = vmul.f32 %v621, 0.6931472
      %v623 = vsub.f32 %v615, %v622
      %624 = vst [vmem:[%s394] sm:$0x7f] %v623
      %p625 = scmp.lt.s32.totalorder %s21, 1
      %s626 = scalar_select %p625, %s21, 1
      %s627 = smul.addr %s626, 8
      %s628 = scalar_lea.vmem %s10, %s627
      // Predicated region
      $region61: #{crdnn_forward.11} parent=59 // pred_check
        %p629 = pneg %p264
      $region62: #{crdnn_forward.11} parent=59 // pred_check_branch
        %631 = sbr.rel (%p629) target = $region64
      $region63: #{crdnn_forward.11} parent=59 // pred_region
        _
      $region64: #{crdnn_forward.11} parent=59 // pred_fallthru
        _
    $region60: #{crdnn_forward.11} parent=5 // pred_fallthru
      _
    %p632 = scmp.le.s32.totalorder 2, %s16
    // Predicated region
    $region65: #{crdnn_forward.11} parent=5 // pred_check
      %p633 = pneg %p632
    $region66: #{crdnn_forward.11} parent=5 // pred_check_branch
      %635 = sbr.rel (%p633) target = $region68
    $region67: #{crdnn_forward.11} parent=5 // pred_region
      %s636 = ssub.s32 %s16, 2
      // Predicated region
      $region69: #{crdnn_forward.11} parent=67 // pred_check
        %p637 = pneg %p270
      $region70: #{crdnn_forward.11} parent=67 // pred_check_branch
        %639 = sbr.rel (%p637) target = $region72
      $region71: #{crdnn_forward.11} parent=67 // pred_region
        %p640 = scmp.lt.s32.totalorder %s22, 1
        %s641 = scalar_select %p640, %s22, 1
        %s642 = smul.addr %s641, 8
        %s643 = scalar_lea.vmem %s10, %s642
      $region72: #{crdnn_forward.11} parent=67 // pred_fallthru
        _
    $region68: #{crdnn_forward.11} parent=5 // pred_fallthru
      _
  $region6: #{crdnn_forward.11} parent=0 // loop_footer
    %s20 = sadd.s32 1, %s16
  $region7: #{crdnn_forward.11} parent=0 // loop_footer_branch
    %15 = sbr.rel target = $region3
  $region8: #{crdnn_forward.11} parent=0 // loop_exit
    _

</llo_original>
